<compile_context>
chip_gen: v7x
topology: tpu7x:2x2x1
jax: 0.10.0
libtpu: 0.0.40
codegen_flags: <defaults>
</compile_context>

<pallas_src>
import jax
import jax.numpy as jnp
from jax.experimental import pallas as pl
from jax.experimental.pallas import tpu as pltpu


# ----------------------------- in-kernel helpers -----------------------------

def _lse_last(x):
    """logsumexp over the last axis, keepdims=True (used for log_softmax)."""
    m = jnp.max(x, axis=-1, keepdims=True)
    return m + jnp.log(jnp.sum(jnp.exp(x - m), axis=-1, keepdims=True))


# --------------------------------- the kernel --------------------------------
# One grid step per batch row; seq_lengths is scalar-prefetched into SMEM.

def neural_hmm_kernel(len_ref, obs_ref, prior_ref, trans_ref, emiss_ref,
                      out_ref, beta_scr):
    T, N = obs_ref.shape                       # (T, N) block for this sequence
    H = trans_ref.shape[0]
    f32 = jnp.float32

    b = pl.program_id(0)
    L = len_ref[b]                             # this sequence's length (int32)

    # ---- _initialize_states: log_softmax of parameters (temperature = 1) ----
    prior_raw = prior_ref[...]                               # (1, H)
    log_priors = prior_raw - _lse_last(prior_raw)            # (1, H)
    priors_p = jnp.exp(log_priors)                           # (1, H)

    trans_raw = trans_ref[...]                               # (H, H)
    log_trans = trans_raw - _lse_last(trans_raw)             # (H, H)
    P = jnp.exp(log_trans)                                   # (H, H)
    PT = P.T                                                 # (H, H)
    MT = (P * log_trans).T                                   # (H, H)
    # fused RHS for the forward loop: one MXU push per step instead of three
    P_MT_PT = jnp.concatenate([P, MT, PT], axis=1)           # (H, 3H), 3H <= 128

    emiss_raw = emiss_ref[...]                               # (H, N)
    log_emiss = emiss_raw - _lse_last(emiss_raw)             # (H, N)

    # ---- emission log-probs, all timesteps in one MXU matmul -----------------
    # exact for strictly one-hot obs rows: obs @ log_emiss.T == log_matmul(...)
    e_log_all = jnp.dot(obs_ref[...], log_emiss.T,
                        preferred_element_type=f32)          # (T, H)
    e_max = jnp.max(e_log_all, axis=-1, keepdims=True)       # (T, 1)
    e_p_all = jnp.exp(e_log_all - e_max)                     # (T, H), row max = 1

    # ---- backward pass (scaled probability space) into VMEM scratch ----------
    # beta_t ∝ sum_j P[i,j] * e_p_t[j] * beta_{t+1}[j]; per-(t) scale factors
    # cancel in the exactly normalized gamma / xi below.
    beta_next = jnp.ones((1, H), f32)
    beta_scr[T - 1] = beta_next
    for t in range(T - 2, -1, -1):
        x = e_p_all[t:t + 1, :] * beta_next                  # (1, H)
        bvec = jnp.dot(x, PT, preferred_element_type=f32)    # (1, H)
        bmax = jnp.max(bvec, axis=-1, keepdims=True)         # (1, 1)
        beta_next = bvec * pl.reciprocal(jnp.maximum(bmax, f32(1e-30)),
                                         approx=True)
        beta_scr[t] = beta_next

    # ---- fused forward pass + expected complete log-likelihood ---------------
    acc = jnp.zeros((1, 1), f32)                             # per-sequence ECLL
    alpha_prev = None
    for t in range(T):
        e_p_t = e_p_all[t:t + 1, :]                          # (1, H)
        e_log_t = e_log_all[t:t + 1, :]                      # (1, H)

        # torch.roll(beta, L - T, time): rolled[t] = beta[t + T - L] for t < L.
        # For t >= L the gamma / xi terms are masked below, so clamp is safe.
        idx = jnp.maximum(jnp.minimum(t + T - L, T - 1), 0)  # scalar int32
        beta_t = beta_scr[idx]                               # (1, H) dynamic read

        in_seq = t < L                                       # scalar bool

        if t == 0:
            a_unnorm = priors_p * e_p_t                      # (1, H)
            tran_bt = None
        else:
            # one fused MXU matmul: [alpha_{t-1}; w] @ [P | MT | PT]
            w = e_p_t * beta_t                               # (1, H)
            lhs = jnp.concatenate([alpha_prev, w], axis=0)   # (2, H)
            res = jnp.dot(lhs, P_MT_PT,
                          preferred_element_type=f32)        # (2, 3H)
            a_unnorm = e_p_t * res[0:1, 0:H]                 # e_p * (alpha @ P)
            # xi expectation, factored (no (H,H) materialization); exact divide
            num = jnp.sum(alpha_prev * res[1:2, H:2 * H],
                          axis=-1, keepdims=True)            # alpha · (w @ MT)
            z = jnp.sum(alpha_prev * res[1:2, 2 * H:3 * H],
                        axis=-1, keepdims=True)              # alpha · (w @ PT)
            tran_bt = num / jnp.maximum(z, f32(1e-30))       # (1, 1)

        a_sum = jnp.sum(a_unnorm, axis=-1, keepdims=True)    # (1, 1)
        # scale-only (cancels in normalized gamma / xi) -> approx reciprocal OK
        alpha = a_unnorm * pl.reciprocal(jnp.maximum(a_sum, f32(1e-30)),
                                         approx=True)

        # gamma folded into (1,1) divides; gamma itself is never materialized
        g_unnorm = alpha * beta_t                            # (1, H)
        g_inv = 1.0 / jnp.maximum(jnp.sum(g_unnorm, axis=-1, keepdims=True),
                                  f32(1e-30))                # exact divide
        emis_bt = jnp.sum(g_unnorm * e_log_t, axis=-1, keepdims=True) * g_inv

        acc = acc + jnp.where(in_seq, emis_bt, f32(0.0))
        if t == 0:
            # prior term (no length masking, matching the reference)
            acc = acc + jnp.sum(g_unnorm * log_priors, axis=-1,
                                keepdims=True) * g_inv
        else:
            # transition term counted iff t <= seq_length - 1  <=>  t < L
            acc = acc + jnp.where(in_seq, tran_bt, f32(0.0))

        alpha_prev = alpha

    out_ref[...] = acc                                       # (1, 1) per sequence


# --------------------------------- wrapper -----------------------------------

def neural_hmm_forward(obs, seq_lengths, state_priors, unnorm_trans, unnorm_emiss):
    """Returns the scalar expected complete log-likelihood (NeuralHMM.forward)."""
    B, T, N = obs.shape
    H = unnorm_trans.shape[0]

    out = pl.pallas_call(
        neural_hmm_kernel,
        out_shape=jax.ShapeDtypeStruct((B, 1, 1), jnp.float32),
        grid_spec=pltpu.PrefetchScalarGridSpec(
            num_scalar_prefetch=1,                # seq_lengths -> SMEM
            grid=(B,),
            in_specs=[
                pl.BlockSpec((None, T, N), lambda b, lens: (b, 0, 0)),  # obs row
                pl.BlockSpec((1, H), lambda b, lens: (0, 0)),           # priors
                pl.BlockSpec((H, H), lambda b, lens: (0, 0)),           # trans
                pl.BlockSpec((H, N), lambda b, lens: (0, 0)),           # emiss
            ],
            out_specs=pl.BlockSpec((None, 1, 1), lambda b, lens: (b, 0, 0)),
            scratch_shapes=[pltpu.VMEM((T, 1, H), jnp.float32)],        # betas
        ),
        compiler_params=pltpu.CompilerParams(
            dimension_semantics=("parallel",)),   # v7x: 2 TCs split the batch
    )(
        seq_lengths.reshape(B).astype(jnp.int32),
        obs.astype(jnp.float32),
        state_priors.reshape(1, H).astype(jnp.float32),
        unnorm_trans.astype(jnp.float32),
        unnorm_emiss.astype(jnp.float32),
    )
    # per-sequence ECLLs -> single scalar (tiny XLA reduce, keeps batch parallel)
    return jnp.sum(out)


# -------------------------- pure-JAX reference (check) ------------------------

def reference_forward(obs, seq_lengths, state_priors, unnorm_trans, unnorm_emiss):
    from jax.scipy.special import logsumexp as lse
    B, T, N = obs.shape
    H = unnorm_trans.shape[0]
    lp = jax.nn.log_softmax(state_priors)
    log_trans = jax.nn.log_softmax(unnorm_trans, axis=-1)
    log_emiss = jax.nn.log_softmax(unnorm_emiss, axis=-1)

    def log_matmul(a, b):
        return lse(a[..., :, :, None] + b[..., None, :, :], axis=-2)

    log_obs = jnp.log(obs)
    emiss_t = log_matmul(log_obs, log_emiss.T)               # (B, T, H)

    alphas = []
    for t in range(T):
        if t == 0:
            a = lp[None, :] + emiss_t[:, 0]
        else:
            a = emiss_t[:, t] + log_matmul(alphas[-1], log_trans)
        a = a - lse(a, axis=-1, keepdims=True)
        alphas.append(a)
    log_alpha = jnp.stack(alphas, axis=1)

    betas = [None] * T
    betas[T - 1] = jnp.zeros((B, H))
    for t in range(T - 2, -1, -1):
        X = emiss_t[:, t] + betas[t + 1]
        betas[t] = log_matmul(log_trans, X.T).T
    log_beta = jnp.stack(betas, axis=1)
    log_beta = jnp.stack(
        [jnp.roll(log_beta[b], int(seq_lengths[b]) - T, axis=0) for b in range(B)],
        axis=0)

    log_gamma_u = log_alpha + log_beta
    log_gamma = log_gamma_u - lse(log_gamma_u, axis=-1, keepdims=True)

    xis = []
    for t in range(1, T):
        temp1 = emiss_t[:, t] + log_beta[:, t]
        temp2 = log_alpha[:, t - 1][:, :, None] + temp1[:, None, :]
        xis.append(log_trans[None] + temp2)
    log_xi = jnp.stack(xis, axis=1)
    norm = lse(log_xi.reshape(B, T - 1, -1), axis=-1).reshape(B, T - 1, 1, 1)
    log_xi = log_xi - norm

    log_prior = jnp.sum(jnp.exp(log_gamma[:, 0, :]) * lp[None, :])
    log_tran_bt = jnp.sum(jnp.exp(log_xi) * log_trans[None, None], axis=(-2, -1))
    lt = sum(jnp.sum(log_tran_bt[b, :int(seq_lengths[b]) - 1]) for b in range(B))
    log_emis_bt = jnp.sum(jnp.exp(log_gamma) * emiss_t, axis=-1)
    le = sum(jnp.sum(log_emis_bt[b, :int(seq_lengths[b])]) for b in range(B))
    return log_prior + lt + le


# ------------------------------------ main ------------------------------------

if __name__ == "__main__":
    key = jax.random.PRNGKey(0)
    B, T, H, N = 2, 8, 32, 16     # batch, max_seq_length, n_hidden, n_obs

    k1, k2 = jax.random.split(key, 2)

    # deterministic parameter init mirroring NeuralHMM._initialize_model defaults
    priors = jnp.zeros((H,), jnp.float32) + 0.001
    priors = priors.at[0].set(1.0)
    state_priors = jnp.log(priors)                            # (H,)
    unnorm_trans = jax.random.normal(k1, (H, H), jnp.float32)  # randn(H, H)
    unnorm_emiss = jnp.zeros((H, N), jnp.float32)              # zeros(H, n_obs)

    # one-hot observation sequences (obs.sum(-1) == 1 everywhere, as asserted)
    obs_idx = jax.random.randint(k2, (B, T), 0, N)
    obs = jax.nn.one_hot(obs_idx, N, dtype=jnp.float32)        # (B, T, N)
    seq_lengths = jnp.array([T, 5], dtype=jnp.int32)           # (B,)

    # TODO(synk): host-side `assert (obs.sum(-1) == 1).all()` and the viterbi()
    # backtrace (Python list manipulation) are left outside the kernel.

    ll = neural_hmm_forward(obs, seq_lengths, state_priors, unnorm_trans, unnorm_emiss)
    ll = jax.block_until_ready(ll)

    ref = reference_forward(obs, seq_lengths, state_priors, unnorm_trans, unnorm_emiss)
    assert bool(jnp.isfinite(ll)), ll
    # tolerance slightly looser than fp32 eps to allow for MXU rounding in the
    # matmul-based kernel vs. the purely elementwise log-space reference
    assert abs(float(ll) - float(ref)) <= 5e-3 * max(1.0, abs(float(ref))), (
        float(ll), float(ref))

    print("KERNEL_OK")
</pallas_src>

<mosaic_0001>
module attributes {stable_mosaic.version = 11 : i64} {
  func.func @neural_hmm_kernel(%arg0: i32, %arg1: memref<2xi32, #tpu.memory_space<smem>>, %arg2: memref<1x8x16xf32, #tpu.memory_space<vmem>>, %arg3: memref<1x32xf32, #tpu.memory_space<vmem>>, %arg4: memref<32x32xf32, #tpu.memory_space<vmem>>, %arg5: memref<32x16xf32, #tpu.memory_space<vmem>>, %arg6: memref<1x1x1xf32, #tpu.memory_space<vmem>>, %arg7: memref<8x1x32xf32, #tpu.memory_space<vmem>>) attributes {dimension_semantics = [#tpu.dimension_semantics<parallel>], iteration_bounds = array<i64: 2>, scalar_prefetch = 1 : i64, scratch_operands = 1 : i64, tpu.core_type = #tpu.core_type<tc>, window_params = [{transform_indices = @transform_0, window_bounds = array<i64: 1, 8, 16>}, {pipeline_mode = #tpu.pipeline_mode<synchronous>, transform_indices = @transform_1, window_bounds = array<i64: 1, 32>}, {pipeline_mode = #tpu.pipeline_mode<synchronous>, transform_indices = @transform_2, window_bounds = array<i64: 32, 32>}, {pipeline_mode = #tpu.pipeline_mode<synchronous>, transform_indices = @transform_3, window_bounds = array<i64: 32, 16>}, {transform_indices = @transform_4, window_bounds = array<i64: 1, 1, 1>}]} {
    %0 = arith.index_cast %arg0 : i32 to index
    %1 = memref.load %arg1[%0] : memref<2xi32, #tpu.memory_space<smem>>
    %c0 = arith.constant 0 : index
    %c0_0 = arith.constant 0 : index
    %2 = vector.load %arg3[%c0, %c0_0] : memref<1x32xf32, #tpu.memory_space<vmem>>, vector<1x32xf32>
    %cst = arith.constant dense<0xFF800000> : vector<1xf32>
    %3 = vector.multi_reduction <maximumf>, %2, %cst [1] : vector<1x32xf32> to vector<1xf32>
    %4 = vector.shape_cast %3 : vector<1xf32> to vector<1x1xf32>
    %5 = vector.broadcast %4 : vector<1x1xf32> to vector<1x32xf32>
    %6 = arith.subf %2, %5 : vector<1x32xf32>
    %7 = math.exp %6 : vector<1x32xf32>
    %cst_1 = arith.constant dense<0.000000e+00> : vector<1xf32>
    %8 = vector.multi_reduction <add>, %7, %cst_1 [1] : vector<1x32xf32> to vector<1xf32>
    %9 = vector.shape_cast %8 : vector<1xf32> to vector<1x1xf32>
    %10 = math.log %9 : vector<1x1xf32>
    %11 = arith.addf %4, %10 : vector<1x1xf32>
    %12 = vector.broadcast %11 : vector<1x1xf32> to vector<1x32xf32>
    %13 = arith.subf %2, %12 : vector<1x32xf32>
    %14 = math.exp %13 : vector<1x32xf32>
    %c0_2 = arith.constant 0 : index
    %c0_3 = arith.constant 0 : index
    %15 = vector.load %arg4[%c0_2, %c0_3] : memref<32x32xf32, #tpu.memory_space<vmem>>, vector<32x32xf32>
    %cst_4 = arith.constant dense<0xFF800000> : vector<32xf32>
    %16 = vector.multi_reduction <maximumf>, %15, %cst_4 [1] : vector<32x32xf32> to vector<32xf32>
    %17 = vector.shape_cast %16 : vector<32xf32> to vector<32x1xf32>
    %18 = vector.broadcast %17 : vector<32x1xf32> to vector<32x32xf32>
    %19 = arith.subf %15, %18 : vector<32x32xf32>
    %20 = math.exp %19 : vector<32x32xf32>
    %cst_5 = arith.constant dense<0.000000e+00> : vector<32xf32>
    %21 = vector.multi_reduction <add>, %20, %cst_5 [1] : vector<32x32xf32> to vector<32xf32>
    %22 = vector.shape_cast %21 : vector<32xf32> to vector<32x1xf32>
    %23 = math.log %22 : vector<32x1xf32>
    %24 = arith.addf %17, %23 : vector<32x1xf32>
    %25 = vector.broadcast %24 : vector<32x1xf32> to vector<32x32xf32>
    %26 = arith.subf %15, %25 : vector<32x32xf32>
    %27 = math.exp %26 : vector<32x32xf32>
    %28 = tpu.transpose %27, [1, 0] : vector<32x32xf32> -> vector<32x32xf32>
    %29 = arith.mulf %27, %26 : vector<32x32xf32>
    %30 = tpu.transpose %29, [1, 0] : vector<32x32xf32> -> vector<32x32xf32>
    %31 = tpu.concatenate %27, %30, %28 in 1 : vector<32x32xf32>, vector<32x32xf32>, vector<32x32xf32> -> vector<32x96xf32>
    %c0_6 = arith.constant 0 : index
    %c0_7 = arith.constant 0 : index
    %32 = vector.load %arg5[%c0_6, %c0_7] : memref<32x16xf32, #tpu.memory_space<vmem>>, vector<32x16xf32>
    %cst_8 = arith.constant dense<0xFF800000> : vector<32xf32>
    %33 = vector.multi_reduction <maximumf>, %32, %cst_8 [1] : vector<32x16xf32> to vector<32xf32>
    %34 = vector.shape_cast %33 : vector<32xf32> to vector<32x1xf32>
    %35 = vector.broadcast %34 : vector<32x1xf32> to vector<32x16xf32>
    %36 = arith.subf %32, %35 : vector<32x16xf32>
    %37 = math.exp %36 : vector<32x16xf32>
    %cst_9 = arith.constant dense<0.000000e+00> : vector<32xf32>
    %38 = vector.multi_reduction <add>, %37, %cst_9 [1] : vector<32x16xf32> to vector<32xf32>
    %39 = vector.shape_cast %38 : vector<32xf32> to vector<32x1xf32>
    %40 = math.log %39 : vector<32x1xf32>
    %41 = arith.addf %34, %40 : vector<32x1xf32>
    %42 = vector.broadcast %41 : vector<32x1xf32> to vector<32x16xf32>
    %43 = arith.subf %32, %42 : vector<32x16xf32>
    %c0_10 = arith.constant 0 : index
    %c0_11 = arith.constant 0 : index
    %c0_12 = arith.constant 0 : index
    %44 = vector.load %arg2[%c0_10, %c0_11, %c0_12] : memref<1x8x16xf32, #tpu.memory_space<vmem>>, vector<1x8x16xf32>
    %45 = vector.shape_cast %44 : vector<1x8x16xf32> to vector<8x16xf32>
    %46 = tpu.transpose %43, [1, 0] : vector<32x16xf32> -> vector<16x32xf32>
    %cst_13 = arith.constant dense<0.000000e+00> : vector<8x32xf32>
    %47 = tpu.matmul %45, %46, %cst_13 {dimension_numbers = #tpu.dot_dimension_numbers<[1], [0], [0], [1], [0, 0, 1, 1], [], []>} : vector<8x16xf32>, vector<16x32xf32>, vector<8x32xf32> -> vector<8x32xf32>
    %cst_14 = arith.constant dense<0xFF800000> : vector<8xf32>
    %48 = vector.multi_reduction <maximumf>, %47, %cst_14 [1] : vector<8x32xf32> to vector<8xf32>
    %49 = vector.shape_cast %48 : vector<8xf32> to vector<8x1xf32>
    %50 = vector.broadcast %49 : vector<8x1xf32> to vector<8x32xf32>
    %51 = arith.subf %47, %50 : vector<8x32xf32>
    %52 = math.exp %51 : vector<8x32xf32>
    %cst_15 = arith.constant 1.000000e+00 : f32
    %53 = vector.broadcast %cst_15 : f32 to vector<1x32xf32>
    %c7 = arith.constant 7 : index
    %c0_16 = arith.constant 0 : index
    %c0_17 = arith.constant 0 : index
    %54 = vector.load %arg7[%c7, %c0_16, %c0_17] : memref<8x1x32xf32, #tpu.memory_space<vmem>>, vector<1x1x32xf32>
    %55 = vector.shape_cast %54 : vector<1x1x32xf32> to vector<1x32xf32>
    %56 = vector.shape_cast %53 : vector<1x32xf32> to vector<1x1x32xf32>
    tpu.vector_store %arg7[%c7, %c0_16, %c0_17], %56 {strides = array<i32>} : memref<8x1x32xf32, #tpu.memory_space<vmem>>, vector<1x1x32xf32>,
    %57 = vector.extract_strided_slice %52 {offsets = [6, 0], sizes = [1, 32], strides = [1, 1]} : vector<8x32xf32> to vector<1x32xf32>
    %58 = arith.mulf %57, %53 : vector<1x32xf32>
    %cst_18 = arith.constant dense<0.000000e+00> : vector<1x32xf32>
    %59 = tpu.matmul %58, %28, %cst_18 {dimension_numbers = #tpu.dot_dimension_numbers<[1], [0], [0], [1], [0, 0, 1, 1], [], []>} : vector<1x32xf32>, vector<32x32xf32>, vector<1x32xf32> -> vector<1x32xf32>
    %cst_19 = arith.constant dense<0xFF800000> : vector<1xf32>
    %60 = vector.multi_reduction <maximumf>, %59, %cst_19 [1] : vector<1x32xf32> to vector<1xf32>
    %61 = vector.shape_cast %60 : vector<1xf32> to vector<1x1xf32>
    %cst_20 = arith.constant 1.000000e-30 : f32
    %62 = vector.broadcast %cst_20 : f32 to vector<1x1xf32>
    %63 = arith.maximumf %61, %62 : vector<1x1xf32>
    %64 = tpu.reciprocal %63 {approx = true} : vector<1x1xf32> -> vector<1x1xf32>
    %65 = vector.broadcast %64 : vector<1x1xf32> to vector<1x32xf32>
    %66 = arith.mulf %59, %65 : vector<1x32xf32>
    %c6 = arith.constant 6 : index
    %c0_21 = arith.constant 0 : index
    %c0_22 = arith.constant 0 : index
    %67 = vector.load %arg7[%c6, %c0_21, %c0_22] : memref<8x1x32xf32, #tpu.memory_space<vmem>>, vector<1x1x32xf32>
    %68 = vector.shape_cast %67 : vector<1x1x32xf32> to vector<1x32xf32>
    %69 = vector.shape_cast %66 : vector<1x32xf32> to vector<1x1x32xf32>
    tpu.vector_store %arg7[%c6, %c0_21, %c0_22], %69 {strides = array<i32>} : memref<8x1x32xf32, #tpu.memory_space<vmem>>, vector<1x1x32xf32>,
    %70 = vector.extract_strided_slice %52 {offsets = [5, 0], sizes = [1, 32], strides = [1, 1]} : vector<8x32xf32> to vector<1x32xf32>
    %71 = arith.mulf %70, %66 : vector<1x32xf32>
    %cst_23 = arith.constant dense<0.000000e+00> : vector<1x32xf32>
    %72 = tpu.matmul %71, %28, %cst_23 {dimension_numbers = #tpu.dot_dimension_numbers<[1], [0], [0], [1], [0, 0, 1, 1], [], []>} : vector<1x32xf32>, vector<32x32xf32>, vector<1x32xf32> -> vector<1x32xf32>
    %cst_24 = arith.constant dense<0xFF800000> : vector<1xf32>
    %73 = vector.multi_reduction <maximumf>, %72, %cst_24 [1] : vector<1x32xf32> to vector<1xf32>
    %74 = vector.shape_cast %73 : vector<1xf32> to vector<1x1xf32>
    %cst_25 = arith.constant 1.000000e-30 : f32
    %75 = vector.broadcast %cst_25 : f32 to vector<1x1xf32>
    %76 = arith.maximumf %74, %75 : vector<1x1xf32>
    %77 = tpu.reciprocal %76 {approx = true} : vector<1x1xf32> -> vector<1x1xf32>
    %78 = vector.broadcast %77 : vector<1x1xf32> to vector<1x32xf32>
    %79 = arith.mulf %72, %78 : vector<1x32xf32>
    %c5 = arith.constant 5 : index
    %c0_26 = arith.constant 0 : index
    %c0_27 = arith.constant 0 : index
    %80 = vector.load %arg7[%c5, %c0_26, %c0_27] : memref<8x1x32xf32, #tpu.memory_space<vmem>>, vector<1x1x32xf32>
    %81 = vector.shape_cast %80 : vector<1x1x32xf32> to vector<1x32xf32>
    %82 = vector.shape_cast %79 : vector<1x32xf32> to vector<1x1x32xf32>
    tpu.vector_store %arg7[%c5, %c0_26, %c0_27], %82 {strides = array<i32>} : memref<8x1x32xf32, #tpu.memory_space<vmem>>, vector<1x1x32xf32>,
    %83 = vector.extract_strided_slice %52 {offsets = [4, 0], sizes = [1, 32], strides = [1, 1]} : vector<8x32xf32> to vector<1x32xf32>
    %84 = arith.mulf %83, %79 : vector<1x32xf32>
    %cst_28 = arith.constant dense<0.000000e+00> : vector<1x32xf32>
    %85 = tpu.matmul %84, %28, %cst_28 {dimension_numbers = #tpu.dot_dimension_numbers<[1], [0], [0], [1], [0, 0, 1, 1], [], []>} : vector<1x32xf32>, vector<32x32xf32>, vector<1x32xf32> -> vector<1x32xf32>
    %cst_29 = arith.constant dense<0xFF800000> : vector<1xf32>
    %86 = vector.multi_reduction <maximumf>, %85, %cst_29 [1] : vector<1x32xf32> to vector<1xf32>
    %87 = vector.shape_cast %86 : vector<1xf32> to vector<1x1xf32>
    %cst_30 = arith.constant 1.000000e-30 : f32
    %88 = vector.broadcast %cst_30 : f32 to vector<1x1xf32>
    %89 = arith.maximumf %87, %88 : vector<1x1xf32>
    %90 = tpu.reciprocal %89 {approx = true} : vector<1x1xf32> -> vector<1x1xf32>
    %91 = vector.broadcast %90 : vector<1x1xf32> to vector<1x32xf32>
    %92 = arith.mulf %85, %91 : vector<1x32xf32>
    %c4 = arith.constant 4 : index
    %c0_31 = arith.constant 0 : index
    %c0_32 = arith.constant 0 : index
    %93 = vector.load %arg7[%c4, %c0_31, %c0_32] : memref<8x1x32xf32, #tpu.memory_space<vmem>>, vector<1x1x32xf32>
    %94 = vector.shape_cast %93 : vector<1x1x32xf32> to vector<1x32xf32>
    %95 = vector.shape_cast %92 : vector<1x32xf32> to vector<1x1x32xf32>
    tpu.vector_store %arg7[%c4, %c0_31, %c0_32], %95 {strides = array<i32>} : memref<8x1x32xf32, #tpu.memory_space<vmem>>, vector<1x1x32xf32>,
    %96 = vector.extract_strided_slice %52 {offsets = [3, 0], sizes = [1, 32], strides = [1, 1]} : vector<8x32xf32> to vector<1x32xf32>
    %97 = arith.mulf %96, %92 : vector<1x32xf32>
    %cst_33 = arith.constant dense<0.000000e+00> : vector<1x32xf32>
    %98 = tpu.matmul %97, %28, %cst_33 {dimension_numbers = #tpu.dot_dimension_numbers<[1], [0], [0], [1], [0, 0, 1, 1], [], []>} : vector<1x32xf32>, vector<32x32xf32>, vector<1x32xf32> -> vector<1x32xf32>
    %cst_34 = arith.constant dense<0xFF800000> : vector<1xf32>
    %99 = vector.multi_reduction <maximumf>, %98, %cst_34 [1] : vector<1x32xf32> to vector<1xf32>
    %100 = vector.shape_cast %99 : vector<1xf32> to vector<1x1xf32>
    %cst_35 = arith.constant 1.000000e-30 : f32
    %101 = vector.broadcast %cst_35 : f32 to vector<1x1xf32>
    %102 = arith.maximumf %100, %101 : vector<1x1xf32>
    %103 = tpu.reciprocal %102 {approx = true} : vector<1x1xf32> -> vector<1x1xf32>
    %104 = vector.broadcast %103 : vector<1x1xf32> to vector<1x32xf32>
    %105 = arith.mulf %98, %104 : vector<1x32xf32>
    %c3 = arith.constant 3 : index
    %c0_36 = arith.constant 0 : index
    %c0_37 = arith.constant 0 : index
    %106 = vector.load %arg7[%c3, %c0_36, %c0_37] : memref<8x1x32xf32, #tpu.memory_space<vmem>>, vector<1x1x32xf32>
    %107 = vector.shape_cast %106 : vector<1x1x32xf32> to vector<1x32xf32>
    %108 = vector.shape_cast %105 : vector<1x32xf32> to vector<1x1x32xf32>
    tpu.vector_store %arg7[%c3, %c0_36, %c0_37], %108 {strides = array<i32>} : memref<8x1x32xf32, #tpu.memory_space<vmem>>, vector<1x1x32xf32>,
    %109 = vector.extract_strided_slice %52 {offsets = [2, 0], sizes = [1, 32], strides = [1, 1]} : vector<8x32xf32> to vector<1x32xf32>
    %110 = arith.mulf %109, %105 : vector<1x32xf32>
    %cst_38 = arith.constant dense<0.000000e+00> : vector<1x32xf32>
    %111 = tpu.matmul %110, %28, %cst_38 {dimension_numbers = #tpu.dot_dimension_numbers<[1], [0], [0], [1], [0, 0, 1, 1], [], []>} : vector<1x32xf32>, vector<32x32xf32>, vector<1x32xf32> -> vector<1x32xf32>
    %cst_39 = arith.constant dense<0xFF800000> : vector<1xf32>
    %112 = vector.multi_reduction <maximumf>, %111, %cst_39 [1] : vector<1x32xf32> to vector<1xf32>
    %113 = vector.shape_cast %112 : vector<1xf32> to vector<1x1xf32>
    %cst_40 = arith.constant 1.000000e-30 : f32
    %114 = vector.broadcast %cst_40 : f32 to vector<1x1xf32>
    %115 = arith.maximumf %113, %114 : vector<1x1xf32>
    %116 = tpu.reciprocal %115 {approx = true} : vector<1x1xf32> -> vector<1x1xf32>
    %117 = vector.broadcast %116 : vector<1x1xf32> to vector<1x32xf32>
    %118 = arith.mulf %111, %117 : vector<1x32xf32>
    %c2 = arith.constant 2 : index
    %c0_41 = arith.constant 0 : index
    %c0_42 = arith.constant 0 : index
    %119 = vector.load %arg7[%c2, %c0_41, %c0_42] : memref<8x1x32xf32, #tpu.memory_space<vmem>>, vector<1x1x32xf32>
    %120 = vector.shape_cast %119 : vector<1x1x32xf32> to vector<1x32xf32>
    %121 = vector.shape_cast %118 : vector<1x32xf32> to vector<1x1x32xf32>
    tpu.vector_store %arg7[%c2, %c0_41, %c0_42], %121 {strides = array<i32>} : memref<8x1x32xf32, #tpu.memory_space<vmem>>, vector<1x1x32xf32>,
    %122 = vector.extract_strided_slice %52 {offsets = [1, 0], sizes = [1, 32], strides = [1, 1]} : vector<8x32xf32> to vector<1x32xf32>
    %123 = arith.mulf %122, %118 : vector<1x32xf32>
    %cst_43 = arith.constant dense<0.000000e+00> : vector<1x32xf32>
    %124 = tpu.matmul %123, %28, %cst_43 {dimension_numbers = #tpu.dot_dimension_numbers<[1], [0], [0], [1], [0, 0, 1, 1], [], []>} : vector<1x32xf32>, vector<32x32xf32>, vector<1x32xf32> -> vector<1x32xf32>
    %cst_44 = arith.constant dense<0xFF800000> : vector<1xf32>
    %125 = vector.multi_reduction <maximumf>, %124, %cst_44 [1] : vector<1x32xf32> to vector<1xf32>
    %126 = vector.shape_cast %125 : vector<1xf32> to vector<1x1xf32>
    %cst_45 = arith.constant 1.000000e-30 : f32
    %127 = vector.broadcast %cst_45 : f32 to vector<1x1xf32>
    %128 = arith.maximumf %126, %127 : vector<1x1xf32>
    %129 = tpu.reciprocal %128 {approx = true} : vector<1x1xf32> -> vector<1x1xf32>
    %130 = vector.broadcast %129 : vector<1x1xf32> to vector<1x32xf32>
    %131 = arith.mulf %124, %130 : vector<1x32xf32>
    %c1 = arith.constant 1 : index
    %c0_46 = arith.constant 0 : index
    %c0_47 = arith.constant 0 : index
    %132 = vector.load %arg7[%c1, %c0_46, %c0_47] : memref<8x1x32xf32, #tpu.memory_space<vmem>>, vector<1x1x32xf32>
    %133 = vector.shape_cast %132 : vector<1x1x32xf32> to vector<1x32xf32>
    %134 = vector.shape_cast %131 : vector<1x32xf32> to vector<1x1x32xf32>
    tpu.vector_store %arg7[%c1, %c0_46, %c0_47], %134 {strides = array<i32>} : memref<8x1x32xf32, #tpu.memory_space<vmem>>, vector<1x1x32xf32>,
    %135 = vector.extract_strided_slice %52 {offsets = [0, 0], sizes = [1, 32], strides = [1, 1]} : vector<8x32xf32> to vector<1x32xf32>
    %136 = arith.mulf %135, %131 : vector<1x32xf32>
    %cst_48 = arith.constant dense<0.000000e+00> : vector<1x32xf32>
    %137 = tpu.matmul %136, %28, %cst_48 {dimension_numbers = #tpu.dot_dimension_numbers<[1], [0], [0], [1], [0, 0, 1, 1], [], []>} : vector<1x32xf32>, vector<32x32xf32>, vector<1x32xf32> -> vector<1x32xf32>
    %cst_49 = arith.constant dense<0xFF800000> : vector<1xf32>
    %138 = vector.multi_reduction <maximumf>, %137, %cst_49 [1] : vector<1x32xf32> to vector<1xf32>
    %139 = vector.shape_cast %138 : vector<1xf32> to vector<1x1xf32>
    %cst_50 = arith.constant 1.000000e-30 : f32
    %140 = vector.broadcast %cst_50 : f32 to vector<1x1xf32>
    %141 = arith.maximumf %139, %140 : vector<1x1xf32>
    %142 = tpu.reciprocal %141 {approx = true} : vector<1x1xf32> -> vector<1x1xf32>
    %143 = vector.broadcast %142 : vector<1x1xf32> to vector<1x32xf32>
    %144 = arith.mulf %137, %143 : vector<1x32xf32>
    %c0_51 = arith.constant 0 : index
    %c0_52 = arith.constant 0 : index
    %c0_53 = arith.constant 0 : index
    %145 = vector.load %arg7[%c0_51, %c0_52, %c0_53] : memref<8x1x32xf32, #tpu.memory_space<vmem>>, vector<1x1x32xf32>
    %146 = vector.shape_cast %145 : vector<1x1x32xf32> to vector<1x32xf32>
    %147 = vector.shape_cast %144 : vector<1x32xf32> to vector<1x1x32xf32>
    tpu.vector_store %arg7[%c0_51, %c0_52, %c0_53], %147 {strides = array<i32>} : memref<8x1x32xf32, #tpu.memory_space<vmem>>, vector<1x1x32xf32>,
    %cst_54 = arith.constant 0.000000e+00 : f32
    %148 = vector.broadcast %cst_54 : f32 to vector<1x1xf32>
    %149 = vector.extract_strided_slice %52 {offsets = [0, 0], sizes = [1, 32], strides = [1, 1]} : vector<8x32xf32> to vector<1x32xf32>
    %150 = vector.extract_strided_slice %47 {offsets = [0, 0], sizes = [1, 32], strides = [1, 1]} : vector<8x32xf32> to vector<1x32xf32>
    %c8_i32 = arith.constant 8 : i32
    %151 = arith.subi %c8_i32, %1 : i32
    %c7_i32 = arith.constant 7 : i32
    %152 = arith.minsi %151, %c7_i32 : i32
    %c0_i32 = arith.constant 0 : i32
    %153 = arith.maxsi %152, %c0_i32 : i32
    %154 = arith.index_cast %153 : i32 to index
    %c0_55 = arith.constant 0 : index
    %c0_56 = arith.constant 0 : index
    %155 = vector.load %arg7[%154, %c0_55, %c0_56] : memref<8x1x32xf32, #tpu.memory_space<vmem>>, vector<1x1x32xf32>
    %156 = vector.shape_cast %155 : vector<1x1x32xf32> to vector<1x32xf32>
    %c0_i32_57 = arith.constant 0 : i32
    %157 = arith.cmpi sgt, %1, %c0_i32_57 : i32
    %158 = arith.mulf %14, %149 : vector<1x32xf32>
    %cst_58 = arith.constant dense<0.000000e+00> : vector<1xf32>
    %159 = vector.multi_reduction <add>, %158, %cst_58 [1] : vector<1x32xf32> to vector<1xf32>
    %160 = vector.shape_cast %159 : vector<1xf32> to vector<1x1xf32>
    %cst_59 = arith.constant 1.000000e-30 : f32
    %161 = vector.broadcast %cst_59 : f32 to vector<1x1xf32>
    %162 = arith.maximumf %160, %161 : vector<1x1xf32>
    %163 = tpu.reciprocal %162 {approx = true} : vector<1x1xf32> -> vector<1x1xf32>
    %164 = vector.broadcast %163 : vector<1x1xf32> to vector<1x32xf32>
    %165 = arith.mulf %158, %164 : vector<1x32xf32>
    %166 = arith.mulf %165, %156 : vector<1x32xf32>
    %cst_60 = arith.constant dense<0.000000e+00> : vector<1xf32>
    %167 = vector.multi_reduction <add>, %166, %cst_60 [1] : vector<1x32xf32> to vector<1xf32>
    %168 = vector.shape_cast %167 : vector<1xf32> to vector<1x1xf32>
    %cst_61 = arith.constant 1.000000e-30 : f32
    %169 = vector.broadcast %cst_61 : f32 to vector<1x1xf32>
    %170 = arith.maximumf %168, %169 : vector<1x1xf32>
    %cst_62 = arith.constant 1.000000e+00 : f32
    %171 = vector.broadcast %cst_62 : f32 to vector<1x1xf32>
    %172 = arith.divf %171, %170 : vector<1x1xf32>
    %173 = arith.mulf %166, %150 : vector<1x32xf32>
    %cst_63 = arith.constant dense<0.000000e+00> : vector<1xf32>
    %174 = vector.multi_reduction <add>, %173, %cst_63 [1] : vector<1x32xf32> to vector<1xf32>
    %175 = vector.shape_cast %174 : vector<1xf32> to vector<1x1xf32>
    %176 = arith.mulf %175, %172 : vector<1x1xf32>
    %cst_64 = arith.constant 0.000000e+00 : f32
    %177 = vector.broadcast %cst_64 : f32 to vector<1x1xf32>
    %178 = arith.select %157, %176, %177 : vector<1x1xf32>
    %179 = arith.addf %148, %178 : vector<1x1xf32>
    %180 = arith.mulf %166, %13 : vector<1x32xf32>
    %cst_65 = arith.constant dense<0.000000e+00> : vector<1xf32>
    %181 = vector.multi_reduction <add>, %180, %cst_65 [1] : vector<1x32xf32> to vector<1xf32>
    %182 = vector.shape_cast %181 : vector<1xf32> to vector<1x1xf32>
    %183 = arith.mulf %182, %172 : vector<1x1xf32>
    %184 = arith.addf %179, %183 : vector<1x1xf32>
    %185 = vector.extract_strided_slice %52 {offsets = [1, 0], sizes = [1, 32], strides = [1, 1]} : vector<8x32xf32> to vector<1x32xf32>
    %186 = vector.extract_strided_slice %47 {offsets = [1, 0], sizes = [1, 32], strides = [1, 1]} : vector<8x32xf32> to vector<1x32xf32>
    %c9_i32 = arith.constant 9 : i32
    %187 = arith.subi %c9_i32, %1 : i32
    %c7_i32_66 = arith.constant 7 : i32
    %188 = arith.minsi %187, %c7_i32_66 : i32
    %c0_i32_67 = arith.constant 0 : i32
    %189 = arith.maxsi %188, %c0_i32_67 : i32
    %190 = arith.index_cast %189 : i32 to index
    %c0_68 = arith.constant 0 : index
    %c0_69 = arith.constant 0 : index
    %191 = vector.load %arg7[%190, %c0_68, %c0_69] : memref<8x1x32xf32, #tpu.memory_space<vmem>>, vector<1x1x32xf32>
    %192 = vector.shape_cast %191 : vector<1x1x32xf32> to vector<1x32xf32>
    %c1_i32 = arith.constant 1 : i32
    %193 = arith.cmpi sgt, %1, %c1_i32 : i32
    %194 = arith.mulf %185, %192 : vector<1x32xf32>
    %195 = tpu.concatenate %165, %194 in 0 : vector<1x32xf32>, vector<1x32xf32> -> vector<2x32xf32>
    %cst_70 = arith.constant dense<0.000000e+00> : vector<2x96xf32>
    %196 = tpu.matmul %195, %31, %cst_70 {dimension_numbers = #tpu.dot_dimension_numbers<[1], [0], [0], [1], [0, 0, 1, 1], [], []>} : vector<2x32xf32>, vector<32x96xf32>, vector<2x96xf32> -> vector<2x96xf32>
    %197 = vector.extract_strided_slice %196 {offsets = [0, 0], sizes = [1, 32], strides = [1, 1]} : vector<2x96xf32> to vector<1x32xf32>
    %198 = arith.mulf %185, %197 : vector<1x32xf32>
    %199 = vector.extract_strided_slice %196 {offsets = [1, 32], sizes = [1, 32], strides = [1, 1]} : vector<2x96xf32> to vector<1x32xf32>
    %200 = arith.mulf %165, %199 : vector<1x32xf32>
    %cst_71 = arith.constant dense<0.000000e+00> : vector<1xf32>
    %201 = vector.multi_reduction <add>, %200, %cst_71 [1] : vector<1x32xf32> to vector<1xf32>
    %202 = vector.shape_cast %201 : vector<1xf32> to vector<1x1xf32>
    %203 = vector.extract_strided_slice %196 {offsets = [1, 64], sizes = [1, 32], strides = [1, 1]} : vector<2x96xf32> to vector<1x32xf32>
    %204 = arith.mulf %165, %203 : vector<1x32xf32>
    %cst_72 = arith.constant dense<0.000000e+00> : vector<1xf32>
    %205 = vector.multi_reduction <add>, %204, %cst_72 [1] : vector<1x32xf32> to vector<1xf32>
    %206 = vector.shape_cast %205 : vector<1xf32> to vector<1x1xf32>
    %cst_73 = arith.constant 1.000000e-30 : f32
    %207 = vector.broadcast %cst_73 : f32 to vector<1x1xf32>
    %208 = arith.maximumf %206, %207 : vector<1x1xf32>
    %209 = arith.divf %202, %208 : vector<1x1xf32>
    %cst_74 = arith.constant dense<0.000000e+00> : vector<1xf32>
    %210 = vector.multi_reduction <add>, %198, %cst_74 [1] : vector<1x32xf32> to vector<1xf32>
    %211 = vector.shape_cast %210 : vector<1xf32> to vector<1x1xf32>
    %cst_75 = arith.constant 1.000000e-30 : f32
    %212 = vector.broadcast %cst_75 : f32 to vector<1x1xf32>
    %213 = arith.maximumf %211, %212 : vector<1x1xf32>
    %214 = tpu.reciprocal %213 {approx = true} : vector<1x1xf32> -> vector<1x1xf32>
    %215 = vector.broadcast %214 : vector<1x1xf32> to vector<1x32xf32>
    %216 = arith.mulf %198, %215 : vector<1x32xf32>
    %217 = arith.mulf %216, %192 : vector<1x32xf32>
    %cst_76 = arith.constant dense<0.000000e+00> : vector<1xf32>
    %218 = vector.multi_reduction <add>, %217, %cst_76 [1] : vector<1x32xf32> to vector<1xf32>
    %219 = vector.shape_cast %218 : vector<1xf32> to vector<1x1xf32>
    %cst_77 = arith.constant 1.000000e-30 : f32
    %220 = vector.broadcast %cst_77 : f32 to vector<1x1xf32>
    %221 = arith.maximumf %219, %220 : vector<1x1xf32>
    %cst_78 = arith.constant 1.000000e+00 : f32
    %222 = vector.broadcast %cst_78 : f32 to vector<1x1xf32>
    %223 = arith.divf %222, %221 : vector<1x1xf32>
    %224 = arith.mulf %217, %186 : vector<1x32xf32>
    %cst_79 = arith.constant dense<0.000000e+00> : vector<1xf32>
    %225 = vector.multi_reduction <add>, %224, %cst_79 [1] : vector<1x32xf32> to vector<1xf32>
    %226 = vector.shape_cast %225 : vector<1xf32> to vector<1x1xf32>
    %227 = arith.mulf %226, %223 : vector<1x1xf32>
    %cst_80 = arith.constant 0.000000e+00 : f32
    %228 = vector.broadcast %cst_80 : f32 to vector<1x1xf32>
    %229 = arith.select %193, %227, %228 : vector<1x1xf32>
    %230 = arith.addf %184, %229 : vector<1x1xf32>
    %cst_81 = arith.constant 0.000000e+00 : f32
    %231 = vector.broadcast %cst_81 : f32 to vector<1x1xf32>
    %232 = arith.select %193, %209, %231 : vector<1x1xf32>
    %233 = arith.addf %230, %232 : vector<1x1xf32>
    %234 = vector.extract_strided_slice %52 {offsets = [2, 0], sizes = [1, 32], strides = [1, 1]} : vector<8x32xf32> to vector<1x32xf32>
    %235 = vector.extract_strided_slice %47 {offsets = [2, 0], sizes = [1, 32], strides = [1, 1]} : vector<8x32xf32> to vector<1x32xf32>
    %c10_i32 = arith.constant 10 : i32
    %236 = arith.subi %c10_i32, %1 : i32
    %c7_i32_82 = arith.constant 7 : i32
    %237 = arith.minsi %236, %c7_i32_82 : i32
    %c0_i32_83 = arith.constant 0 : i32
    %238 = arith.maxsi %237, %c0_i32_83 : i32
    %239 = arith.index_cast %238 : i32 to index
    %c0_84 = arith.constant 0 : index
    %c0_85 = arith.constant 0 : index
    %240 = vector.load %arg7[%239, %c0_84, %c0_85] : memref<8x1x32xf32, #tpu.memory_space<vmem>>, vector<1x1x32xf32>
    %241 = vector.shape_cast %240 : vector<1x1x32xf32> to vector<1x32xf32>
    %c2_i32 = arith.constant 2 : i32
    %242 = arith.cmpi sgt, %1, %c2_i32 : i32
    %243 = arith.mulf %234, %241 : vector<1x32xf32>
    %244 = tpu.concatenate %216, %243 in 0 : vector<1x32xf32>, vector<1x32xf32> -> vector<2x32xf32>
    %cst_86 = arith.constant dense<0.000000e+00> : vector<2x96xf32>
    %245 = tpu.matmul %244, %31, %cst_86 {dimension_numbers = #tpu.dot_dimension_numbers<[1], [0], [0], [1], [0, 0, 1, 1], [], []>} : vector<2x32xf32>, vector<32x96xf32>, vector<2x96xf32> -> vector<2x96xf32>
    %246 = vector.extract_strided_slice %245 {offsets = [0, 0], sizes = [1, 32], strides = [1, 1]} : vector<2x96xf32> to vector<1x32xf32>
    %247 = arith.mulf %234, %246 : vector<1x32xf32>
    %248 = vector.extract_strided_slice %245 {offsets = [1, 32], sizes = [1, 32], strides = [1, 1]} : vector<2x96xf32> to vector<1x32xf32>
    %249 = arith.mulf %216, %248 : vector<1x32xf32>
    %cst_87 = arith.constant dense<0.000000e+00> : vector<1xf32>
    %250 = vector.multi_reduction <add>, %249, %cst_87 [1] : vector<1x32xf32> to vector<1xf32>
    %251 = vector.shape_cast %250 : vector<1xf32> to vector<1x1xf32>
    %252 = vector.extract_strided_slice %245 {offsets = [1, 64], sizes = [1, 32], strides = [1, 1]} : vector<2x96xf32> to vector<1x32xf32>
    %253 = arith.mulf %216, %252 : vector<1x32xf32>
    %cst_88 = arith.constant dense<0.000000e+00> : vector<1xf32>
    %254 = vector.multi_reduction <add>, %253, %cst_88 [1] : vector<1x32xf32> to vector<1xf32>
    %255 = vector.shape_cast %254 : vector<1xf32> to vector<1x1xf32>
    %cst_89 = arith.constant 1.000000e-30 : f32
    %256 = vector.broadcast %cst_89 : f32 to vector<1x1xf32>
    %257 = arith.maximumf %255, %256 : vector<1x1xf32>
    %258 = arith.divf %251, %257 : vector<1x1xf32>
    %cst_90 = arith.constant dense<0.000000e+00> : vector<1xf32>
    %259 = vector.multi_reduction <add>, %247, %cst_90 [1] : vector<1x32xf32> to vector<1xf32>
    %260 = vector.shape_cast %259 : vector<1xf32> to vector<1x1xf32>
    %cst_91 = arith.constant 1.000000e-30 : f32
    %261 = vector.broadcast %cst_91 : f32 to vector<1x1xf32>
    %262 = arith.maximumf %260, %261 : vector<1x1xf32>
    %263 = tpu.reciprocal %262 {approx = true} : vector<1x1xf32> -> vector<1x1xf32>
    %264 = vector.broadcast %263 : vector<1x1xf32> to vector<1x32xf32>
    %265 = arith.mulf %247, %264 : vector<1x32xf32>
    %266 = arith.mulf %265, %241 : vector<1x32xf32>
    %cst_92 = arith.constant dense<0.000000e+00> : vector<1xf32>
    %267 = vector.multi_reduction <add>, %266, %cst_92 [1] : vector<1x32xf32> to vector<1xf32>
    %268 = vector.shape_cast %267 : vector<1xf32> to vector<1x1xf32>
    %cst_93 = arith.constant 1.000000e-30 : f32
    %269 = vector.broadcast %cst_93 : f32 to vector<1x1xf32>
    %270 = arith.maximumf %268, %269 : vector<1x1xf32>
    %cst_94 = arith.constant 1.000000e+00 : f32
    %271 = vector.broadcast %cst_94 : f32 to vector<1x1xf32>
    %272 = arith.divf %271, %270 : vector<1x1xf32>
    %273 = arith.mulf %266, %235 : vector<1x32xf32>
    %cst_95 = arith.constant dense<0.000000e+00> : vector<1xf32>
    %274 = vector.multi_reduction <add>, %273, %cst_95 [1] : vector<1x32xf32> to vector<1xf32>
    %275 = vector.shape_cast %274 : vector<1xf32> to vector<1x1xf32>
    %276 = arith.mulf %275, %272 : vector<1x1xf32>
    %cst_96 = arith.constant 0.000000e+00 : f32
    %277 = vector.broadcast %cst_96 : f32 to vector<1x1xf32>
    %278 = arith.select %242, %276, %277 : vector<1x1xf32>
    %279 = arith.addf %233, %278 : vector<1x1xf32>
    %cst_97 = arith.constant 0.000000e+00 : f32
    %280 = vector.broadcast %cst_97 : f32 to vector<1x1xf32>
    %281 = arith.select %242, %258, %280 : vector<1x1xf32>
    %282 = arith.addf %279, %281 : vector<1x1xf32>
    %283 = vector.extract_strided_slice %52 {offsets = [3, 0], sizes = [1, 32], strides = [1, 1]} : vector<8x32xf32> to vector<1x32xf32>
    %284 = vector.extract_strided_slice %47 {offsets = [3, 0], sizes = [1, 32], strides = [1, 1]} : vector<8x32xf32> to vector<1x32xf32>
    %c11_i32 = arith.constant 11 : i32
    %285 = arith.subi %c11_i32, %1 : i32
    %c7_i32_98 = arith.constant 7 : i32
    %286 = arith.minsi %285, %c7_i32_98 : i32
    %c0_i32_99 = arith.constant 0 : i32
    %287 = arith.maxsi %286, %c0_i32_99 : i32
    %288 = arith.index_cast %287 : i32 to index
    %c0_100 = arith.constant 0 : index
    %c0_101 = arith.constant 0 : index
    %289 = vector.load %arg7[%288, %c0_100, %c0_101] : memref<8x1x32xf32, #tpu.memory_space<vmem>>, vector<1x1x32xf32>
    %290 = vector.shape_cast %289 : vector<1x1x32xf32> to vector<1x32xf32>
    %c3_i32 = arith.constant 3 : i32
    %291 = arith.cmpi sgt, %1, %c3_i32 : i32
    %292 = arith.mulf %283, %290 : vector<1x32xf32>
    %293 = tpu.concatenate %265, %292 in 0 : vector<1x32xf32>, vector<1x32xf32> -> vector<2x32xf32>
    %cst_102 = arith.constant dense<0.000000e+00> : vector<2x96xf32>
    %294 = tpu.matmul %293, %31, %cst_102 {dimension_numbers = #tpu.dot_dimension_numbers<[1], [0], [0], [1], [0, 0, 1, 1], [], []>} : vector<2x32xf32>, vector<32x96xf32>, vector<2x96xf32> -> vector<2x96xf32>
    %295 = vector.extract_strided_slice %294 {offsets = [0, 0], sizes = [1, 32], strides = [1, 1]} : vector<2x96xf32> to vector<1x32xf32>
    %296 = arith.mulf %283, %295 : vector<1x32xf32>
    %297 = vector.extract_strided_slice %294 {offsets = [1, 32], sizes = [1, 32], strides = [1, 1]} : vector<2x96xf32> to vector<1x32xf32>
    %298 = arith.mulf %265, %297 : vector<1x32xf32>
    %cst_103 = arith.constant dense<0.000000e+00> : vector<1xf32>
    %299 = vector.multi_reduction <add>, %298, %cst_103 [1] : vector<1x32xf32> to vector<1xf32>
    %300 = vector.shape_cast %299 : vector<1xf32> to vector<1x1xf32>
    %301 = vector.extract_strided_slice %294 {offsets = [1, 64], sizes = [1, 32], strides = [1, 1]} : vector<2x96xf32> to vector<1x32xf32>
    %302 = arith.mulf %265, %301 : vector<1x32xf32>
    %cst_104 = arith.constant dense<0.000000e+00> : vector<1xf32>
    %303 = vector.multi_reduction <add>, %302, %cst_104 [1] : vector<1x32xf32> to vector<1xf32>
    %304 = vector.shape_cast %303 : vector<1xf32> to vector<1x1xf32>
    %cst_105 = arith.constant 1.000000e-30 : f32
    %305 = vector.broadcast %cst_105 : f32 to vector<1x1xf32>
    %306 = arith.maximumf %304, %305 : vector<1x1xf32>
    %307 = arith.divf %300, %306 : vector<1x1xf32>
    %cst_106 = arith.constant dense<0.000000e+00> : vector<1xf32>
    %308 = vector.multi_reduction <add>, %296, %cst_106 [1] : vector<1x32xf32> to vector<1xf32>
    %309 = vector.shape_cast %308 : vector<1xf32> to vector<1x1xf32>
    %cst_107 = arith.constant 1.000000e-30 : f32
    %310 = vector.broadcast %cst_107 : f32 to vector<1x1xf32>
    %311 = arith.maximumf %309, %310 : vector<1x1xf32>
    %312 = tpu.reciprocal %311 {approx = true} : vector<1x1xf32> -> vector<1x1xf32>
    %313 = vector.broadcast %312 : vector<1x1xf32> to vector<1x32xf32>
    %314 = arith.mulf %296, %313 : vector<1x32xf32>
    %315 = arith.mulf %314, %290 : vector<1x32xf32>
    %cst_108 = arith.constant dense<0.000000e+00> : vector<1xf32>
    %316 = vector.multi_reduction <add>, %315, %cst_108 [1] : vector<1x32xf32> to vector<1xf32>
    %317 = vector.shape_cast %316 : vector<1xf32> to vector<1x1xf32>
    %cst_109 = arith.constant 1.000000e-30 : f32
    %318 = vector.broadcast %cst_109 : f32 to vector<1x1xf32>
    %319 = arith.maximumf %317, %318 : vector<1x1xf32>
    %cst_110 = arith.constant 1.000000e+00 : f32
    %320 = vector.broadcast %cst_110 : f32 to vector<1x1xf32>
    %321 = arith.divf %320, %319 : vector<1x1xf32>
    %322 = arith.mulf %315, %284 : vector<1x32xf32>
    %cst_111 = arith.constant dense<0.000000e+00> : vector<1xf32>
    %323 = vector.multi_reduction <add>, %322, %cst_111 [1] : vector<1x32xf32> to vector<1xf32>
    %324 = vector.shape_cast %323 : vector<1xf32> to vector<1x1xf32>
    %325 = arith.mulf %324, %321 : vector<1x1xf32>
    %cst_112 = arith.constant 0.000000e+00 : f32
    %326 = vector.broadcast %cst_112 : f32 to vector<1x1xf32>
    %327 = arith.select %291, %325, %326 : vector<1x1xf32>
    %328 = arith.addf %282, %327 : vector<1x1xf32>
    %cst_113 = arith.constant 0.000000e+00 : f32
    %329 = vector.broadcast %cst_113 : f32 to vector<1x1xf32>
    %330 = arith.select %291, %307, %329 : vector<1x1xf32>
    %331 = arith.addf %328, %330 : vector<1x1xf32>
    %332 = vector.extract_strided_slice %52 {offsets = [4, 0], sizes = [1, 32], strides = [1, 1]} : vector<8x32xf32> to vector<1x32xf32>
    %333 = vector.extract_strided_slice %47 {offsets = [4, 0], sizes = [1, 32], strides = [1, 1]} : vector<8x32xf32> to vector<1x32xf32>
    %c12_i32 = arith.constant 12 : i32
    %334 = arith.subi %c12_i32, %1 : i32
    %c7_i32_114 = arith.constant 7 : i32
    %335 = arith.minsi %334, %c7_i32_114 : i32
    %c0_i32_115 = arith.constant 0 : i32
    %336 = arith.maxsi %335, %c0_i32_115 : i32
    %337 = arith.index_cast %336 : i32 to index
    %c0_116 = arith.constant 0 : index
    %c0_117 = arith.constant 0 : index
    %338 = vector.load %arg7[%337, %c0_116, %c0_117] : memref<8x1x32xf32, #tpu.memory_space<vmem>>, vector<1x1x32xf32>
    %339 = vector.shape_cast %338 : vector<1x1x32xf32> to vector<1x32xf32>
    %c4_i32 = arith.constant 4 : i32
    %340 = arith.cmpi sgt, %1, %c4_i32 : i32
    %341 = arith.mulf %332, %339 : vector<1x32xf32>
    %342 = tpu.concatenate %314, %341 in 0 : vector<1x32xf32>, vector<1x32xf32> -> vector<2x32xf32>
    %cst_118 = arith.constant dense<0.000000e+00> : vector<2x96xf32>
    %343 = tpu.matmul %342, %31, %cst_118 {dimension_numbers = #tpu.dot_dimension_numbers<[1], [0], [0], [1], [0, 0, 1, 1], [], []>} : vector<2x32xf32>, vector<32x96xf32>, vector<2x96xf32> -> vector<2x96xf32>
    %344 = vector.extract_strided_slice %343 {offsets = [0, 0], sizes = [1, 32], strides = [1, 1]} : vector<2x96xf32> to vector<1x32xf32>
    %345 = arith.mulf %332, %344 : vector<1x32xf32>
    %346 = vector.extract_strided_slice %343 {offsets = [1, 32], sizes = [1, 32], strides = [1, 1]} : vector<2x96xf32> to vector<1x32xf32>
    %347 = arith.mulf %314, %346 : vector<1x32xf32>
    %cst_119 = arith.constant dense<0.000000e+00> : vector<1xf32>
    %348 = vector.multi_reduction <add>, %347, %cst_119 [1] : vector<1x32xf32> to vector<1xf32>
    %349 = vector.shape_cast %348 : vector<1xf32> to vector<1x1xf32>
    %350 = vector.extract_strided_slice %343 {offsets = [1, 64], sizes = [1, 32], strides = [1, 1]} : vector<2x96xf32> to vector<1x32xf32>
    %351 = arith.mulf %314, %350 : vector<1x32xf32>
    %cst_120 = arith.constant dense<0.000000e+00> : vector<1xf32>
    %352 = vector.multi_reduction <add>, %351, %cst_120 [1] : vector<1x32xf32> to vector<1xf32>
    %353 = vector.shape_cast %352 : vector<1xf32> to vector<1x1xf32>
    %cst_121 = arith.constant 1.000000e-30 : f32
    %354 = vector.broadcast %cst_121 : f32 to vector<1x1xf32>
    %355 = arith.maximumf %353, %354 : vector<1x1xf32>
    %356 = arith.divf %349, %355 : vector<1x1xf32>
    %cst_122 = arith.constant dense<0.000000e+00> : vector<1xf32>
    %357 = vector.multi_reduction <add>, %345, %cst_122 [1] : vector<1x32xf32> to vector<1xf32>
    %358 = vector.shape_cast %357 : vector<1xf32> to vector<1x1xf32>
    %cst_123 = arith.constant 1.000000e-30 : f32
    %359 = vector.broadcast %cst_123 : f32 to vector<1x1xf32>
    %360 = arith.maximumf %358, %359 : vector<1x1xf32>
    %361 = tpu.reciprocal %360 {approx = true} : vector<1x1xf32> -> vector<1x1xf32>
    %362 = vector.broadcast %361 : vector<1x1xf32> to vector<1x32xf32>
    %363 = arith.mulf %345, %362 : vector<1x32xf32>
    %364 = arith.mulf %363, %339 : vector<1x32xf32>
    %cst_124 = arith.constant dense<0.000000e+00> : vector<1xf32>
    %365 = vector.multi_reduction <add>, %364, %cst_124 [1] : vector<1x32xf32> to vector<1xf32>
    %366 = vector.shape_cast %365 : vector<1xf32> to vector<1x1xf32>
    %cst_125 = arith.constant 1.000000e-30 : f32
    %367 = vector.broadcast %cst_125 : f32 to vector<1x1xf32>
    %368 = arith.maximumf %366, %367 : vector<1x1xf32>
    %cst_126 = arith.constant 1.000000e+00 : f32
    %369 = vector.broadcast %cst_126 : f32 to vector<1x1xf32>
    %370 = arith.divf %369, %368 : vector<1x1xf32>
    %371 = arith.mulf %364, %333 : vector<1x32xf32>
    %cst_127 = arith.constant dense<0.000000e+00> : vector<1xf32>
    %372 = vector.multi_reduction <add>, %371, %cst_127 [1] : vector<1x32xf32> to vector<1xf32>
    %373 = vector.shape_cast %372 : vector<1xf32> to vector<1x1xf32>
    %374 = arith.mulf %373, %370 : vector<1x1xf32>
    %cst_128 = arith.constant 0.000000e+00 : f32
    %375 = vector.broadcast %cst_128 : f32 to vector<1x1xf32>
    %376 = arith.select %340, %374, %375 : vector<1x1xf32>
    %377 = arith.addf %331, %376 : vector<1x1xf32>
    %cst_129 = arith.constant 0.000000e+00 : f32
    %378 = vector.broadcast %cst_129 : f32 to vector<1x1xf32>
    %379 = arith.select %340, %356, %378 : vector<1x1xf32>
    %380 = arith.addf %377, %379 : vector<1x1xf32>
    %381 = vector.extract_strided_slice %52 {offsets = [5, 0], sizes = [1, 32], strides = [1, 1]} : vector<8x32xf32> to vector<1x32xf32>
    %382 = vector.extract_strided_slice %47 {offsets = [5, 0], sizes = [1, 32], strides = [1, 1]} : vector<8x32xf32> to vector<1x32xf32>
    %c13_i32 = arith.constant 13 : i32
    %383 = arith.subi %c13_i32, %1 : i32
    %c7_i32_130 = arith.constant 7 : i32
    %384 = arith.minsi %383, %c7_i32_130 : i32
    %c0_i32_131 = arith.constant 0 : i32
    %385 = arith.maxsi %384, %c0_i32_131 : i32
    %386 = arith.index_cast %385 : i32 to index
    %c0_132 = arith.constant 0 : index
    %c0_133 = arith.constant 0 : index
    %387 = vector.load %arg7[%386, %c0_132, %c0_133] : memref<8x1x32xf32, #tpu.memory_space<vmem>>, vector<1x1x32xf32>
    %388 = vector.shape_cast %387 : vector<1x1x32xf32> to vector<1x32xf32>
    %c5_i32 = arith.constant 5 : i32
    %389 = arith.cmpi sgt, %1, %c5_i32 : i32
    %390 = arith.mulf %381, %388 : vector<1x32xf32>
    %391 = tpu.concatenate %363, %390 in 0 : vector<1x32xf32>, vector<1x32xf32> -> vector<2x32xf32>
    %cst_134 = arith.constant dense<0.000000e+00> : vector<2x96xf32>
    %392 = tpu.matmul %391, %31, %cst_134 {dimension_numbers = #tpu.dot_dimension_numbers<[1], [0], [0], [1], [0, 0, 1, 1], [], []>} : vector<2x32xf32>, vector<32x96xf32>, vector<2x96xf32> -> vector<2x96xf32>
    %393 = vector.extract_strided_slice %392 {offsets = [0, 0], sizes = [1, 32], strides = [1, 1]} : vector<2x96xf32> to vector<1x32xf32>
    %394 = arith.mulf %381, %393 : vector<1x32xf32>
    %395 = vector.extract_strided_slice %392 {offsets = [1, 32], sizes = [1, 32], strides = [1, 1]} : vector<2x96xf32> to vector<1x32xf32>
    %396 = arith.mulf %363, %395 : vector<1x32xf32>
    %cst_135 = arith.constant dense<0.000000e+00> : vector<1xf32>
    %397 = vector.multi_reduction <add>, %396, %cst_135 [1] : vector<1x32xf32> to vector<1xf32>
    %398 = vector.shape_cast %397 : vector<1xf32> to vector<1x1xf32>
    %399 = vector.extract_strided_slice %392 {offsets = [1, 64], sizes = [1, 32], strides = [1, 1]} : vector<2x96xf32> to vector<1x32xf32>
    %400 = arith.mulf %363, %399 : vector<1x32xf32>
    %cst_136 = arith.constant dense<0.000000e+00> : vector<1xf32>
    %401 = vector.multi_reduction <add>, %400, %cst_136 [1] : vector<1x32xf32> to vector<1xf32>
    %402 = vector.shape_cast %401 : vector<1xf32> to vector<1x1xf32>
    %cst_137 = arith.constant 1.000000e-30 : f32
    %403 = vector.broadcast %cst_137 : f32 to vector<1x1xf32>
    %404 = arith.maximumf %402, %403 : vector<1x1xf32>
    %405 = arith.divf %398, %404 : vector<1x1xf32>
    %cst_138 = arith.constant dense<0.000000e+00> : vector<1xf32>
    %406 = vector.multi_reduction <add>, %394, %cst_138 [1] : vector<1x32xf32> to vector<1xf32>
    %407 = vector.shape_cast %406 : vector<1xf32> to vector<1x1xf32>
    %cst_139 = arith.constant 1.000000e-30 : f32
    %408 = vector.broadcast %cst_139 : f32 to vector<1x1xf32>
    %409 = arith.maximumf %407, %408 : vector<1x1xf32>
    %410 = tpu.reciprocal %409 {approx = true} : vector<1x1xf32> -> vector<1x1xf32>
    %411 = vector.broadcast %410 : vector<1x1xf32> to vector<1x32xf32>
    %412 = arith.mulf %394, %411 : vector<1x32xf32>
    %413 = arith.mulf %412, %388 : vector<1x32xf32>
    %cst_140 = arith.constant dense<0.000000e+00> : vector<1xf32>
    %414 = vector.multi_reduction <add>, %413, %cst_140 [1] : vector<1x32xf32> to vector<1xf32>
    %415 = vector.shape_cast %414 : vector<1xf32> to vector<1x1xf32>
    %cst_141 = arith.constant 1.000000e-30 : f32
    %416 = vector.broadcast %cst_141 : f32 to vector<1x1xf32>
    %417 = arith.maximumf %415, %416 : vector<1x1xf32>
    %cst_142 = arith.constant 1.000000e+00 : f32
    %418 = vector.broadcast %cst_142 : f32 to vector<1x1xf32>
    %419 = arith.divf %418, %417 : vector<1x1xf32>
    %420 = arith.mulf %413, %382 : vector<1x32xf32>
    %cst_143 = arith.constant dense<0.000000e+00> : vector<1xf32>
    %421 = vector.multi_reduction <add>, %420, %cst_143 [1] : vector<1x32xf32> to vector<1xf32>
    %422 = vector.shape_cast %421 : vector<1xf32> to vector<1x1xf32>
    %423 = arith.mulf %422, %419 : vector<1x1xf32>
    %cst_144 = arith.constant 0.000000e+00 : f32
    %424 = vector.broadcast %cst_144 : f32 to vector<1x1xf32>
    %425 = arith.select %389, %423, %424 : vector<1x1xf32>
    %426 = arith.addf %380, %425 : vector<1x1xf32>
    %cst_145 = arith.constant 0.000000e+00 : f32
    %427 = vector.broadcast %cst_145 : f32 to vector<1x1xf32>
    %428 = arith.select %389, %405, %427 : vector<1x1xf32>
    %429 = arith.addf %426, %428 : vector<1x1xf32>
    %430 = vector.extract_strided_slice %52 {offsets = [6, 0], sizes = [1, 32], strides = [1, 1]} : vector<8x32xf32> to vector<1x32xf32>
    %431 = vector.extract_strided_slice %47 {offsets = [6, 0], sizes = [1, 32], strides = [1, 1]} : vector<8x32xf32> to vector<1x32xf32>
    %c14_i32 = arith.constant 14 : i32
    %432 = arith.subi %c14_i32, %1 : i32
    %c7_i32_146 = arith.constant 7 : i32
    %433 = arith.minsi %432, %c7_i32_146 : i32
    %c0_i32_147 = arith.constant 0 : i32
    %434 = arith.maxsi %433, %c0_i32_147 : i32
    %435 = arith.index_cast %434 : i32 to index
    %c0_148 = arith.constant 0 : index
    %c0_149 = arith.constant 0 : index
    %436 = vector.load %arg7[%435, %c0_148, %c0_149] : memref<8x1x32xf32, #tpu.memory_space<vmem>>, vector<1x1x32xf32>
    %437 = vector.shape_cast %436 : vector<1x1x32xf32> to vector<1x32xf32>
    %c6_i32 = arith.constant 6 : i32
    %438 = arith.cmpi sgt, %1, %c6_i32 : i32
    %439 = arith.mulf %430, %437 : vector<1x32xf32>
    %440 = tpu.concatenate %412, %439 in 0 : vector<1x32xf32>, vector<1x32xf32> -> vector<2x32xf32>
    %cst_150 = arith.constant dense<0.000000e+00> : vector<2x96xf32>
    %441 = tpu.matmul %440, %31, %cst_150 {dimension_numbers = #tpu.dot_dimension_numbers<[1], [0], [0], [1], [0, 0, 1, 1], [], []>} : vector<2x32xf32>, vector<32x96xf32>, vector<2x96xf32> -> vector<2x96xf32>
    %442 = vector.extract_strided_slice %441 {offsets = [0, 0], sizes = [1, 32], strides = [1, 1]} : vector<2x96xf32> to vector<1x32xf32>
    %443 = arith.mulf %430, %442 : vector<1x32xf32>
    %444 = vector.extract_strided_slice %441 {offsets = [1, 32], sizes = [1, 32], strides = [1, 1]} : vector<2x96xf32> to vector<1x32xf32>
    %445 = arith.mulf %412, %444 : vector<1x32xf32>
    %cst_151 = arith.constant dense<0.000000e+00> : vector<1xf32>
    %446 = vector.multi_reduction <add>, %445, %cst_151 [1] : vector<1x32xf32> to vector<1xf32>
    %447 = vector.shape_cast %446 : vector<1xf32> to vector<1x1xf32>
    %448 = vector.extract_strided_slice %441 {offsets = [1, 64], sizes = [1, 32], strides = [1, 1]} : vector<2x96xf32> to vector<1x32xf32>
    %449 = arith.mulf %412, %448 : vector<1x32xf32>
    %cst_152 = arith.constant dense<0.000000e+00> : vector<1xf32>
    %450 = vector.multi_reduction <add>, %449, %cst_152 [1] : vector<1x32xf32> to vector<1xf32>
    %451 = vector.shape_cast %450 : vector<1xf32> to vector<1x1xf32>
    %cst_153 = arith.constant 1.000000e-30 : f32
    %452 = vector.broadcast %cst_153 : f32 to vector<1x1xf32>
    %453 = arith.maximumf %451, %452 : vector<1x1xf32>
    %454 = arith.divf %447, %453 : vector<1x1xf32>
    %cst_154 = arith.constant dense<0.000000e+00> : vector<1xf32>
    %455 = vector.multi_reduction <add>, %443, %cst_154 [1] : vector<1x32xf32> to vector<1xf32>
    %456 = vector.shape_cast %455 : vector<1xf32> to vector<1x1xf32>
    %cst_155 = arith.constant 1.000000e-30 : f32
    %457 = vector.broadcast %cst_155 : f32 to vector<1x1xf32>
    %458 = arith.maximumf %456, %457 : vector<1x1xf32>
    %459 = tpu.reciprocal %458 {approx = true} : vector<1x1xf32> -> vector<1x1xf32>
    %460 = vector.broadcast %459 : vector<1x1xf32> to vector<1x32xf32>
    %461 = arith.mulf %443, %460 : vector<1x32xf32>
    %462 = arith.mulf %461, %437 : vector<1x32xf32>
    %cst_156 = arith.constant dense<0.000000e+00> : vector<1xf32>
    %463 = vector.multi_reduction <add>, %462, %cst_156 [1] : vector<1x32xf32> to vector<1xf32>
    %464 = vector.shape_cast %463 : vector<1xf32> to vector<1x1xf32>
    %cst_157 = arith.constant 1.000000e-30 : f32
    %465 = vector.broadcast %cst_157 : f32 to vector<1x1xf32>
    %466 = arith.maximumf %464, %465 : vector<1x1xf32>
    %cst_158 = arith.constant 1.000000e+00 : f32
    %467 = vector.broadcast %cst_158 : f32 to vector<1x1xf32>
    %468 = arith.divf %467, %466 : vector<1x1xf32>
    %469 = arith.mulf %462, %431 : vector<1x32xf32>
    %cst_159 = arith.constant dense<0.000000e+00> : vector<1xf32>
    %470 = vector.multi_reduction <add>, %469, %cst_159 [1] : vector<1x32xf32> to vector<1xf32>
    %471 = vector.shape_cast %470 : vector<1xf32> to vector<1x1xf32>
    %472 = arith.mulf %471, %468 : vector<1x1xf32>
    %cst_160 = arith.constant 0.000000e+00 : f32
    %473 = vector.broadcast %cst_160 : f32 to vector<1x1xf32>
    %474 = arith.select %438, %472, %473 : vector<1x1xf32>
    %475 = arith.addf %429, %474 : vector<1x1xf32>
    %cst_161 = arith.constant 0.000000e+00 : f32
    %476 = vector.broadcast %cst_161 : f32 to vector<1x1xf32>
    %477 = arith.select %438, %454, %476 : vector<1x1xf32>
    %478 = arith.addf %475, %477 : vector<1x1xf32>
    %479 = vector.extract_strided_slice %52 {offsets = [7, 0], sizes = [1, 32], strides = [1, 1]} : vector<8x32xf32> to vector<1x32xf32>
    %480 = vector.extract_strided_slice %47 {offsets = [7, 0], sizes = [1, 32], strides = [1, 1]} : vector<8x32xf32> to vector<1x32xf32>
    %c15_i32 = arith.constant 15 : i32
    %481 = arith.subi %c15_i32, %1 : i32
    %c7_i32_162 = arith.constant 7 : i32
    %482 = arith.minsi %481, %c7_i32_162 : i32
    %c0_i32_163 = arith.constant 0 : i32
    %483 = arith.maxsi %482, %c0_i32_163 : i32
    %484 = arith.index_cast %483 : i32 to index
    %c0_164 = arith.constant 0 : index
    %c0_165 = arith.constant 0 : index
    %485 = vector.load %arg7[%484, %c0_164, %c0_165] : memref<8x1x32xf32, #tpu.memory_space<vmem>>, vector<1x1x32xf32>
    %486 = vector.shape_cast %485 : vector<1x1x32xf32> to vector<1x32xf32>
    %c7_i32_166 = arith.constant 7 : i32
    %487 = arith.cmpi sgt, %1, %c7_i32_166 : i32
    %488 = arith.mulf %479, %486 : vector<1x32xf32>
    %489 = tpu.concatenate %461, %488 in 0 : vector<1x32xf32>, vector<1x32xf32> -> vector<2x32xf32>
    %cst_167 = arith.constant dense<0.000000e+00> : vector<2x96xf32>
    %490 = tpu.matmul %489, %31, %cst_167 {dimension_numbers = #tpu.dot_dimension_numbers<[1], [0], [0], [1], [0, 0, 1, 1], [], []>} : vector<2x32xf32>, vector<32x96xf32>, vector<2x96xf32> -> vector<2x96xf32>
    %491 = vector.extract_strided_slice %490 {offsets = [0, 0], sizes = [1, 32], strides = [1, 1]} : vector<2x96xf32> to vector<1x32xf32>
    %492 = arith.mulf %479, %491 : vector<1x32xf32>
    %493 = vector.extract_strided_slice %490 {offsets = [1, 32], sizes = [1, 32], strides = [1, 1]} : vector<2x96xf32> to vector<1x32xf32>
    %494 = arith.mulf %461, %493 : vector<1x32xf32>
    %cst_168 = arith.constant dense<0.000000e+00> : vector<1xf32>
    %495 = vector.multi_reduction <add>, %494, %cst_168 [1] : vector<1x32xf32> to vector<1xf32>
    %496 = vector.shape_cast %495 : vector<1xf32> to vector<1x1xf32>
    %497 = vector.extract_strided_slice %490 {offsets = [1, 64], sizes = [1, 32], strides = [1, 1]} : vector<2x96xf32> to vector<1x32xf32>
    %498 = arith.mulf %461, %497 : vector<1x32xf32>
    %cst_169 = arith.constant dense<0.000000e+00> : vector<1xf32>
    %499 = vector.multi_reduction <add>, %498, %cst_169 [1] : vector<1x32xf32> to vector<1xf32>
    %500 = vector.shape_cast %499 : vector<1xf32> to vector<1x1xf32>
    %cst_170 = arith.constant 1.000000e-30 : f32
    %501 = vector.broadcast %cst_170 : f32 to vector<1x1xf32>
    %502 = arith.maximumf %500, %501 : vector<1x1xf32>
    %503 = arith.divf %496, %502 : vector<1x1xf32>
    %cst_171 = arith.constant dense<0.000000e+00> : vector<1xf32>
    %504 = vector.multi_reduction <add>, %492, %cst_171 [1] : vector<1x32xf32> to vector<1xf32>
    %505 = vector.shape_cast %504 : vector<1xf32> to vector<1x1xf32>
    %cst_172 = arith.constant 1.000000e-30 : f32
    %506 = vector.broadcast %cst_172 : f32 to vector<1x1xf32>
    %507 = arith.maximumf %505, %506 : vector<1x1xf32>
    %508 = tpu.reciprocal %507 {approx = true} : vector<1x1xf32> -> vector<1x1xf32>
    %509 = vector.broadcast %508 : vector<1x1xf32> to vector<1x32xf32>
    %510 = arith.mulf %492, %509 : vector<1x32xf32>
    %511 = arith.mulf %510, %486 : vector<1x32xf32>
    %cst_173 = arith.constant dense<0.000000e+00> : vector<1xf32>
    %512 = vector.multi_reduction <add>, %511, %cst_173 [1] : vector<1x32xf32> to vector<1xf32>
    %513 = vector.shape_cast %512 : vector<1xf32> to vector<1x1xf32>
    %cst_174 = arith.constant 1.000000e-30 : f32
    %514 = vector.broadcast %cst_174 : f32 to vector<1x1xf32>
    %515 = arith.maximumf %513, %514 : vector<1x1xf32>
    %cst_175 = arith.constant 1.000000e+00 : f32
    %516 = vector.broadcast %cst_175 : f32 to vector<1x1xf32>
    %517 = arith.divf %516, %515 : vector<1x1xf32>
    %518 = arith.mulf %511, %480 : vector<1x32xf32>
    %cst_176 = arith.constant dense<0.000000e+00> : vector<1xf32>
    %519 = vector.multi_reduction <add>, %518, %cst_176 [1] : vector<1x32xf32> to vector<1xf32>
    %520 = vector.shape_cast %519 : vector<1xf32> to vector<1x1xf32>
    %521 = arith.mulf %520, %517 : vector<1x1xf32>
    %cst_177 = arith.constant 0.000000e+00 : f32
    %522 = vector.broadcast %cst_177 : f32 to vector<1x1xf32>
    %523 = arith.select %487, %521, %522 : vector<1x1xf32>
    %524 = arith.addf %478, %523 : vector<1x1xf32>
    %cst_178 = arith.constant 0.000000e+00 : f32
    %525 = vector.broadcast %cst_178 : f32 to vector<1x1xf32>
    %526 = arith.select %487, %503, %525 : vector<1x1xf32>
    %527 = arith.addf %524, %526 : vector<1x1xf32>
    %c0_179 = arith.constant 0 : index
    %c0_180 = arith.constant 0 : index
    %c0_181 = arith.constant 0 : index
    %528 = vector.load %arg6[%c0_179, %c0_180, %c0_181] : memref<1x1x1xf32, #tpu.memory_space<vmem>>, vector<1x1x1xf32>
    %529 = vector.shape_cast %528 : vector<1x1x1xf32> to vector<1x1xf32>
    %530 = vector.shape_cast %527 : vector<1x1xf32> to vector<1x1x1xf32>
    tpu.vector_store %arg6[%c0_179, %c0_180, %c0_181], %530 {strides = array<i32>} : memref<1x1x1xf32, #tpu.memory_space<vmem>>, vector<1x1x1xf32>,
    return
  }
  func.func @transform_0(%arg0: i32, %arg1: memref<2xi32, #tpu.memory_space<smem>>) -> (i32, i32, i32) {
    %c0_i32 = arith.constant 0 : i32
    %c0_i32_0 = arith.constant 0 : i32
    %c0_i32_1 = arith.constant 0 : i32
    return %arg0, %c0_i32, %c0_i32_0 : i32, i32, i32
  }
  func.func @transform_1(%arg0: i32, %arg1: memref<2xi32, #tpu.memory_space<smem>>) -> (i32, i32) {
    %c0_i32 = arith.constant 0 : i32
    %c0_i32_0 = arith.constant 0 : i32
    %c0_i32_1 = arith.constant 0 : i32
    return %c0_i32, %c0_i32_0 : i32, i32
  }
  func.func @transform_2(%arg0: i32, %arg1: memref<2xi32, #tpu.memory_space<smem>>) -> (i32, i32) {
    %c0_i32 = arith.constant 0 : i32
    %c0_i32_0 = arith.constant 0 : i32
    %c0_i32_1 = arith.constant 0 : i32
    return %c0_i32, %c0_i32_0 : i32, i32
  }
  func.func @transform_3(%arg0: i32, %arg1: memref<2xi32, #tpu.memory_space<smem>>) -> (i32, i32) {
    %c0_i32 = arith.constant 0 : i32
    %c0_i32_0 = arith.constant 0 : i32
    %c0_i32_1 = arith.constant 0 : i32
    return %c0_i32, %c0_i32_0 : i32, i32
  }
  func.func @transform_4(%arg0: i32, %arg1: memref<2xi32, #tpu.memory_space<smem>>) -> (i32, i32, i32) {
    %c0_i32 = arith.constant 0 : i32
    %c0_i32_0 = arith.constant 0 : i32
    %c0_i32_1 = arith.constant 0 : i32
    return %arg0, %c0_i32, %c0_i32_0 : i32, i32, i32
  }
}

</mosaic_0001>

<llo_original>
// kernel: tpu_custom_call.1
$region0: #{tpu_custom_call.1}
  #allocation0 [shape = 'u32[]', space=smem, size = 0x4, offset = 0x4, fixed_abs, tag = 'smem constant byte address 0x4 - core index']
  #allocation1 [shape = 'u32[144,128]{1,0:T(1,128)}', space=vmem, size = 0x12000, scoped, tag = 'internal scratch']
  #allocation2 [shape = 'f32[8,1,32]{2,1,0:T(1,128)}', space=vmem, size = 0x1000, scoped, tag = 'scratch operand']
  #allocation3 [shape = 's32[1]{0}', space=sflag, size = 0x4, scoped, tag = 'scoped memory for tpu_custom_call.1']
  #allocation4 [shape = 'u8[512]{0}', space=smem, size = 0x200, scoped, tag = 'prefetched SMEM operand 0']
  %s0 = inlined_call_operand.vmem [shape: s32[2], index: 0, kind: input, shape index: {}]
  %s1 = inlined_call_operand.vmem [shape: f32[2,8,16], index: 1, kind: input, shape index: {}]
  %s2 = inlined_call_operand.vmem [shape: f32[1,32], index: 2, kind: input, shape index: {}]
  %s3 = inlined_call_operand.vmem [shape: f32[32,32], index: 3, kind: input, shape index: {}]
  %s4 = inlined_call_operand.vmem [shape: f32[32,16], index: 4, kind: input, shape index: {}]
  %s5 = inlined_call_operand.vmem [shape: f32[2,1,1], index: 5, kind: output, shape index: {}]
  %s6 = sld [smem:[#allocation0]]
  $region49: #{tpu_custom_call.1} parent=0
    _
  %s8 = ssub.s32 1, %s6
  %s9 = scalar_select 0, %s8, %s6
  %s10 = sshll.u32 %s0, 4
  %s11 = int_to_ptr.vmem [resolvable:$true] %s10
  %13 = dma.vmem_to_smem %s11, 16, [#allocation4], [#allocation3]
  %14 = dma.done [#allocation3], 16
  %15 = sfence
  loop: start=0, step=1, limit=4
  $region2: #{tpu_custom_call.1} parent=0 // loop_pre_header
    _
  $region3: #{tpu_custom_call.1} parent=0 // loop_header
    %s17 = sphi 0, %s21
    %p18 = scmp.ge.s32.totalorder %s17, 4
    %s27 = sphi 0, %s29
    %s30 = sphi 0, %s27
    %s31 = sphi 0, %s30
    %s47 = sphi 0, %s31
    %s51 = sphi 0, %s51
    %s53 = sphi 0, %s51
    %s54 = sphi 0, %s53
    %s68 = sphi 0, %s54
    %s72 = sphi 0, %s72
    %s74 = sphi 0, %s72
    %s75 = sphi 0, %s74
    %s89 = sphi 0, %s75
    %s93 = sphi 0, %s93
    %s95 = sphi 0, %s93
    %s96 = sphi 0, %s95
    %s110 = sphi 0, %s96
    %s116 = sphi 0, %s118
    %s119 = sphi 0, %s116
    %s120 = sphi 0, %s119
    %s136 = sphi 0, %s120
  $region4: #{tpu_custom_call.1} parent=0 // loop_header_branch
    %20 = sbr.rel (%p18) target = $region8
  $region5: #{tpu_custom_call.1} parent=0 // loop_body
    %s22 = ssub.s32 %s17, 1
    %s23 = ssub.s32 %s17, 2
    %s24 = sadd.s32 %s17, 1
    %s25 = ssub.s32 %s17, %s24
    %p26 = scmp.eq.s32.totalorder %s25, 0
    %s28 = sadd.s32 %s27, 1
    %s29 = scalar_select %p26, %s27, %s28
    %p32 = pneg %p26
    %p33 = scmp.eq.s32.totalorder %s17, 1
    %p34 = por %p32, %p33
    %p35 = scmp.ne.s32.totalorder %s27, %s30
    %p36 = scmp.eq.s32.totalorder %s17, 0
    %p37 = por %p35, %p36
    %p38 = scmp.ne.s32.totalorder %s27, %s30
    %p39 = scmp.eq.s32.totalorder %s22, 1
    %p40 = por %p38, %p39
    %p41 = scmp.ne.s32.totalorder %s30, %s31
    %p42 = scmp.eq.s32.totalorder %s22, 0
    %p43 = por %p41, %p42
    %p44 = scmp.ne.s32.totalorder %s30, %s31
    %p45 = scmp.eq.s32.totalorder %s23, 1
    %p46 = por %p44, %p45
    %p48 = scmp.ne.s32.totalorder %s31, %s47
    %p49 = scmp.eq.s32.totalorder %s23, 0
    %p50 = por %p48, %p49
    %s52 = sadd.s32 %s51, 1
    %p55 = scmp.eq.s32.totalorder %s17, 1
    %p56 = scmp.ne.s32.totalorder %s51, %s53
    %p57 = scmp.eq.s32.totalorder %s17, 0
    %p58 = por %p56, %p57
    %p59 = scmp.ne.s32.totalorder %s51, %s53
    %p60 = scmp.eq.s32.totalorder %s22, 1
    %p61 = por %p59, %p60
    %p62 = scmp.ne.s32.totalorder %s53, %s54
    %p63 = scmp.eq.s32.totalorder %s22, 0
    %p64 = por %p62, %p63
    %p65 = scmp.ne.s32.totalorder %s53, %s54
    %p66 = scmp.eq.s32.totalorder %s23, 1
    %p67 = por %p65, %p66
    %p69 = scmp.ne.s32.totalorder %s54, %s68
    %p70 = scmp.eq.s32.totalorder %s23, 0
    %p71 = por %p69, %p70
    %s73 = sadd.s32 %s72, 1
    %p76 = scmp.eq.s32.totalorder %s17, 1
    %p77 = scmp.ne.s32.totalorder %s72, %s74
    %p78 = scmp.eq.s32.totalorder %s17, 0
    %p79 = por %p77, %p78
    %p80 = scmp.ne.s32.totalorder %s72, %s74
    %p81 = scmp.eq.s32.totalorder %s22, 1
    %p82 = por %p80, %p81
    %p83 = scmp.ne.s32.totalorder %s74, %s75
    %p84 = scmp.eq.s32.totalorder %s22, 0
    %p85 = por %p83, %p84
    %p86 = scmp.ne.s32.totalorder %s74, %s75
    %p87 = scmp.eq.s32.totalorder %s23, 1
    %p88 = por %p86, %p87
    %p90 = scmp.ne.s32.totalorder %s75, %s89
    %p91 = scmp.eq.s32.totalorder %s23, 0
    %p92 = por %p90, %p91
    %s94 = sadd.s32 %s93, 1
    %p97 = scmp.eq.s32.totalorder %s17, 1
    %p98 = scmp.ne.s32.totalorder %s93, %s95
    %p99 = scmp.eq.s32.totalorder %s17, 0
    %p100 = por %p98, %p99
    %p101 = scmp.ne.s32.totalorder %s93, %s95
    %p102 = scmp.eq.s32.totalorder %s22, 1
    %p103 = por %p101, %p102
    %p104 = scmp.ne.s32.totalorder %s95, %s96
    %p105 = scmp.eq.s32.totalorder %s22, 0
    %p106 = por %p104, %p105
    %p107 = scmp.ne.s32.totalorder %s95, %s96
    %p108 = scmp.eq.s32.totalorder %s23, 1
    %p109 = por %p107, %p108
    %p111 = scmp.ne.s32.totalorder %s96, %s110
    %p112 = scmp.eq.s32.totalorder %s23, 0
    %p113 = por %p111, %p112
    %s114 = ssub.s32 %s17, %s24
    %p115 = scmp.eq.s32.totalorder %s114, 0
    %s117 = sadd.s32 %s116, 1
    %s118 = scalar_select %p115, %s116, %s117
    %p121 = pneg %p115
    %p122 = scmp.eq.s32.totalorder %s17, 1
    %p123 = por %p121, %p122
    %p124 = scmp.ne.s32.totalorder %s116, %s119
    %p125 = scmp.eq.s32.totalorder %s17, 0
    %p126 = por %p124, %p125
    %p127 = scmp.ne.s32.totalorder %s116, %s119
    %p128 = scmp.eq.s32.totalorder %s22, 1
    %p129 = por %p127, %p128
    %p130 = scmp.ne.s32.totalorder %s119, %s120
    %p131 = scmp.eq.s32.totalorder %s22, 0
    %p132 = por %p130, %p131
    %p133 = scmp.ne.s32.totalorder %s119, %s120
    %p134 = scmp.eq.s32.totalorder %s23, 1
    %p135 = por %p133, %p134
    %p137 = scmp.ne.s32.totalorder %s120, %s136
    %p138 = scmp.eq.s32.totalorder %s23, 0
    %p139 = por %p137, %p138
    %p140 = scmp.le.s32.totalorder 1, %s17
    %p141 = scmp.lt.s32.totalorder %s17, 3
    %p142 = pnand %p140, %p141
    %p143 = pneg %p142
    // Predicated region
    $region9: #{tpu_custom_call.1} parent=5 // pred_check
      _
    $region10: #{tpu_custom_call.1} parent=5 // pred_check_branch
      %145 = sbr.rel (%p142) target = $region12
    $region11: #{tpu_custom_call.1} parent=5 // pred_region
      %s146 = ssub.s32 %s17, 1
      // Predicated region
      $region13: #{tpu_custom_call.1} parent=11 // pred_check
        %p147 = pneg %p64
      $region14: #{tpu_custom_call.1} parent=11 // pred_check_branch
        %149 = sbr.rel (%p147) target = $region16
      $region15: #{tpu_custom_call.1} parent=11 // pred_region
        _
      $region16: #{tpu_custom_call.1} parent=11 // pred_fallthru
        _
      // Predicated region
      $region17: #{tpu_custom_call.1} parent=11 // pred_check
        %p150 = pneg %p85
      $region18: #{tpu_custom_call.1} parent=11 // pred_check_branch
        %152 = sbr.rel (%p150) target = $region20
      $region19: #{tpu_custom_call.1} parent=11 // pred_region
        _
      $region20: #{tpu_custom_call.1} parent=11 // pred_fallthru
        _
      // Predicated region
      $region21: #{tpu_custom_call.1} parent=11 // pred_check
        %p153 = pneg %p106
      $region22: #{tpu_custom_call.1} parent=11 // pred_check_branch
        %155 = sbr.rel (%p153) target = $region24
      $region23: #{tpu_custom_call.1} parent=11 // pred_region
        _
      $region24: #{tpu_custom_call.1} parent=11 // pred_fallthru
        _
    $region12: #{tpu_custom_call.1} parent=5 // pred_fallthru
      _
    %p156 = scmp.lt.s32.totalorder %s17, 2
    // Predicated region
    $region25: #{tpu_custom_call.1} parent=5 // pred_check
      %p157 = pneg %p156
    $region26: #{tpu_custom_call.1} parent=5 // pred_check_branch
      %159 = sbr.rel (%p157) target = $region28
    $region27: #{tpu_custom_call.1} parent=5 // pred_region
      // Predicated region
      $region29: #{tpu_custom_call.1} parent=27 // pred_check
        %p160 = pneg %p37
      $region30: #{tpu_custom_call.1} parent=27 // pred_check_branch
        %162 = sbr.rel (%p160) target = $region32
      $region31: #{tpu_custom_call.1} parent=27 // pred_region
        %p163 = scmp.lt.s32.totalorder %s17, 1
        %s164 = scalar_select %p163, %s17, 1
        %s165 = smul.addr %s164, 8
        %s166 = scalar_lea.vmem %s1, %s165
      $region32: #{tpu_custom_call.1} parent=27 // pred_fallthru
        _
    $region28: #{tpu_custom_call.1} parent=5 // pred_fallthru
      _
    %p167 = scmp.le.s32.totalorder 1, %s17
    %p168 = scmp.lt.s32.totalorder %s17, 3
    %p169 = pnand %p167, %p168
    %p170 = pneg %p169
    // Predicated region
    $region33: #{tpu_custom_call.1} parent=5 // pred_check
      _
    $region34: #{tpu_custom_call.1} parent=5 // pred_check_branch
      %172 = sbr.rel (%p169) target = $region36
    $region35: #{tpu_custom_call.1} parent=5 // pred_region
      %s173 = ssub.s32 %s17, 1
      %p174 = scmp.lt.s32.totalorder %s22, 1
      %s175 = scalar_select %p174, %s22, 1
      %s176 = smul.addr %s175, 8
      %s177 = scalar_lea.vmem %s1, %s176
      %p178 = pneg %p43
      %p179 = pneg %p40
      %p180 = pneg %p64
      %p181 = pneg %p61
      %p182 = pneg %p85
      %p183 = pneg %p82
      %p184 = pneg %p106
      %p185 = pneg %p103
      %p186 = pneg %p132
      %p187 = pneg %p129
      %p188 = scmp.lt.s32.totalorder %s22, 1
      %s189 = scalar_select %p188, %s22, 1
      %s190 = scalar_lea.vmem %s5, %s189
      %p191 = scmp.lt.s32.totalorder %s22, 1
      %s192 = scalar_select %p191, %s22, 1
      %s193 = smul.addr %s192, 8
      %s194 = scalar_lea.vmem %s1, %s193
      %p195 = scmp.lt.s32.totalorder %s22, 1
      %s196 = scalar_select %p195, %s22, 1
      %s197 = scalar_lea.vmem %s5, %s196
      %s198 = sld [smem:[#allocation4 + %s22]]
      %v199 = vld [vmem:[%s2] sm:$0x1]
      %vm200 = vcmask 253952
      %v201 = vsel %vm200, %v199, -inf
      %202 = vmax.xlane.f32.xlu0 %v201
      %v203 = vpop.xlane.xlu0 %202
      %v204 = vsub.f32 %v199, %v203
      %v205 = vmul.f32 %v204, 1.442695
      %v206 = vpow.pop %v205
      %v207 = vsel %vm200, %v206, 0.0
      %208 = vadd.xlane.f32.xlu0 %v207
      %v209 = vpop.xlane.xlu0 %208
      %v210 = vlog2.pop %v209
      %v211 = vmul.f32 %v210, 0.6931472
      %v212 = vadd.f32 %v203, %v211
      %v213 = vsub.f32 %v199, %v212
      %v214 = vmul.f32 %v213, 1.442695
      %v215 = vpow.pop %v214
      %v216 = vld [vmem:[%s3] sm:$0xff]
      %v217 = vld [vmem:[%s3 + $0x8] sm:$0xff]
      %v218 = vld [vmem:[%s3 + $0x10] sm:$0xff]
      %v219 = vld [vmem:[%s3 + $0x18] sm:$0xff]
      %vm220 = vcmask 261120
      %v221 = vsel %vm220, %v216, -inf
      %222 = vmax.xlane.f32.xlu0 %v221
      %v223 = vpop.xlane.xlu0 %222
      %v224 = vsel %vm220, %v217, -inf
      %225 = vmax.xlane.f32.xlu0 %v224
      %v226 = vpop.xlane.xlu0 %225
      %v227 = vsel %vm220, %v218, -inf
      %228 = vmax.xlane.f32.xlu0 %v227
      %v229 = vpop.xlane.xlu0 %228
      %v230 = vsel %vm220, %v219, -inf
      %231 = vmax.xlane.f32.xlu0 %v230
      %v232 = vpop.xlane.xlu0 %231
      %v233 = vsub.f32 %v216, %v223
      %v234 = vsub.f32 %v217, %v226
      %v235 = vsub.f32 %v218, %v229
      %v236 = vsub.f32 %v219, %v232
      %v237 = vmul.f32 %v233, 1.442695
      %v238 = vpow.pop %v237
      %v239 = vmul.f32 %v234, 1.442695
      %v240 = vpow.pop %v239
      %v241 = vmul.f32 %v235, 1.442695
      %v242 = vpow.pop %v241
      %v243 = vmul.f32 %v236, 1.442695
      %v244 = vpow.pop %v243
      %v245 = vsel %vm220, %v238, 0.0
      %246 = vadd.xlane.f32.xlu0 %v245
      %v247 = vpop.xlane.xlu0 %246
      %v248 = vsel %vm220, %v240, 0.0
      %249 = vadd.xlane.f32.xlu0 %v248
      %v250 = vpop.xlane.xlu0 %249
      %v251 = vsel %vm220, %v242, 0.0
      %252 = vadd.xlane.f32.xlu0 %v251
      %v253 = vpop.xlane.xlu0 %252
      %v254 = vsel %vm220, %v244, 0.0
      %255 = vadd.xlane.f32.xlu0 %v254
      %v256 = vpop.xlane.xlu0 %255
      %v257 = vlog2.pop %v247
      %v258 = vmul.f32 %v257, 0.6931472
      %v259 = vlog2.pop %v250
      %v260 = vmul.f32 %v259, 0.6931472
      %v261 = vlog2.pop %v253
      %v262 = vmul.f32 %v261, 0.6931472
      %v263 = vlog2.pop %v256
      %v264 = vmul.f32 %v263, 0.6931472
      %v265 = vadd.f32 %v223, %v258
      %v266 = vadd.f32 %v226, %v260
      %v267 = vadd.f32 %v229, %v262
      %v268 = vadd.f32 %v232, %v264
      %v269 = vsub.f32 %v216, %v265
      %v270 = vsub.f32 %v217, %v266
      %v271 = vsub.f32 %v218, %v267
      %v272 = vsub.f32 %v219, %v268
      %v273 = vmul.f32 %v269, 1.442695
      %v274 = vpow.pop %v273
      %v275 = vmul.f32 %v270, 1.442695
      %v276 = vpow.pop %v275
      %v277 = vmul.f32 %v271, 1.442695
      %v278 = vpow.pop %v277
      %v279 = vmul.f32 %v272, 1.442695
      %v280 = vpow.pop %v279
      %281 = vxpose.xlu0.b32.start [1/16] %v274, 128
      %282 = vxpose.xlu0.b32.cont [2/16] %v276, 128
      %283 = vxpose.xlu0.b32.cont [3/16] %v278, 128
      %284 = vxpose.xlu0.b32.cont [4/16] %v280, 128
      %285 = vxpose.xlu0.b32.cont [5/16] 0.0, 128
      %286 = vxpose.xlu0.b32.cont [6/16] 0.0, 128
      %287 = vxpose.xlu0.b32.cont [7/16] 0.0, 128
      %288 = vxpose.xlu0.b32.cont [8/16] 0.0, 128
      %289 = vxpose.xlu0.b32.cont [9/16] 0.0, 128
      %290 = vxpose.xlu0.b32.cont [10/16] 0.0, 128
      %291 = vxpose.xlu0.b32.cont [11/16] 0.0, 128
      %292 = vxpose.xlu0.b32.cont [12/16] 0.0, 128
      %293 = vxpose.xlu0.b32.cont [13/16] 0.0, 128
      %294 = vxpose.xlu0.b32.cont [14/16] 0.0, 128
      %295 = vxpose.xlu0.b32.cont [15/16] 0.0, 128
      %296 = vxpose.xlu0.b32.end [16/16] 0.0, 128
      %v297 = vpop.trf.xlu0
      %v298 = vpop.trf.xlu0
      %v299 = vpop.trf.xlu0
      %v300 = vpop.trf.xlu0
      %v301 = vpop.trf.xlu0
      %v302 = vpop.trf.xlu0
      %v303 = vpop.trf.xlu0
      %v304 = vpop.trf.xlu0
      %v305 = vpop.trf.xlu0
      %v306 = vpop.trf.xlu0
      %v307 = vpop.trf.xlu0
      %v308 = vpop.trf.xlu0
      %v309 = vpop.trf.xlu0
      %v310 = vpop.trf.xlu0
      %v311 = vpop.trf.xlu0
      %v312 = vpop.trf.xlu0
      %v313 = vmul.f32 %v274, %v269
      %v314 = vmul.f32 %v276, %v270
      %v315 = vmul.f32 %v278, %v271
      %v316 = vmul.f32 %v280, %v272
      %317 = vxpose.xlu0.b32.start [1/16] %v313, 128
      %318 = vxpose.xlu0.b32.cont [2/16] %v314, 128
      %319 = vxpose.xlu0.b32.cont [3/16] %v315, 128
      %320 = vxpose.xlu0.b32.cont [4/16] %v316, 128
      %321 = vxpose.xlu0.b32.cont [5/16] 0.0, 128
      %322 = vxpose.xlu0.b32.cont [6/16] 0.0, 128
      %323 = vxpose.xlu0.b32.cont [7/16] 0.0, 128
      %324 = vxpose.xlu0.b32.cont [8/16] 0.0, 128
      %325 = vxpose.xlu0.b32.cont [9/16] 0.0, 128
      %326 = vxpose.xlu0.b32.cont [10/16] 0.0, 128
      %327 = vxpose.xlu0.b32.cont [11/16] 0.0, 128
      %328 = vxpose.xlu0.b32.cont [12/16] 0.0, 128
      %329 = vxpose.xlu0.b32.cont [13/16] 0.0, 128
      %330 = vxpose.xlu0.b32.cont [14/16] 0.0, 128
      %331 = vxpose.xlu0.b32.cont [15/16] 0.0, 128
      %332 = vxpose.xlu0.b32.end [16/16] 0.0, 128
      %v333 = vpop.trf.xlu0
      %v334 = vpop.trf.xlu0
      %v335 = vpop.trf.xlu0
      %v336 = vpop.trf.xlu0
      %v337 = vpop.trf.xlu0
      %v338 = vpop.trf.xlu0
      %v339 = vpop.trf.xlu0
      %v340 = vpop.trf.xlu0
      %v341 = vpop.trf.xlu0
      %v342 = vpop.trf.xlu0
      %v343 = vpop.trf.xlu0
      %v344 = vpop.trf.xlu0
      %v345 = vpop.trf.xlu0
      %v346 = vpop.trf.xlu0
      %v347 = vpop.trf.xlu0
      %v348 = vpop.trf.xlu0
      %353 = vrot.lane.b32.xlu0 %v333, 32
      %v354 = vpop.permute.xlu0 %353
      %355 = vrot.lane.b32.xlu0 %v334, 32
      %v356 = vpop.permute.xlu0 %355
      %357 = vrot.lane.b32.xlu0 %v335, 32
      %v358 = vpop.permute.xlu0 %357
      %359 = vrot.lane.b32.xlu0 %v336, 32
      %v360 = vpop.permute.xlu0 %359
      %369 = vrot.lane.b32.xlu0 %v297, 64
      %v370 = vpop.permute.xlu0 %369
      %371 = vrot.lane.b32.xlu0 %v298, 64
      %v372 = vpop.permute.xlu0 %371
      %373 = vrot.lane.b32.xlu0 %v299, 64
      %v374 = vpop.permute.xlu0 %373
      %375 = vrot.lane.b32.xlu0 %v300, 64
      %v376 = vpop.permute.xlu0 %375
      %v381 = vsel %vm220, %v274, %v354
      %v382 = vsel %vm220, %v276, %v356
      %v383 = vsel %vm220, %v278, %v358
      %v384 = vsel %vm220, %v280, %v360
      %vm385 = vcmask 523264
      %v386 = vsel %vm385, %v381, %v370
      %v387 = vsel %vm385, %v382, %v372
      %v388 = vsel %vm385, %v383, %v374
      %v389 = vsel %vm385, %v384, %v376
      %v390 = vld [vmem:[%s4] sm:$0xff]
      %v391 = vld [vmem:[%s4 + $0x8] sm:$0xff]
      %v392 = vld [vmem:[%s4 + $0x10] sm:$0xff]
      %v393 = vld [vmem:[%s4 + $0x18] sm:$0xff]
      %vm394 = vcmask 130048
      %v395 = vsel %vm394, %v390, -inf
      %396 = vmax.xlane.f32.xlu0 %v395
      %v397 = vpop.xlane.xlu0 %396
      %v398 = vsel %vm394, %v391, -inf
      %399 = vmax.xlane.f32.xlu0 %v398
      %v400 = vpop.xlane.xlu0 %399
      %v401 = vsel %vm394, %v392, -inf
      %402 = vmax.xlane.f32.xlu0 %v401
      %v403 = vpop.xlane.xlu0 %402
      %v404 = vsel %vm394, %v393, -inf
      %405 = vmax.xlane.f32.xlu0 %v404
      %v406 = vpop.xlane.xlu0 %405
      %v407 = vsub.f32 %v390, %v397
      %v408 = vsub.f32 %v391, %v400
      %v409 = vsub.f32 %v392, %v403
      %v410 = vsub.f32 %v393, %v406
      %v411 = vmul.f32 %v407, 1.442695
      %v412 = vpow.pop %v411
      %v413 = vmul.f32 %v408, 1.442695
      %v414 = vpow.pop %v413
      %v415 = vmul.f32 %v409, 1.442695
      %v416 = vpow.pop %v415
      %v417 = vmul.f32 %v410, 1.442695
      %v418 = vpow.pop %v417
      %v419 = vsel %vm394, %v412, 0.0
      %420 = vadd.xlane.f32.xlu0 %v419
      %v421 = vpop.xlane.xlu0 %420
      %v422 = vsel %vm394, %v414, 0.0
      %423 = vadd.xlane.f32.xlu0 %v422
      %v424 = vpop.xlane.xlu0 %423
      %v425 = vsel %vm394, %v416, 0.0
      %426 = vadd.xlane.f32.xlu0 %v425
      %v427 = vpop.xlane.xlu0 %426
      %v428 = vsel %vm394, %v418, 0.0
      %429 = vadd.xlane.f32.xlu0 %v428
      %v430 = vpop.xlane.xlu0 %429
      %v431 = vlog2.pop %v421
      %v432 = vmul.f32 %v431, 0.6931472
      %v433 = vlog2.pop %v424
      %v434 = vmul.f32 %v433, 0.6931472
      %v435 = vlog2.pop %v427
      %v436 = vmul.f32 %v435, 0.6931472
      %v437 = vlog2.pop %v430
      %v438 = vmul.f32 %v437, 0.6931472
      %v439 = vadd.f32 %v397, %v432
      %v440 = vadd.f32 %v400, %v434
      %v441 = vadd.f32 %v403, %v436
      %v442 = vadd.f32 %v406, %v438
      %v443 = vsub.f32 %v390, %v439
      %v444 = vsub.f32 %v391, %v440
      %v445 = vsub.f32 %v392, %v441
      %v446 = vsub.f32 %v393, %v442
      %v447 = vld [vmem:[%s194] sm:$0xff]
      %v449 = vsel %vm394, %v447, 0
      %v452 = vsel %vm394, %v443, 0
      %v455 = vsel %vm394, %v444, 0
      %v458 = vsel %vm394, %v445, 0
      %v461 = vsel %vm394, %v446, 0
      %463 = vmatprep.subr.mxu0 0.0
      %464 = vmatpush1.xpose.msra.mxu0 %v452
      %465 = vmatprep.subr.mxu0 0.0
      %466 = vmatpush1.xpose.msra.mxu0 %v455
      %467 = vmatprep.subr.mxu0 0.0
      %468 = vmatpush1.xpose.msra.mxu0 %v458
      %469 = vmatprep.subr.mxu0 0.0
      %470 = vmatpush1.xpose.msra.mxu0 %v461
      %471 = vmatprep.subr.mxu0 0.0
      %472 = vmatpush1.xpose.msra.mxu0 0.0
      %473 = vmatprep.subr.mxu0 0.0
      %474 = vmatpush1.xpose.msra.mxu0 0.0
      %475 = vmatprep.subr.mxu0 0.0
      %476 = vmatpush1.xpose.msra.mxu0 0.0
      %477 = vmatprep.subr.mxu0 0.0
      %478 = vmatpush1.xpose.msra.mxu0 0.0
      %479 = vmatprep.subr.mxu0 0.0
      %480 = vmatpush1.xpose.msra.mxu0 0.0
      %481 = vmatprep.subr.mxu0 0.0
      %482 = vmatpush1.xpose.msra.mxu0 0.0
      %483 = vmatprep.subr.mxu0 0.0
      %484 = vmatpush1.xpose.msra.mxu0 0.0
      %485 = vmatprep.subr.mxu0 0.0
      %486 = vmatpush1.xpose.msra.mxu0 0.0
      %487 = vmatprep.subr.mxu0 0.0
      %488 = vmatpush1.xpose.msra.mxu0 0.0
      %489 = vmatprep.subr.mxu0 0.0
      %490 = vmatpush1.xpose.msra.mxu0 0.0
      %491 = vmatprep.subr.mxu0 0.0
      %492 = vmatpush1.xpose.msra.mxu0 0.0
      %493 = vmatprep.subr.mxu0 0.0
      %494 = vmatpush1.xpose.msra.mxu0 0.0
      %495 = vmatprep.subr.mxu0 0.0
      %496 = vmatpush1.xpose.msra.mxu0 0.0
      %497 = vmatprep.subr.mxu0 0.0
      %498 = vmatpush1.xpose.msra.mxu0 0.0
      %499 = vmatprep.subr.mxu0 0.0
      %500 = vmatpush1.xpose.msra.mxu0 0.0
      %501 = vmatprep.subr.mxu0 0.0
      %502 = vmatpush1.xpose.msra.mxu0 0.0
      %503 = vmatprep.subr.mxu0 0.0
      %504 = vmatpush1.xpose.msra.mxu0 0.0
      %505 = vmatprep.subr.mxu0 0.0
      %506 = vmatpush1.xpose.msra.mxu0 0.0
      %507 = vmatprep.subr.mxu0 0.0
      %508 = vmatpush1.xpose.msra.mxu0 0.0
      %509 = vmatprep.subr.mxu0 0.0
      %510 = vmatpush1.xpose.msra.mxu0 0.0
      %511 = vmatprep.subr.mxu0 0.0
      %512 = vmatpush1.xpose.msra.mxu0 0.0
      %513 = vmatprep.subr.mxu0 0.0
      %514 = vmatpush1.xpose.msra.mxu0 0.0
      %515 = vmatprep.subr.mxu0 0.0
      %516 = vmatpush1.xpose.msra.mxu0 0.0
      %517 = vmatprep.subr.mxu0 0.0
      %518 = vmatpush1.xpose.msra.mxu0 0.0
      %519 = vmatprep.subr.mxu0 0.0
      %520 = vmatpush1.xpose.msra.mxu0 0.0
      %521 = vmatprep.subr.mxu0 0.0
      %522 = vmatpush1.xpose.msra.mxu0 0.0
      %523 = vmatprep.subr.mxu0 0.0
      %524 = vmatpush1.xpose.msra.mxu0 0.0
      %525 = vmatprep.subr.mxu0 0.0
      %526 = vmatpush1.xpose.msra.mxu0 0.0
      %527 = vmatprep.mubr.f32.mxu0 0.0
      %528 = vmatmul.mubr.f32.gmra.mrb[0].mxu0 %v449
      %v529 = vpop.f32.mrb[0].mxu0
      %v530 = vadd.f32 0.0, %v529
      %v531 = vpop.f32.mrb[0].mxu0
      %532 = vdwg.mxu0
      %v533 = vsel %vm220, %v530, -inf
      %534 = vmax.xlane.f32.xlu0 %v533
      %v535 = vpop.xlane.xlu0 %534
      %v536 = vsub.f32 %v530, %v535
      %v537 = vmul.f32 %v536, 1.442695
      %v538 = vpow.pop %v537
      %s539 = scalar_lea.vmem [#allocation2], 7
      %540 = vst.msk [vmem:[%s539] sm:$0x1] %vm200, 1.0
      %v542 = vrot.slane %v538, 6
      %v543 = vsel %vm220, %v542, 0
      %545 = vmatprep.subr.mxu0 0.0
      %546 = vmatpush1.msra.mxu0 %v297
      %547 = vmatprep.subr.mxu0 0.0
      %548 = vmatpush1.msra.mxu0 %v298
      %549 = vmatprep.subr.mxu0 0.0
      %550 = vmatpush1.msra.mxu0 %v299
      %551 = vmatprep.subr.mxu0 0.0
      %552 = vmatpush1.msra.mxu0 %v300
      %553 = vmatprep.subr.mxu0 0.0
      %554 = vmatpush1.msra.mxu0 0.0
      %555 = vmatprep.subr.mxu0 0.0
      %556 = vmatpush1.msra.mxu0 0.0
      %557 = vmatprep.subr.mxu0 0.0
      %558 = vmatpush1.msra.mxu0 0.0
      %559 = vmatprep.subr.mxu0 0.0
      %560 = vmatpush1.msra.mxu0 0.0
      %561 = vmatprep.subr.mxu0 0.0
      %562 = vmatpush1.msra.mxu0 0.0
      %563 = vmatprep.subr.mxu0 0.0
      %564 = vmatpush1.msra.mxu0 0.0
      %565 = vmatprep.subr.mxu0 0.0
      %566 = vmatpush1.msra.mxu0 0.0
      %567 = vmatprep.subr.mxu0 0.0
      %568 = vmatpush1.msra.mxu0 0.0
      %569 = vmatprep.subr.mxu0 0.0
      %570 = vmatpush1.msra.mxu0 0.0
      %571 = vmatprep.subr.mxu0 0.0
      %572 = vmatpush1.msra.mxu0 0.0
      %573 = vmatprep.subr.mxu0 0.0
      %574 = vmatpush1.msra.mxu0 0.0
      %575 = vmatprep.subr.mxu0 0.0
      %576 = vmatpush1.msra.mxu0 0.0
      %577 = vmatprep.subr.mxu0 0.0
      %578 = vmatpush1.msra.mxu0 0.0
      %579 = vmatprep.subr.mxu0 0.0
      %580 = vmatpush1.msra.mxu0 0.0
      %581 = vmatprep.subr.mxu0 0.0
      %582 = vmatpush1.msra.mxu0 0.0
      %583 = vmatprep.subr.mxu0 0.0
      %584 = vmatpush1.msra.mxu0 0.0
      %585 = vmatprep.subr.mxu0 0.0
      %586 = vmatpush1.msra.mxu0 0.0
      %587 = vmatprep.subr.mxu0 0.0
      %588 = vmatpush1.msra.mxu0 0.0
      %589 = vmatprep.subr.mxu0 0.0
      %590 = vmatpush1.msra.mxu0 0.0
      %591 = vmatprep.subr.mxu0 0.0
      %592 = vmatpush1.msra.mxu0 0.0
      %593 = vmatprep.subr.mxu0 0.0
      %594 = vmatpush1.msra.mxu0 0.0
      %595 = vmatprep.subr.mxu0 0.0
      %596 = vmatpush1.msra.mxu0 0.0
      %597 = vmatprep.subr.mxu0 0.0
      %598 = vmatpush1.msra.mxu0 0.0
      %599 = vmatprep.subr.mxu0 0.0
      %600 = vmatpush1.msra.mxu0 0.0
      %601 = vmatprep.subr.mxu0 0.0
      %602 = vmatpush1.msra.mxu0 0.0
      %603 = vmatprep.subr.mxu0 0.0
      %604 = vmatpush1.msra.mxu0 0.0
      %605 = vmatprep.subr.mxu0 0.0
      %606 = vmatpush1.msra.mxu0 0.0
      %607 = vmatprep.subr.mxu0 0.0
      %608 = vmatpush1.msra.mxu0 0.0
      %609 = vmatprep.mubr.f32.mxu0 0.0
      %610 = vmatmul.mubr.f32.gmra.mrb[0].mxu0 %v543
      %v611 = vpop.f32.mrb[0].mxu0
      %v612 = vadd.f32 0.0, %v611
      %v613 = vpop.f32.mrb[0].mxu0
      %614 = vdwg.mxu0
      %v615 = vsel %vm200, %v612, -inf
      %616 = vmax.xlane.f32.xlu0 %v615
      %v617 = vpop.xlane.xlu0 %616
      %v618 = vmax.f32 %v617, 1e-30
      %v619 = vrcp.pop %v618
      %v620 = vmul.f32 %v612, %v619
      %s621 = scalar_lea.vmem [#allocation2], 6
      %622 = vst.msk [vmem:[%s621] sm:$0x1] %vm200, %v620
      %v624 = vrot.slane %v620, 3
      %v626 = vmul.f32 %v538, %v624
      %v628 = vrot.slane %v626, 5
      %v629 = vsel %vm220, %v628, 0
      %631 = vmatprep.subr.mxu0 0.0
      %632 = vmatpush1.msra.mxu0 %v297
      %633 = vmatprep.subr.mxu0 0.0
      %634 = vmatpush1.msra.mxu0 %v298
      %635 = vmatprep.subr.mxu0 0.0
      %636 = vmatpush1.msra.mxu0 %v299
      %637 = vmatprep.subr.mxu0 0.0
      %638 = vmatpush1.msra.mxu0 %v300
      %639 = vmatprep.subr.mxu0 0.0
      %640 = vmatpush1.msra.mxu0 0.0
      %641 = vmatprep.subr.mxu0 0.0
      %642 = vmatpush1.msra.mxu0 0.0
      %643 = vmatprep.subr.mxu0 0.0
      %644 = vmatpush1.msra.mxu0 0.0
      %645 = vmatprep.subr.mxu0 0.0
      %646 = vmatpush1.msra.mxu0 0.0
      %647 = vmatprep.subr.mxu0 0.0
      %648 = vmatpush1.msra.mxu0 0.0
      %649 = vmatprep.subr.mxu0 0.0
      %650 = vmatpush1.msra.mxu0 0.0
      %651 = vmatprep.subr.mxu0 0.0
      %652 = vmatpush1.msra.mxu0 0.0
      %653 = vmatprep.subr.mxu0 0.0
      %654 = vmatpush1.msra.mxu0 0.0
      %655 = vmatprep.subr.mxu0 0.0
      %656 = vmatpush1.msra.mxu0 0.0
      %657 = vmatprep.subr.mxu0 0.0
      %658 = vmatpush1.msra.mxu0 0.0
      %659 = vmatprep.subr.mxu0 0.0
      %660 = vmatpush1.msra.mxu0 0.0
      %661 = vmatprep.subr.mxu0 0.0
      %662 = vmatpush1.msra.mxu0 0.0
      %663 = vmatprep.subr.mxu0 0.0
      %664 = vmatpush1.msra.mxu0 0.0
      %665 = vmatprep.subr.mxu0 0.0
      %666 = vmatpush1.msra.mxu0 0.0
      %667 = vmatprep.subr.mxu0 0.0
      %668 = vmatpush1.msra.mxu0 0.0
      %669 = vmatprep.subr.mxu0 0.0
      %670 = vmatpush1.msra.mxu0 0.0
      %671 = vmatprep.subr.mxu0 0.0
      %672 = vmatpush1.msra.mxu0 0.0
      %673 = vmatprep.subr.mxu0 0.0
      %674 = vmatpush1.msra.mxu0 0.0
      %675 = vmatprep.subr.mxu0 0.0
      %676 = vmatpush1.msra.mxu0 0.0
      %677 = vmatprep.subr.mxu0 0.0
      %678 = vmatpush1.msra.mxu0 0.0
      %679 = vmatprep.subr.mxu0 0.0
      %680 = vmatpush1.msra.mxu0 0.0
      %681 = vmatprep.subr.mxu0 0.0
      %682 = vmatpush1.msra.mxu0 0.0
      %683 = vmatprep.subr.mxu0 0.0
      %684 = vmatpush1.msra.mxu0 0.0
      %685 = vmatprep.subr.mxu0 0.0
      %686 = vmatpush1.msra.mxu0 0.0
      %687 = vmatprep.subr.mxu0 0.0
      %688 = vmatpush1.msra.mxu0 0.0
      %689 = vmatprep.subr.mxu0 0.0
      %690 = vmatpush1.msra.mxu0 0.0
      %691 = vmatprep.subr.mxu0 0.0
      %692 = vmatpush1.msra.mxu0 0.0
      %693 = vmatprep.subr.mxu0 0.0
      %694 = vmatpush1.msra.mxu0 0.0
      %695 = vmatprep.mubr.f32.mxu0 0.0
      %696 = vmatmul.mubr.f32.gmra.mrb[0].mxu0 %v629
      %v697 = vpop.f32.mrb[0].mxu0
      %v698 = vadd.f32 0.0, %v697
      %v699 = vpop.f32.mrb[0].mxu0
      %700 = vdwg.mxu0
      %v701 = vsel %vm200, %v698, -inf
      %702 = vmax.xlane.f32.xlu0 %v701
      %v703 = vpop.xlane.xlu0 %702
      %v704 = vmax.f32 %v703, 1e-30
      %v705 = vrcp.pop %v704
      %v706 = vmul.f32 %v698, %v705
      %s707 = scalar_lea.vmem [#allocation2], 5
      %708 = vst.msk [vmem:[%s707] sm:$0x1] %vm200, %v706
      %v710 = vrot.slane %v706, 4
      %v712 = vmul.f32 %v538, %v710
      %v714 = vrot.slane %v712, 4
      %v715 = vsel %vm220, %v714, 0
      %717 = vmatprep.subr.mxu0 0.0
      %718 = vmatpush1.msra.mxu0 %v297
      %719 = vmatprep.subr.mxu0 0.0
      %720 = vmatpush1.msra.mxu0 %v298
      %721 = vmatprep.subr.mxu0 0.0
      %722 = vmatpush1.msra.mxu0 %v299
      %723 = vmatprep.subr.mxu0 0.0
      %724 = vmatpush1.msra.mxu0 %v300
      %725 = vmatprep.subr.mxu0 0.0
      %726 = vmatpush1.msra.mxu0 0.0
      %727 = vmatprep.subr.mxu0 0.0
      %728 = vmatpush1.msra.mxu0 0.0
      %729 = vmatprep.subr.mxu0 0.0
      %730 = vmatpush1.msra.mxu0 0.0
      %731 = vmatprep.subr.mxu0 0.0
      %732 = vmatpush1.msra.mxu0 0.0
      %733 = vmatprep.subr.mxu0 0.0
      %734 = vmatpush1.msra.mxu0 0.0
      %735 = vmatprep.subr.mxu0 0.0
      %736 = vmatpush1.msra.mxu0 0.0
      %737 = vmatprep.subr.mxu0 0.0
      %738 = vmatpush1.msra.mxu0 0.0
      %739 = vmatprep.subr.mxu0 0.0
      %740 = vmatpush1.msra.mxu0 0.0
      %741 = vmatprep.subr.mxu0 0.0
      %742 = vmatpush1.msra.mxu0 0.0
      %743 = vmatprep.subr.mxu0 0.0
      %744 = vmatpush1.msra.mxu0 0.0
      %745 = vmatprep.subr.mxu0 0.0
      %746 = vmatpush1.msra.mxu0 0.0
      %747 = vmatprep.subr.mxu0 0.0
      %748 = vmatpush1.msra.mxu0 0.0
      %749 = vmatprep.subr.mxu0 0.0
      %750 = vmatpush1.msra.mxu0 0.0
      %751 = vmatprep.subr.mxu0 0.0
      %752 = vmatpush1.msra.mxu0 0.0
      %753 = vmatprep.subr.mxu0 0.0
      %754 = vmatpush1.msra.mxu0 0.0
      %755 = vmatprep.subr.mxu0 0.0
      %756 = vmatpush1.msra.mxu0 0.0
      %757 = vmatprep.subr.mxu0 0.0
      %758 = vmatpush1.msra.mxu0 0.0
      %759 = vmatprep.subr.mxu0 0.0
      %760 = vmatpush1.msra.mxu0 0.0
      %761 = vmatprep.subr.mxu0 0.0
      %762 = vmatpush1.msra.mxu0 0.0
      %763 = vmatprep.subr.mxu0 0.0
      %764 = vmatpush1.msra.mxu0 0.0
      %765 = vmatprep.subr.mxu0 0.0
      %766 = vmatpush1.msra.mxu0 0.0
      %767 = vmatprep.subr.mxu0 0.0
      %768 = vmatpush1.msra.mxu0 0.0
      %769 = vmatprep.subr.mxu0 0.0
      %770 = vmatpush1.msra.mxu0 0.0
      %771 = vmatprep.subr.mxu0 0.0
      %772 = vmatpush1.msra.mxu0 0.0
      %773 = vmatprep.subr.mxu0 0.0
      %774 = vmatpush1.msra.mxu0 0.0
      %775 = vmatprep.subr.mxu0 0.0
      %776 = vmatpush1.msra.mxu0 0.0
      %777 = vmatprep.subr.mxu0 0.0
      %778 = vmatpush1.msra.mxu0 0.0
      %779 = vmatprep.subr.mxu0 0.0
      %780 = vmatpush1.msra.mxu0 0.0
      %781 = vmatprep.mubr.f32.mxu0 0.0
      %782 = vmatmul.mubr.f32.gmra.mrb[0].mxu0 %v715
      %v783 = vpop.f32.mrb[0].mxu0
      %v784 = vadd.f32 0.0, %v783
      %v785 = vpop.f32.mrb[0].mxu0
      %786 = vdwg.mxu0
      %v787 = vsel %vm200, %v784, -inf
      %788 = vmax.xlane.f32.xlu0 %v787
      %v789 = vpop.xlane.xlu0 %788
      %v790 = vmax.f32 %v789, 1e-30
      %v791 = vrcp.pop %v790
      %v792 = vmul.f32 %v784, %v791
      %s793 = scalar_lea.vmem [#allocation2], 4
      %794 = vst.msk [vmem:[%s793] sm:$0x1] %vm200, %v792
      %v796 = vrot.slane %v792, 5
      %v798 = vmul.f32 %v538, %v796
      %v800 = vrot.slane %v798, 3
      %v801 = vsel %vm220, %v800, 0
      %803 = vmatprep.subr.mxu0 0.0
      %804 = vmatpush1.msra.mxu0 %v297
      %805 = vmatprep.subr.mxu0 0.0
      %806 = vmatpush1.msra.mxu0 %v298
      %807 = vmatprep.subr.mxu0 0.0
      %808 = vmatpush1.msra.mxu0 %v299
      %809 = vmatprep.subr.mxu0 0.0
      %810 = vmatpush1.msra.mxu0 %v300
      %811 = vmatprep.subr.mxu0 0.0
      %812 = vmatpush1.msra.mxu0 0.0
      %813 = vmatprep.subr.mxu0 0.0
      %814 = vmatpush1.msra.mxu0 0.0
      %815 = vmatprep.subr.mxu0 0.0
      %816 = vmatpush1.msra.mxu0 0.0
      %817 = vmatprep.subr.mxu0 0.0
      %818 = vmatpush1.msra.mxu0 0.0
      %819 = vmatprep.subr.mxu0 0.0
      %820 = vmatpush1.msra.mxu0 0.0
      %821 = vmatprep.subr.mxu0 0.0
      %822 = vmatpush1.msra.mxu0 0.0
      %823 = vmatprep.subr.mxu0 0.0
      %824 = vmatpush1.msra.mxu0 0.0
      %825 = vmatprep.subr.mxu0 0.0
      %826 = vmatpush1.msra.mxu0 0.0
      %827 = vmatprep.subr.mxu0 0.0
      %828 = vmatpush1.msra.mxu0 0.0
      %829 = vmatprep.subr.mxu0 0.0
      %830 = vmatpush1.msra.mxu0 0.0
      %831 = vmatprep.subr.mxu0 0.0
      %832 = vmatpush1.msra.mxu0 0.0
      %833 = vmatprep.subr.mxu0 0.0
      %834 = vmatpush1.msra.mxu0 0.0
      %835 = vmatprep.subr.mxu0 0.0
      %836 = vmatpush1.msra.mxu0 0.0
      %837 = vmatprep.subr.mxu0 0.0
      %838 = vmatpush1.msra.mxu0 0.0
      %839 = vmatprep.subr.mxu0 0.0
      %840 = vmatpush1.msra.mxu0 0.0
      %841 = vmatprep.subr.mxu0 0.0
      %842 = vmatpush1.msra.mxu0 0.0
      %843 = vmatprep.subr.mxu0 0.0
      %844 = vmatpush1.msra.mxu0 0.0
      %845 = vmatprep.subr.mxu0 0.0
      %846 = vmatpush1.msra.mxu0 0.0
      %847 = vmatprep.subr.mxu0 0.0
      %848 = vmatpush1.msra.mxu0 0.0
      %849 = vmatprep.subr.mxu0 0.0
      %850 = vmatpush1.msra.mxu0 0.0
      %851 = vmatprep.subr.mxu0 0.0
      %852 = vmatpush1.msra.mxu0 0.0
      %853 = vmatprep.subr.mxu0 0.0
      %854 = vmatpush1.msra.mxu0 0.0
      %855 = vmatprep.subr.mxu0 0.0
      %856 = vmatpush1.msra.mxu0 0.0
      %857 = vmatprep.subr.mxu0 0.0
      %858 = vmatpush1.msra.mxu0 0.0
      %859 = vmatprep.subr.mxu0 0.0
      %860 = vmatpush1.msra.mxu0 0.0
      %861 = vmatprep.subr.mxu0 0.0
      %862 = vmatpush1.msra.mxu0 0.0
      %863 = vmatprep.subr.mxu0 0.0
      %864 = vmatpush1.msra.mxu0 0.0
      %865 = vmatprep.subr.mxu0 0.0
      %866 = vmatpush1.msra.mxu0 0.0
      %867 = vmatprep.mubr.f32.mxu0 0.0
      %868 = vmatmul.mubr.f32.gmra.mrb[0].mxu0 %v801
      %v869 = vpop.f32.mrb[0].mxu0
      %v870 = vadd.f32 0.0, %v869
      %v871 = vpop.f32.mrb[0].mxu0
      %872 = vdwg.mxu0
      %v873 = vsel %vm200, %v870, -inf
      %874 = vmax.xlane.f32.xlu0 %v873
      %v875 = vpop.xlane.xlu0 %874
      %v876 = vmax.f32 %v875, 1e-30
      %v877 = vrcp.pop %v876
      %v878 = vmul.f32 %v870, %v877
      %s879 = scalar_lea.vmem [#allocation2], 3
      %880 = vst.msk [vmem:[%s879] sm:$0x1] %vm200, %v878
      %v882 = vrot.slane %v878, 6
      %v884 = vmul.f32 %v538, %v882
      %v886 = vrot.slane %v884, 2
      %v887 = vsel %vm220, %v886, 0
      %889 = vmatprep.subr.mxu0 0.0
      %890 = vmatpush1.msra.mxu0 %v297
      %891 = vmatprep.subr.mxu0 0.0
      %892 = vmatpush1.msra.mxu0 %v298
      %893 = vmatprep.subr.mxu0 0.0
      %894 = vmatpush1.msra.mxu0 %v299
      %895 = vmatprep.subr.mxu0 0.0
      %896 = vmatpush1.msra.mxu0 %v300
      %897 = vmatprep.subr.mxu0 0.0
      %898 = vmatpush1.msra.mxu0 0.0
      %899 = vmatprep.subr.mxu0 0.0
      %900 = vmatpush1.msra.mxu0 0.0
      %901 = vmatprep.subr.mxu0 0.0
      %902 = vmatpush1.msra.mxu0 0.0
      %903 = vmatprep.subr.mxu0 0.0
      %904 = vmatpush1.msra.mxu0 0.0
      %905 = vmatprep.subr.mxu0 0.0
      %906 = vmatpush1.msra.mxu0 0.0
      %907 = vmatprep.subr.mxu0 0.0
      %908 = vmatpush1.msra.mxu0 0.0
      %909 = vmatprep.subr.mxu0 0.0
      %910 = vmatpush1.msra.mxu0 0.0
      %911 = vmatprep.subr.mxu0 0.0
      %912 = vmatpush1.msra.mxu0 0.0
      %913 = vmatprep.subr.mxu0 0.0
      %914 = vmatpush1.msra.mxu0 0.0
      %915 = vmatprep.subr.mxu0 0.0
      %916 = vmatpush1.msra.mxu0 0.0
      %917 = vmatprep.subr.mxu0 0.0
      %918 = vmatpush1.msra.mxu0 0.0
      %919 = vmatprep.subr.mxu0 0.0
      %920 = vmatpush1.msra.mxu0 0.0
      %921 = vmatprep.subr.mxu0 0.0
      %922 = vmatpush1.msra.mxu0 0.0
      %923 = vmatprep.subr.mxu0 0.0
      %924 = vmatpush1.msra.mxu0 0.0
      %925 = vmatprep.subr.mxu0 0.0
      %926 = vmatpush1.msra.mxu0 0.0
      %927 = vmatprep.subr.mxu0 0.0
      %928 = vmatpush1.msra.mxu0 0.0
      %929 = vmatprep.subr.mxu0 0.0
      %930 = vmatpush1.msra.mxu0 0.0
      %931 = vmatprep.subr.mxu0 0.0
      %932 = vmatpush1.msra.mxu0 0.0
      %933 = vmatprep.subr.mxu0 0.0
      %934 = vmatpush1.msra.mxu0 0.0
      %935 = vmatprep.subr.mxu0 0.0
      %936 = vmatpush1.msra.mxu0 0.0
      %937 = vmatprep.subr.mxu0 0.0
      %938 = vmatpush1.msra.mxu0 0.0
      %939 = vmatprep.subr.mxu0 0.0
      %940 = vmatpush1.msra.mxu0 0.0
      %941 = vmatprep.subr.mxu0 0.0
      %942 = vmatpush1.msra.mxu0 0.0
      %943 = vmatprep.subr.mxu0 0.0
      %944 = vmatpush1.msra.mxu0 0.0
      %945 = vmatprep.subr.mxu0 0.0
      %946 = vmatpush1.msra.mxu0 0.0
      %947 = vmatprep.subr.mxu0 0.0
      %948 = vmatpush1.msra.mxu0 0.0
      %949 = vmatprep.subr.mxu0 0.0
      %950 = vmatpush1.msra.mxu0 0.0
      %951 = vmatprep.subr.mxu0 0.0
      %952 = vmatpush1.msra.mxu0 0.0
      %953 = vmatprep.mubr.f32.mxu0 0.0
      %954 = vmatmul.mubr.f32.gmra.mrb[0].mxu0 %v887
      %v955 = vpop.f32.mrb[0].mxu0
      %v956 = vadd.f32 0.0, %v955
      %v957 = vpop.f32.mrb[0].mxu0
      %958 = vdwg.mxu0
      %v959 = vsel %vm200, %v956, -inf
      %960 = vmax.xlane.f32.xlu0 %v959
      %v961 = vpop.xlane.xlu0 %960
      %v962 = vmax.f32 %v961, 1e-30
      %v963 = vrcp.pop %v962
      %v964 = vmul.f32 %v956, %v963
      %s965 = scalar_lea.vmem [#allocation2], 2
      %966 = vst.msk [vmem:[%s965] sm:$0x1] %vm200, %v964
      %v968 = vrot.slane %v964, 7
      %v970 = vmul.f32 %v538, %v968
      %v972 = vrot.slane %v970, 1
      %v973 = vsel %vm220, %v972, 0
      %975 = vmatprep.subr.mxu0 0.0
      %976 = vmatpush1.msra.mxu0 %v297
      %977 = vmatprep.subr.mxu0 0.0
      %978 = vmatpush1.msra.mxu0 %v298
      %979 = vmatprep.subr.mxu0 0.0
      %980 = vmatpush1.msra.mxu0 %v299
      %981 = vmatprep.subr.mxu0 0.0
      %982 = vmatpush1.msra.mxu0 %v300
      %983 = vmatprep.subr.mxu0 0.0
      %984 = vmatpush1.msra.mxu0 0.0
      %985 = vmatprep.subr.mxu0 0.0
      %986 = vmatpush1.msra.mxu0 0.0
      %987 = vmatprep.subr.mxu0 0.0
      %988 = vmatpush1.msra.mxu0 0.0
      %989 = vmatprep.subr.mxu0 0.0
      %990 = vmatpush1.msra.mxu0 0.0
      %991 = vmatprep.subr.mxu0 0.0
      %992 = vmatpush1.msra.mxu0 0.0
      %993 = vmatprep.subr.mxu0 0.0
      %994 = vmatpush1.msra.mxu0 0.0
      %995 = vmatprep.subr.mxu0 0.0
      %996 = vmatpush1.msra.mxu0 0.0
      %997 = vmatprep.subr.mxu0 0.0
      %998 = vmatpush1.msra.mxu0 0.0
      %999 = vmatprep.subr.mxu0 0.0
      %1000 = vmatpush1.msra.mxu0 0.0
      %1001 = vmatprep.subr.mxu0 0.0
      %1002 = vmatpush1.msra.mxu0 0.0
      %1003 = vmatprep.subr.mxu0 0.0
      %1004 = vmatpush1.msra.mxu0 0.0
      %1005 = vmatprep.subr.mxu0 0.0
      %1006 = vmatpush1.msra.mxu0 0.0
      %1007 = vmatprep.subr.mxu0 0.0
      %1008 = vmatpush1.msra.mxu0 0.0
      %1009 = vmatprep.subr.mxu0 0.0
      %1010 = vmatpush1.msra.mxu0 0.0
      %1011 = vmatprep.subr.mxu0 0.0
      %1012 = vmatpush1.msra.mxu0 0.0
      %1013 = vmatprep.subr.mxu0 0.0
      %1014 = vmatpush1.msra.mxu0 0.0
      %1015 = vmatprep.subr.mxu0 0.0
      %1016 = vmatpush1.msra.mxu0 0.0
      %1017 = vmatprep.subr.mxu0 0.0
      %1018 = vmatpush1.msra.mxu0 0.0
      %1019 = vmatprep.subr.mxu0 0.0
      %1020 = vmatpush1.msra.mxu0 0.0
      %1021 = vmatprep.subr.mxu0 0.0
      %1022 = vmatpush1.msra.mxu0 0.0
      %1023 = vmatprep.subr.mxu0 0.0
      %1024 = vmatpush1.msra.mxu0 0.0
      %1025 = vmatprep.subr.mxu0 0.0
      %1026 = vmatpush1.msra.mxu0 0.0
      %1027 = vmatprep.subr.mxu0 0.0
      %1028 = vmatpush1.msra.mxu0 0.0
      %1029 = vmatprep.subr.mxu0 0.0
      %1030 = vmatpush1.msra.mxu0 0.0
      %1031 = vmatprep.subr.mxu0 0.0
      %1032 = vmatpush1.msra.mxu0 0.0
      %1033 = vmatprep.subr.mxu0 0.0
      %1034 = vmatpush1.msra.mxu0 0.0
      %1035 = vmatprep.subr.mxu0 0.0
      %1036 = vmatpush1.msra.mxu0 0.0
      %1037 = vmatprep.subr.mxu0 0.0
      %1038 = vmatpush1.msra.mxu0 0.0
      %1039 = vmatprep.mubr.f32.mxu0 0.0
      %1040 = vmatmul.mubr.f32.gmra.mrb[0].mxu0 %v973
      %v1041 = vpop.f32.mrb[0].mxu0
      %v1042 = vadd.f32 0.0, %v1041
      %v1043 = vpop.f32.mrb[0].mxu0
      %1044 = vdwg.mxu0
      %v1045 = vsel %vm200, %v1042, -inf
      %1046 = vmax.xlane.f32.xlu0 %v1045
      %v1047 = vpop.xlane.xlu0 %1046
      %v1048 = vmax.f32 %v1047, 1e-30
      %v1049 = vrcp.pop %v1048
      %v1050 = vmul.f32 %v1042, %v1049
      %s1051 = scalar_lea.vmem [#allocation2], 1
      %1052 = vst.msk [vmem:[%s1051] sm:$0x1] %vm200, %v1050
      %v1053 = vmul.f32 %v538, %v1050
      %v1055 = vsel %vm220, %v1053, 0
      %1057 = vmatprep.subr.mxu0 0.0
      %1058 = vmatpush1.msra.mxu0 %v297
      %1059 = vmatprep.subr.mxu0 0.0
      %1060 = vmatpush1.msra.mxu0 %v298
      %1061 = vmatprep.subr.mxu0 0.0
      %1062 = vmatpush1.msra.mxu0 %v299
      %1063 = vmatprep.subr.mxu0 0.0
      %1064 = vmatpush1.msra.mxu0 %v300
      %1065 = vmatprep.subr.mxu0 0.0
      %1066 = vmatpush1.msra.mxu0 0.0
      %1067 = vmatprep.subr.mxu0 0.0
      %1068 = vmatpush1.msra.mxu0 0.0
      %1069 = vmatprep.subr.mxu0 0.0
      %1070 = vmatpush1.msra.mxu0 0.0
      %1071 = vmatprep.subr.mxu0 0.0
      %1072 = vmatpush1.msra.mxu0 0.0
      %1073 = vmatprep.subr.mxu0 0.0
      %1074 = vmatpush1.msra.mxu0 0.0
      %1075 = vmatprep.subr.mxu0 0.0
      %1076 = vmatpush1.msra.mxu0 0.0
      %1077 = vmatprep.subr.mxu0 0.0
      %1078 = vmatpush1.msra.mxu0 0.0
      %1079 = vmatprep.subr.mxu0 0.0
      %1080 = vmatpush1.msra.mxu0 0.0
      %1081 = vmatprep.subr.mxu0 0.0
      %1082 = vmatpush1.msra.mxu0 0.0
      %1083 = vmatprep.subr.mxu0 0.0
      %1084 = vmatpush1.msra.mxu0 0.0
      %1085 = vmatprep.subr.mxu0 0.0
      %1086 = vmatpush1.msra.mxu0 0.0
      %1087 = vmatprep.subr.mxu0 0.0
      %1088 = vmatpush1.msra.mxu0 0.0
      %1089 = vmatprep.subr.mxu0 0.0
      %1090 = vmatpush1.msra.mxu0 0.0
      %1091 = vmatprep.subr.mxu0 0.0
      %1092 = vmatpush1.msra.mxu0 0.0
      %1093 = vmatprep.subr.mxu0 0.0
      %1094 = vmatpush1.msra.mxu0 0.0
      %1095 = vmatprep.subr.mxu0 0.0
      %1096 = vmatpush1.msra.mxu0 0.0
      %1097 = vmatprep.subr.mxu0 0.0
      %1098 = vmatpush1.msra.mxu0 0.0
      %1099 = vmatprep.subr.mxu0 0.0
      %1100 = vmatpush1.msra.mxu0 0.0
      %1101 = vmatprep.subr.mxu0 0.0
      %1102 = vmatpush1.msra.mxu0 0.0
      %1103 = vmatprep.subr.mxu0 0.0
      %1104 = vmatpush1.msra.mxu0 0.0
      %1105 = vmatprep.subr.mxu0 0.0
      %1106 = vmatpush1.msra.mxu0 0.0
      %1107 = vmatprep.subr.mxu0 0.0
      %1108 = vmatpush1.msra.mxu0 0.0
      %1109 = vmatprep.subr.mxu0 0.0
      %1110 = vmatpush1.msra.mxu0 0.0
      %1111 = vmatprep.subr.mxu0 0.0
      %1112 = vmatpush1.msra.mxu0 0.0
      %1113 = vmatprep.subr.mxu0 0.0
      %1114 = vmatpush1.msra.mxu0 0.0
      %1115 = vmatprep.subr.mxu0 0.0
      %1116 = vmatpush1.msra.mxu0 0.0
      %1117 = vmatprep.subr.mxu0 0.0
      %1118 = vmatpush1.msra.mxu0 0.0
      %1119 = vmatprep.subr.mxu0 0.0
      %1120 = vmatpush1.msra.mxu0 0.0
      %1121 = vmatprep.mubr.f32.mxu0 0.0
      %1122 = vmatmul.mubr.f32.gmra.mrb[0].mxu0 %v1055
      %v1123 = vpop.f32.mrb[0].mxu0
      %v1124 = vadd.f32 0.0, %v1123
      %v1125 = vpop.f32.mrb[0].mxu0
      %1126 = vdwg.mxu0
      %v1127 = vsel %vm200, %v1124, -inf
      %1128 = vmax.xlane.f32.xlu0 %v1127
      %v1129 = vpop.xlane.xlu0 %1128
      %v1130 = vmax.f32 %v1129, 1e-30
      %v1131 = vrcp.pop %v1130
      %v1132 = vmul.f32 %v1124, %v1131
      %1133 = vst.msk [vmem:[#allocation2] sm:$0x1] %vm200, %v1132
      %s1134 = ssub.s32 8, %s198
      %p1135 = scmp.lt.s32.totalorder %s1134, 7
      %s1136 = scalar_select %p1135, %s1134, 7
      %p1137 = scmp.gt.s32.totalorder %s1136, 0
      %s1138 = scalar_select %p1137, %s1136, 0
      %s1139 = scalar_lea.vmem [#allocation2], %s1138
      %v1140 = vld [vmem:[%s1139] sm:$0x1]
      %p1141 = scmp.gt.s32.totalorder %s198, 0
      %v1142 = vmul.f32 %v215, %v538
      %v1143 = vsel %vm200, %v1142, 0.0
      %1144 = vadd.xlane.f32.xlu0 %v1143
      %v1145 = vpop.xlane.xlu0 %1144
      %v1146 = vmax.f32 %v1145, 1e-30
      %v1147 = vrcp.pop %v1146
      %v1148 = vmul.f32 %v1142, %v1147
      %v1149 = vmul.f32 %v1148, %v1140
      %v1150 = vsel %vm200, %v1149, 0.0
      %1151 = vadd.xlane.f32.xlu0 %v1150
      %v1152 = vpop.xlane.xlu0 %1151
      %v1153 = vmax.f32 %v1152, 1e-30
      %v1154 = vrcp.pop %v1153
      %v1155 = vmul.f32 1.0, %v1154
      %v1156 = vmul.f32 %v1149, %v530
      %v1157 = vsel %vm200, %v1156, 0.0
      %1158 = vadd.xlane.f32.xlu0 %v1157
      %v1159 = vpop.xlane.xlu0 %1158
      %v1160 = vmul.f32 %v1159, %v1155
      %s1161 = scalar_select %p1141, 1, 0
      %v1162 = vstv %s1161
      %vm1163 = vcmp.eq.s32.totalorder %v1162, 1
      %v1164 = vsel %vm1163, %v1160, 0.0
      %v1165 = vadd.f32 %v1164, 0.0
      %v1166 = vmul.f32 %v1149, %v213
      %v1167 = vsel %vm200, %v1166, 0.0
      %1168 = vadd.xlane.f32.xlu0 %v1167
      %v1169 = vpop.xlane.xlu0 %1168
      %v1170 = vmul.f32 %v1169, %v1155
      %v1171 = vadd.f32 %v1165, %v1170
      %s1172 = ssub.s32 9, %s198
      %p1173 = scmp.lt.s32.totalorder %s1172, 7
      %s1174 = scalar_select %p1173, %s1172, 7
      %p1175 = scmp.gt.s32.totalorder %s1174, 0
      %s1176 = scalar_select %p1175, %s1174, 0
      %s1177 = scalar_lea.vmem [#allocation2], %s1176
      %v1178 = vld [vmem:[%s1177] sm:$0x1]
      %p1179 = scmp.gt.s32.totalorder %s198, 1
      %v1181 = vlaneseq
      %v1182 = vshrl.u32 %v1181, 7
      %v1183 = vsub.s32 0, %v1182
      %v1184 = vrot.slane %v1178, %v1183
      %v1186 = vmul.f32 %v538, %v1184
      %vm1187 = vcmask 1040384
      %v1188 = vsel %vm1187, %v1148, %v1186
      %v1190 = vsel %vm220, %v1188, 0
      %1192 = vmatprep.subr.mxu0 0.0
      %1193 = vmatpush1.msra.mxu0 %v386
      %1194 = vmatprep.subr.mxu0 0.0
      %1195 = vmatpush1.msra.mxu0 %v387
      %1196 = vmatprep.subr.mxu0 0.0
      %1197 = vmatpush1.msra.mxu0 %v388
      %1198 = vmatprep.subr.mxu0 0.0
      %1199 = vmatpush1.msra.mxu0 %v389
      %1200 = vmatprep.subr.mxu0 0.0
      %1201 = vmatpush1.msra.mxu0 0.0
      %1202 = vmatprep.subr.mxu0 0.0
      %1203 = vmatpush1.msra.mxu0 0.0
      %1204 = vmatprep.subr.mxu0 0.0
      %1205 = vmatpush1.msra.mxu0 0.0
      %1206 = vmatprep.subr.mxu0 0.0
      %1207 = vmatpush1.msra.mxu0 0.0
      %1208 = vmatprep.subr.mxu0 0.0
      %1209 = vmatpush1.msra.mxu0 0.0
      %1210 = vmatprep.subr.mxu0 0.0
      %1211 = vmatpush1.msra.mxu0 0.0
      %1212 = vmatprep.subr.mxu0 0.0
      %1213 = vmatpush1.msra.mxu0 0.0
      %1214 = vmatprep.subr.mxu0 0.0
      %1215 = vmatpush1.msra.mxu0 0.0
      %1216 = vmatprep.subr.mxu0 0.0
      %1217 = vmatpush1.msra.mxu0 0.0
      %1218 = vmatprep.subr.mxu0 0.0
      %1219 = vmatpush1.msra.mxu0 0.0
      %1220 = vmatprep.subr.mxu0 0.0
      %1221 = vmatpush1.msra.mxu0 0.0
      %1222 = vmatprep.subr.mxu0 0.0
      %1223 = vmatpush1.msra.mxu0 0.0
      %1224 = vmatprep.subr.mxu0 0.0
      %1225 = vmatpush1.msra.mxu0 0.0
      %1226 = vmatprep.subr.mxu0 0.0
      %1227 = vmatpush1.msra.mxu0 0.0
      %1228 = vmatprep.subr.mxu0 0.0
      %1229 = vmatpush1.msra.mxu0 0.0
      %1230 = vmatprep.subr.mxu0 0.0
      %1231 = vmatpush1.msra.mxu0 0.0
      %1232 = vmatprep.subr.mxu0 0.0
      %1233 = vmatpush1.msra.mxu0 0.0
      %1234 = vmatprep.subr.mxu0 0.0
      %1235 = vmatpush1.msra.mxu0 0.0
      %1236 = vmatprep.subr.mxu0 0.0
      %1237 = vmatpush1.msra.mxu0 0.0
      %1238 = vmatprep.subr.mxu0 0.0
      %1239 = vmatpush1.msra.mxu0 0.0
      %1240 = vmatprep.subr.mxu0 0.0
      %1241 = vmatpush1.msra.mxu0 0.0
      %1242 = vmatprep.subr.mxu0 0.0
      %1243 = vmatpush1.msra.mxu0 0.0
      %1244 = vmatprep.subr.mxu0 0.0
      %1245 = vmatpush1.msra.mxu0 0.0
      %1246 = vmatprep.subr.mxu0 0.0
      %1247 = vmatpush1.msra.mxu0 0.0
      %1248 = vmatprep.subr.mxu0 0.0
      %1249 = vmatpush1.msra.mxu0 0.0
      %1250 = vmatprep.subr.mxu0 0.0
      %1251 = vmatpush1.msra.mxu0 0.0
      %1252 = vmatprep.subr.mxu0 0.0
      %1253 = vmatpush1.msra.mxu0 0.0
      %1254 = vmatprep.subr.mxu0 0.0
      %1255 = vmatpush1.msra.mxu0 0.0
      %1256 = vmatprep.mubr.f32.mxu0 0.0
      %1257 = vmatmul.mubr.f32.gmra.mrb[0].mxu0 %v1190
      %v1258 = vpop.f32.mrb[0].mxu0
      %v1259 = vadd.f32 0.0, %v1258
      %v1260 = vpop.f32.mrb[0].mxu0
      %1261 = vdwg.mxu0
      %v1263 = vrot.slane %v1259, 7
      %v1265 = vmul.f32 %v538, %v1263
      %v1267 = vunpack.c.l.s4 1966171168
      %v1268 = vunpack.c.0.s8 %v1267
      %v1269 = vlaneseq
      %v1270 = vshrl.u32 %v1269, 7
      %v1271 = vsub.s32 %v1268, %v1270
      %v1272 = vrot.slane %v1259, %v1271
      %v1273 = vcombine.high %v1272, %v1272
      %v1275 = vunpack.c.l.s4 1966171168
      %v1276 = vunpack.c.0.s8 %v1275
      %v1277 = vlaneseq
      %v1278 = vshrl.u32 %v1277, 7
      %v1279 = vsub.s32 %v1276, %v1278
      %v1280 = vrot.slane %v1273, %v1279
      %1281 = vrot.lane.b32.xlu0 %v1280, 96
      %v1282 = vpop.permute.xlu0 %1281
      %v1284 = vmul.f32 %v1148, %v1282
      %v1285 = vsel %vm200, %v1284, 0.0
      %1286 = vadd.xlane.f32.xlu0 %v1285
      %v1287 = vpop.xlane.xlu0 %1286
      %1288 = vrot.lane.b32.xlu0 %v1280, 64
      %v1289 = vpop.permute.xlu0 %1288
      %v1291 = vmul.f32 %v1148, %v1289
      %v1292 = vsel %vm200, %v1291, 0.0
      %1293 = vadd.xlane.f32.xlu0 %v1292
      %v1294 = vpop.xlane.xlu0 %1293
      %v1295 = vmax.f32 %v1294, 1e-30
      %v1296 = vrcp.pop %v1295
      %v1297 = vmul.f32 %v1287, %v1296
      %vm1298 = vcmask 254977
      %v1299 = vsel %vm1298, %v1265, 0.0
      %1300 = vadd.xlane.f32.xlu0 %v1299
      %v1301 = vpop.xlane.xlu0 %1300
      %v1302 = vmax.f32 %v1301, 1e-30
      %v1303 = vrcp.pop %v1302
      %v1304 = vmul.f32 %v1265, %v1303
      %v1305 = vmul.f32 %v1304, %v1184
      %v1306 = vsel %vm1298, %v1305, 0.0
      %1307 = vadd.xlane.f32.xlu0 %v1306
      %v1308 = vpop.xlane.xlu0 %1307
      %v1309 = vmax.f32 %v1308, 1e-30
      %v1310 = vrcp.pop %v1309
      %v1311 = vmul.f32 1.0, %v1310
      %v1312 = vmul.f32 %v1305, %v530
      %v1313 = vsel %vm1298, %v1312, 0.0
      %1314 = vadd.xlane.f32.xlu0 %v1313
      %v1315 = vpop.xlane.xlu0 %1314
      %v1316 = vmul.f32 %v1315, %v1311
      %s1317 = scalar_select %p1179, 1, 0
      %v1318 = vstv %s1317
      %vm1319 = vcmp.eq.s32.totalorder %v1318, 1
      %v1320 = vsel %vm1319, %v1316, 0.0
      %v1322 = vrot.slane %v1320, 1
      %v1324 = vadd.f32 %v1171, %v1322
      %v1325 = vsel %vm1319, %v1297, 0.0
      %v1326 = vadd.f32 %v1324, %v1325
      %s1327 = ssub.s32 10, %s198
      %p1328 = scmp.lt.s32.totalorder %s1327, 7
      %s1329 = scalar_select %p1328, %s1327, 7
      %p1330 = scmp.gt.s32.totalorder %s1329, 0
      %s1331 = scalar_select %p1330, %s1329, 0
      %s1332 = scalar_lea.vmem [#allocation2], %s1331
      %v1333 = vld [vmem:[%s1332] sm:$0x1]
      %p1334 = scmp.gt.s32.totalorder %s198, 2
      %v1336 = vlaneseq
      %v1337 = vshrl.u32 %v1336, 7
      %v1338 = vsub.s32 0, %v1337
      %v1339 = vrot.slane %v1333, %v1338
      %v1341 = vmul.f32 %v538, %v1339
      %v1343 = vrot.slane %v1304, 1
      %v1346 = vrot.slane %v1341, 1
      %v1348 = vsel %vm1187, %v1343, %v1346
      %v1350 = vsel %vm220, %v1348, 0
      %1352 = vmatprep.subr.mxu0 0.0
      %1353 = vmatpush1.msra.mxu0 %v386
      %1354 = vmatprep.subr.mxu0 0.0
      %1355 = vmatpush1.msra.mxu0 %v387
      %1356 = vmatprep.subr.mxu0 0.0
      %1357 = vmatpush1.msra.mxu0 %v388
      %1358 = vmatprep.subr.mxu0 0.0
      %1359 = vmatpush1.msra.mxu0 %v389
      %1360 = vmatprep.subr.mxu0 0.0
      %1361 = vmatpush1.msra.mxu0 0.0
      %1362 = vmatprep.subr.mxu0 0.0
      %1363 = vmatpush1.msra.mxu0 0.0
      %1364 = vmatprep.subr.mxu0 0.0
      %1365 = vmatpush1.msra.mxu0 0.0
      %1366 = vmatprep.subr.mxu0 0.0
      %1367 = vmatpush1.msra.mxu0 0.0
      %1368 = vmatprep.subr.mxu0 0.0
      %1369 = vmatpush1.msra.mxu0 0.0
      %1370 = vmatprep.subr.mxu0 0.0
      %1371 = vmatpush1.msra.mxu0 0.0
      %1372 = vmatprep.subr.mxu0 0.0
      %1373 = vmatpush1.msra.mxu0 0.0
      %1374 = vmatprep.subr.mxu0 0.0
      %1375 = vmatpush1.msra.mxu0 0.0
      %1376 = vmatprep.subr.mxu0 0.0
      %1377 = vmatpush1.msra.mxu0 0.0
      %1378 = vmatprep.subr.mxu0 0.0
      %1379 = vmatpush1.msra.mxu0 0.0
      %1380 = vmatprep.subr.mxu0 0.0
      %1381 = vmatpush1.msra.mxu0 0.0
      %1382 = vmatprep.subr.mxu0 0.0
      %1383 = vmatpush1.msra.mxu0 0.0
      %1384 = vmatprep.subr.mxu0 0.0
      %1385 = vmatpush1.msra.mxu0 0.0
      %1386 = vmatprep.subr.mxu0 0.0
      %1387 = vmatpush1.msra.mxu0 0.0
      %1388 = vmatprep.subr.mxu0 0.0
      %1389 = vmatpush1.msra.mxu0 0.0
      %1390 = vmatprep.subr.mxu0 0.0
      %1391 = vmatpush1.msra.mxu0 0.0
      %1392 = vmatprep.subr.mxu0 0.0
      %1393 = vmatpush1.msra.mxu0 0.0
      %1394 = vmatprep.subr.mxu0 0.0
      %1395 = vmatpush1.msra.mxu0 0.0
      %1396 = vmatprep.subr.mxu0 0.0
      %1397 = vmatpush1.msra.mxu0 0.0
      %1398 = vmatprep.subr.mxu0 0.0
      %1399 = vmatpush1.msra.mxu0 0.0
      %1400 = vmatprep.subr.mxu0 0.0
      %1401 = vmatpush1.msra.mxu0 0.0
      %1402 = vmatprep.subr.mxu0 0.0
      %1403 = vmatpush1.msra.mxu0 0.0
      %1404 = vmatprep.subr.mxu0 0.0
      %1405 = vmatpush1.msra.mxu0 0.0
      %1406 = vmatprep.subr.mxu0 0.0
      %1407 = vmatpush1.msra.mxu0 0.0
      %1408 = vmatprep.subr.mxu0 0.0
      %1409 = vmatpush1.msra.mxu0 0.0
      %1410 = vmatprep.subr.mxu0 0.0
      %1411 = vmatpush1.msra.mxu0 0.0
      %1412 = vmatprep.subr.mxu0 0.0
      %1413 = vmatpush1.msra.mxu0 0.0
      %1414 = vmatprep.subr.mxu0 0.0
      %1415 = vmatpush1.msra.mxu0 0.0
      %1416 = vmatprep.mubr.f32.mxu0 0.0
      %1417 = vmatmul.mubr.f32.gmra.mrb[0].mxu0 %v1350
      %v1418 = vpop.f32.mrb[0].mxu0
      %v1419 = vadd.f32 0.0, %v1418
      %v1420 = vpop.f32.mrb[0].mxu0
      %1421 = vdwg.mxu0
      %v1423 = vrot.slane %v1419, 6
      %v1425 = vmul.f32 %v538, %v1423
      %1426 = vrot.lane.b32.xlu0 %v1419, 96
      %v1427 = vpop.permute.xlu0 %1426
      %v1429 = vmul.f32 %v1304, %v1427
      %v1430 = vsel %vm1298, %v1429, 0.0
      %1431 = vadd.xlane.f32.xlu0 %v1430
      %v1432 = vpop.xlane.xlu0 %1431
      %1433 = vrot.lane.b32.xlu0 %v1419, 64
      %v1434 = vpop.permute.xlu0 %1433
      %v1436 = vmul.f32 %v1304, %v1434
      %v1437 = vsel %vm1298, %v1436, 0.0
      %1438 = vadd.xlane.f32.xlu0 %v1437
      %v1439 = vpop.xlane.xlu0 %1438
      %v1440 = vmax.f32 %v1439, 1e-30
      %v1441 = vrcp.pop %v1440
      %v1442 = vmul.f32 %v1432, %v1441
      %vm1443 = vcmask 256002
      %v1444 = vsel %vm1443, %v1425, 0.0
      %1445 = vadd.xlane.f32.xlu0 %v1444
      %v1446 = vpop.xlane.xlu0 %1445
      %v1447 = vmax.f32 %v1446, 1e-30
      %v1448 = vrcp.pop %v1447
      %v1449 = vmul.f32 %v1425, %v1448
      %v1450 = vmul.f32 %v1449, %v1339
      %v1451 = vsel %vm1443, %v1450, 0.0
      %1452 = vadd.xlane.f32.xlu0 %v1451
      %v1453 = vpop.xlane.xlu0 %1452
      %v1454 = vmax.f32 %v1453, 1e-30
      %v1455 = vrcp.pop %v1454
      %v1456 = vmul.f32 1.0, %v1455
      %v1457 = vmul.f32 %v1450, %v530
      %v1458 = vsel %vm1443, %v1457, 0.0
      %1459 = vadd.xlane.f32.xlu0 %v1458
      %v1460 = vpop.xlane.xlu0 %1459
      %v1461 = vmul.f32 %v1460, %v1456
      %s1462 = scalar_select %p1334, 1, 0
      %v1463 = vstv %s1462
      %vm1464 = vcmp.eq.s32.totalorder %v1463, 1
      %v1465 = vsel %vm1464, %v1461, 0.0
      %v1467 = vrot.slane %v1465, 2
      %v1469 = vadd.f32 %v1326, %v1467
      %v1470 = vsel %vm1464, %v1442, 0.0
      %v1472 = vrot.slane %v1470, 1
      %v1474 = vadd.f32 %v1469, %v1472
      %s1475 = ssub.s32 11, %s198
      %p1476 = scmp.lt.s32.totalorder %s1475, 7
      %s1477 = scalar_select %p1476, %s1475, 7
      %p1478 = scmp.gt.s32.totalorder %s1477, 0
      %s1479 = scalar_select %p1478, %s1477, 0
      %s1480 = scalar_lea.vmem [#allocation2], %s1479
      %v1481 = vld [vmem:[%s1480] sm:$0x1]
      %p1482 = scmp.gt.s32.totalorder %s198, 3
      %v1484 = vlaneseq
      %v1485 = vshrl.u32 %v1484, 7
      %v1486 = vsub.s32 0, %v1485
      %v1487 = vrot.slane %v1481, %v1486
      %v1489 = vmul.f32 %v538, %v1487
      %v1491 = vrot.slane %v1449, 2
      %v1494 = vrot.slane %v1489, 2
      %v1496 = vsel %vm1187, %v1491, %v1494
      %v1498 = vsel %vm220, %v1496, 0
      %1500 = vmatprep.subr.mxu0 0.0
      %1501 = vmatpush1.msra.mxu0 %v386
      %1502 = vmatprep.subr.mxu0 0.0
      %1503 = vmatpush1.msra.mxu0 %v387
      %1504 = vmatprep.subr.mxu0 0.0
      %1505 = vmatpush1.msra.mxu0 %v388
      %1506 = vmatprep.subr.mxu0 0.0
      %1507 = vmatpush1.msra.mxu0 %v389
      %1508 = vmatprep.subr.mxu0 0.0
      %1509 = vmatpush1.msra.mxu0 0.0
      %1510 = vmatprep.subr.mxu0 0.0
      %1511 = vmatpush1.msra.mxu0 0.0
      %1512 = vmatprep.subr.mxu0 0.0
      %1513 = vmatpush1.msra.mxu0 0.0
      %1514 = vmatprep.subr.mxu0 0.0
      %1515 = vmatpush1.msra.mxu0 0.0
      %1516 = vmatprep.subr.mxu0 0.0
      %1517 = vmatpush1.msra.mxu0 0.0
      %1518 = vmatprep.subr.mxu0 0.0
      %1519 = vmatpush1.msra.mxu0 0.0
      %1520 = vmatprep.subr.mxu0 0.0
      %1521 = vmatpush1.msra.mxu0 0.0
      %1522 = vmatprep.subr.mxu0 0.0
      %1523 = vmatpush1.msra.mxu0 0.0
      %1524 = vmatprep.subr.mxu0 0.0
      %1525 = vmatpush1.msra.mxu0 0.0
      %1526 = vmatprep.subr.mxu0 0.0
      %1527 = vmatpush1.msra.mxu0 0.0
      %1528 = vmatprep.subr.mxu0 0.0
      %1529 = vmatpush1.msra.mxu0 0.0
      %1530 = vmatprep.subr.mxu0 0.0
      %1531 = vmatpush1.msra.mxu0 0.0
      %1532 = vmatprep.subr.mxu0 0.0
      %1533 = vmatpush1.msra.mxu0 0.0
      %1534 = vmatprep.subr.mxu0 0.0
      %1535 = vmatpush1.msra.mxu0 0.0
      %1536 = vmatprep.subr.mxu0 0.0
      %1537 = vmatpush1.msra.mxu0 0.0
      %1538 = vmatprep.subr.mxu0 0.0
      %1539 = vmatpush1.msra.mxu0 0.0
      %1540 = vmatprep.subr.mxu0 0.0
      %1541 = vmatpush1.msra.mxu0 0.0
      %1542 = vmatprep.subr.mxu0 0.0
      %1543 = vmatpush1.msra.mxu0 0.0
      %1544 = vmatprep.subr.mxu0 0.0
      %1545 = vmatpush1.msra.mxu0 0.0
      %1546 = vmatprep.subr.mxu0 0.0
      %1547 = vmatpush1.msra.mxu0 0.0
      %1548 = vmatprep.subr.mxu0 0.0
      %1549 = vmatpush1.msra.mxu0 0.0
      %1550 = vmatprep.subr.mxu0 0.0
      %1551 = vmatpush1.msra.mxu0 0.0
      %1552 = vmatprep.subr.mxu0 0.0
      %1553 = vmatpush1.msra.mxu0 0.0
      %1554 = vmatprep.subr.mxu0 0.0
      %1555 = vmatpush1.msra.mxu0 0.0
      %1556 = vmatprep.subr.mxu0 0.0
      %1557 = vmatpush1.msra.mxu0 0.0
      %1558 = vmatprep.subr.mxu0 0.0
      %1559 = vmatpush1.msra.mxu0 0.0
      %1560 = vmatprep.subr.mxu0 0.0
      %1561 = vmatpush1.msra.mxu0 0.0
      %1562 = vmatprep.subr.mxu0 0.0
      %1563 = vmatpush1.msra.mxu0 0.0
      %1564 = vmatprep.mubr.f32.mxu0 0.0
      %1565 = vmatmul.mubr.f32.gmra.mrb[0].mxu0 %v1498
      %v1566 = vpop.f32.mrb[0].mxu0
      %v1567 = vadd.f32 0.0, %v1566
      %v1568 = vpop.f32.mrb[0].mxu0
      %1569 = vdwg.mxu0
      %v1571 = vrot.slane %v1567, 5
      %v1573 = vmul.f32 %v538, %v1571
      %v1574 = vrot.slane %v1567, 7
      %1575 = vrot.lane.b32.xlu0 %v1574, 96
      %v1576 = vpop.permute.xlu0 %1575
      %v1578 = vmul.f32 %v1449, %v1576
      %v1579 = vsel %vm1443, %v1578, 0.0
      %1580 = vadd.xlane.f32.xlu0 %v1579
      %v1581 = vpop.xlane.xlu0 %1580
      %1582 = vrot.lane.b32.xlu0 %v1574, 64
      %v1583 = vpop.permute.xlu0 %1582
      %v1585 = vmul.f32 %v1449, %v1583
      %v1586 = vsel %vm1443, %v1585, 0.0
      %1587 = vadd.xlane.f32.xlu0 %v1586
      %v1588 = vpop.xlane.xlu0 %1587
      %v1589 = vmax.f32 %v1588, 1e-30
      %v1590 = vrcp.pop %v1589
      %v1591 = vmul.f32 %v1581, %v1590
      %vm1592 = vcmask 257027
      %v1593 = vsel %vm1592, %v1573, 0.0
      %1594 = vadd.xlane.f32.xlu0 %v1593
      %v1595 = vpop.xlane.xlu0 %1594
      %v1596 = vmax.f32 %v1595, 1e-30
      %v1597 = vrcp.pop %v1596
      %v1598 = vmul.f32 %v1573, %v1597
      %v1599 = vmul.f32 %v1598, %v1487
      %v1600 = vsel %vm1592, %v1599, 0.0
      %1601 = vadd.xlane.f32.xlu0 %v1600
      %v1602 = vpop.xlane.xlu0 %1601
      %v1603 = vmax.f32 %v1602, 1e-30
      %v1604 = vrcp.pop %v1603
      %v1605 = vmul.f32 1.0, %v1604
      %v1606 = vmul.f32 %v1599, %v530
      %v1607 = vsel %vm1592, %v1606, 0.0
      %1608 = vadd.xlane.f32.xlu0 %v1607
      %v1609 = vpop.xlane.xlu0 %1608
      %v1610 = vmul.f32 %v1609, %v1605
      %s1611 = scalar_select %p1482, 1, 0
      %v1612 = vstv %s1611
      %vm1613 = vcmp.eq.s32.totalorder %v1612, 1
      %v1614 = vsel %vm1613, %v1610, 0.0
      %v1616 = vrot.slane %v1614, 3
      %v1618 = vadd.f32 %v1474, %v1616
      %v1619 = vsel %vm1613, %v1591, 0.0
      %v1621 = vrot.slane %v1619, 2
      %v1623 = vadd.f32 %v1618, %v1621
      %s1624 = ssub.s32 12, %s198
      %p1625 = scmp.lt.s32.totalorder %s1624, 7
      %s1626 = scalar_select %p1625, %s1624, 7
      %p1627 = scmp.gt.s32.totalorder %s1626, 0
      %s1628 = scalar_select %p1627, %s1626, 0
      %s1629 = scalar_lea.vmem [#allocation2], %s1628
      %v1630 = vld [vmem:[%s1629] sm:$0x1]
      %p1631 = scmp.gt.s32.totalorder %s198, 4
      %v1633 = vlaneseq
      %v1634 = vshrl.u32 %v1633, 7
      %v1635 = vsub.s32 0, %v1634
      %v1636 = vrot.slane %v1630, %v1635
      %v1638 = vmul.f32 %v538, %v1636
      %v1640 = vrot.slane %v1598, 3
      %v1643 = vrot.slane %v1638, 3
      %v1645 = vsel %vm1187, %v1640, %v1643
      %v1647 = vsel %vm220, %v1645, 0
      %1649 = vmatprep.subr.mxu0 0.0
      %1650 = vmatpush1.msra.mxu0 %v386
      %1651 = vmatprep.subr.mxu0 0.0
      %1652 = vmatpush1.msra.mxu0 %v387
      %1653 = vmatprep.subr.mxu0 0.0
      %1654 = vmatpush1.msra.mxu0 %v388
      %1655 = vmatprep.subr.mxu0 0.0
      %1656 = vmatpush1.msra.mxu0 %v389
      %1657 = vmatprep.subr.mxu0 0.0
      %1658 = vmatpush1.msra.mxu0 0.0
      %1659 = vmatprep.subr.mxu0 0.0
      %1660 = vmatpush1.msra.mxu0 0.0
      %1661 = vmatprep.subr.mxu0 0.0
      %1662 = vmatpush1.msra.mxu0 0.0
      %1663 = vmatprep.subr.mxu0 0.0
      %1664 = vmatpush1.msra.mxu0 0.0
      %1665 = vmatprep.subr.mxu0 0.0
      %1666 = vmatpush1.msra.mxu0 0.0
      %1667 = vmatprep.subr.mxu0 0.0
      %1668 = vmatpush1.msra.mxu0 0.0
      %1669 = vmatprep.subr.mxu0 0.0
      %1670 = vmatpush1.msra.mxu0 0.0
      %1671 = vmatprep.subr.mxu0 0.0
      %1672 = vmatpush1.msra.mxu0 0.0
      %1673 = vmatprep.subr.mxu0 0.0
      %1674 = vmatpush1.msra.mxu0 0.0
      %1675 = vmatprep.subr.mxu0 0.0
      %1676 = vmatpush1.msra.mxu0 0.0
      %1677 = vmatprep.subr.mxu0 0.0
      %1678 = vmatpush1.msra.mxu0 0.0
      %1679 = vmatprep.subr.mxu0 0.0
      %1680 = vmatpush1.msra.mxu0 0.0
      %1681 = vmatprep.subr.mxu0 0.0
      %1682 = vmatpush1.msra.mxu0 0.0
      %1683 = vmatprep.subr.mxu0 0.0
      %1684 = vmatpush1.msra.mxu0 0.0
      %1685 = vmatprep.subr.mxu0 0.0
      %1686 = vmatpush1.msra.mxu0 0.0
      %1687 = vmatprep.subr.mxu0 0.0
      %1688 = vmatpush1.msra.mxu0 0.0
      %1689 = vmatprep.subr.mxu0 0.0
      %1690 = vmatpush1.msra.mxu0 0.0
      %1691 = vmatprep.subr.mxu0 0.0
      %1692 = vmatpush1.msra.mxu0 0.0
      %1693 = vmatprep.subr.mxu0 0.0
      %1694 = vmatpush1.msra.mxu0 0.0
      %1695 = vmatprep.subr.mxu0 0.0
      %1696 = vmatpush1.msra.mxu0 0.0
      %1697 = vmatprep.subr.mxu0 0.0
      %1698 = vmatpush1.msra.mxu0 0.0
      %1699 = vmatprep.subr.mxu0 0.0
      %1700 = vmatpush1.msra.mxu0 0.0
      %1701 = vmatprep.subr.mxu0 0.0
      %1702 = vmatpush1.msra.mxu0 0.0
      %1703 = vmatprep.subr.mxu0 0.0
      %1704 = vmatpush1.msra.mxu0 0.0
      %1705 = vmatprep.subr.mxu0 0.0
      %1706 = vmatpush1.msra.mxu0 0.0
      %1707 = vmatprep.subr.mxu0 0.0
      %1708 = vmatpush1.msra.mxu0 0.0
      %1709 = vmatprep.subr.mxu0 0.0
      %1710 = vmatpush1.msra.mxu0 0.0
      %1711 = vmatprep.subr.mxu0 0.0
      %1712 = vmatpush1.msra.mxu0 0.0
      %1713 = vmatprep.mubr.f32.mxu0 0.0
      %1714 = vmatmul.mubr.f32.gmra.mrb[0].mxu0 %v1647
      %v1715 = vpop.f32.mrb[0].mxu0
      %v1716 = vadd.f32 0.0, %v1715
      %v1717 = vpop.f32.mrb[0].mxu0
      %1718 = vdwg.mxu0
      %v1720 = vrot.slane %v1716, 4
      %v1722 = vmul.f32 %v538, %v1720
      %v1723 = vrot.slane %v1716, 6
      %1724 = vrot.lane.b32.xlu0 %v1723, 96
      %v1725 = vpop.permute.xlu0 %1724
      %v1727 = vmul.f32 %v1598, %v1725
      %v1728 = vsel %vm1592, %v1727, 0.0
      %1729 = vadd.xlane.f32.xlu0 %v1728
      %v1730 = vpop.xlane.xlu0 %1729
      %1731 = vrot.lane.b32.xlu0 %v1723, 64
      %v1732 = vpop.permute.xlu0 %1731
      %v1734 = vmul.f32 %v1598, %v1732
      %v1735 = vsel %vm1592, %v1734, 0.0
      %1736 = vadd.xlane.f32.xlu0 %v1735
      %v1737 = vpop.xlane.xlu0 %1736
      %v1738 = vmax.f32 %v1737, 1e-30
      %v1739 = vrcp.pop %v1738
      %v1740 = vmul.f32 %v1730, %v1739
      %vm1741 = vcmask 258052
      %v1742 = vsel %vm1741, %v1722, 0.0
      %1743 = vadd.xlane.f32.xlu0 %v1742
      %v1744 = vpop.xlane.xlu0 %1743
      %v1745 = vmax.f32 %v1744, 1e-30
      %v1746 = vrcp.pop %v1745
      %v1747 = vmul.f32 %v1722, %v1746
      %v1748 = vmul.f32 %v1747, %v1636
      %v1749 = vsel %vm1741, %v1748, 0.0
      %1750 = vadd.xlane.f32.xlu0 %v1749
      %v1751 = vpop.xlane.xlu0 %1750
      %v1752 = vmax.f32 %v1751, 1e-30
      %v1753 = vrcp.pop %v1752
      %v1754 = vmul.f32 1.0, %v1753
      %v1755 = vmul.f32 %v1748, %v530
      %v1756 = vsel %vm1741, %v1755, 0.0
      %1757 = vadd.xlane.f32.xlu0 %v1756
      %v1758 = vpop.xlane.xlu0 %1757
      %v1759 = vmul.f32 %v1758, %v1754
      %s1760 = scalar_select %p1631, 1, 0
      %v1761 = vstv %s1760
      %vm1762 = vcmp.eq.s32.totalorder %v1761, 1
      %v1763 = vsel %vm1762, %v1759, 0.0
      %v1765 = vrot.slane %v1763, 4
      %v1767 = vadd.f32 %v1623, %v1765
      %v1768 = vsel %vm1762, %v1740, 0.0
      %v1770 = vrot.slane %v1768, 3
      %v1772 = vadd.f32 %v1767, %v1770
      %s1773 = ssub.s32 13, %s198
      %p1774 = scmp.lt.s32.totalorder %s1773, 7
      %s1775 = scalar_select %p1774, %s1773, 7
      %p1776 = scmp.gt.s32.totalorder %s1775, 0
      %s1777 = scalar_select %p1776, %s1775, 0
      %s1778 = scalar_lea.vmem [#allocation2], %s1777
      %v1779 = vld [vmem:[%s1778] sm:$0x1]
      %p1780 = scmp.gt.s32.totalorder %s198, 5
      %v1782 = vlaneseq
      %v1783 = vshrl.u32 %v1782, 7
      %v1784 = vsub.s32 0, %v1783
      %v1785 = vrot.slane %v1779, %v1784
      %v1787 = vmul.f32 %v538, %v1785
      %v1789 = vrot.slane %v1747, 4
      %v1792 = vrot.slane %v1787, 4
      %v1794 = vsel %vm1187, %v1789, %v1792
      %v1796 = vsel %vm220, %v1794, 0
      %1798 = vmatprep.subr.mxu0 0.0
      %1799 = vmatpush1.msra.mxu0 %v386
      %1800 = vmatprep.subr.mxu0 0.0
      %1801 = vmatpush1.msra.mxu0 %v387
      %1802 = vmatprep.subr.mxu0 0.0
      %1803 = vmatpush1.msra.mxu0 %v388
      %1804 = vmatprep.subr.mxu0 0.0
      %1805 = vmatpush1.msra.mxu0 %v389
      %1806 = vmatprep.subr.mxu0 0.0
      %1807 = vmatpush1.msra.mxu0 0.0
      %1808 = vmatprep.subr.mxu0 0.0
      %1809 = vmatpush1.msra.mxu0 0.0
      %1810 = vmatprep.subr.mxu0 0.0
      %1811 = vmatpush1.msra.mxu0 0.0
      %1812 = vmatprep.subr.mxu0 0.0
      %1813 = vmatpush1.msra.mxu0 0.0
      %1814 = vmatprep.subr.mxu0 0.0
      %1815 = vmatpush1.msra.mxu0 0.0
      %1816 = vmatprep.subr.mxu0 0.0
      %1817 = vmatpush1.msra.mxu0 0.0
      %1818 = vmatprep.subr.mxu0 0.0
      %1819 = vmatpush1.msra.mxu0 0.0
      %1820 = vmatprep.subr.mxu0 0.0
      %1821 = vmatpush1.msra.mxu0 0.0
      %1822 = vmatprep.subr.mxu0 0.0
      %1823 = vmatpush1.msra.mxu0 0.0
      %1824 = vmatprep.subr.mxu0 0.0
      %1825 = vmatpush1.msra.mxu0 0.0
      %1826 = vmatprep.subr.mxu0 0.0
      %1827 = vmatpush1.msra.mxu0 0.0
      %1828 = vmatprep.subr.mxu0 0.0
      %1829 = vmatpush1.msra.mxu0 0.0
      %1830 = vmatprep.subr.mxu0 0.0
      %1831 = vmatpush1.msra.mxu0 0.0
      %1832 = vmatprep.subr.mxu0 0.0
      %1833 = vmatpush1.msra.mxu0 0.0
      %1834 = vmatprep.subr.mxu0 0.0
      %1835 = vmatpush1.msra.mxu0 0.0
      %1836 = vmatprep.subr.mxu0 0.0
      %1837 = vmatpush1.msra.mxu0 0.0
      %1838 = vmatprep.subr.mxu0 0.0
      %1839 = vmatpush1.msra.mxu0 0.0
      %1840 = vmatprep.subr.mxu0 0.0
      %1841 = vmatpush1.msra.mxu0 0.0
      %1842 = vmatprep.subr.mxu0 0.0
      %1843 = vmatpush1.msra.mxu0 0.0
      %1844 = vmatprep.subr.mxu0 0.0
      %1845 = vmatpush1.msra.mxu0 0.0
      %1846 = vmatprep.subr.mxu0 0.0
      %1847 = vmatpush1.msra.mxu0 0.0
      %1848 = vmatprep.subr.mxu0 0.0
      %1849 = vmatpush1.msra.mxu0 0.0
      %1850 = vmatprep.subr.mxu0 0.0
      %1851 = vmatpush1.msra.mxu0 0.0
      %1852 = vmatprep.subr.mxu0 0.0
      %1853 = vmatpush1.msra.mxu0 0.0
      %1854 = vmatprep.subr.mxu0 0.0
      %1855 = vmatpush1.msra.mxu0 0.0
      %1856 = vmatprep.subr.mxu0 0.0
      %1857 = vmatpush1.msra.mxu0 0.0
      %1858 = vmatprep.subr.mxu0 0.0
      %1859 = vmatpush1.msra.mxu0 0.0
      %1860 = vmatprep.subr.mxu0 0.0
      %1861 = vmatpush1.msra.mxu0 0.0
      %1862 = vmatprep.mubr.f32.mxu0 0.0
      %1863 = vmatmul.mubr.f32.gmra.mrb[0].mxu0 %v1796
      %v1864 = vpop.f32.mrb[0].mxu0
      %v1865 = vadd.f32 0.0, %v1864
      %v1866 = vpop.f32.mrb[0].mxu0
      %1867 = vdwg.mxu0
      %v1869 = vrot.slane %v1865, 3
      %v1871 = vmul.f32 %v538, %v1869
      %v1872 = vrot.slane %v1865, 5
      %1873 = vrot.lane.b32.xlu0 %v1872, 96
      %v1874 = vpop.permute.xlu0 %1873
      %v1876 = vmul.f32 %v1747, %v1874
      %v1877 = vsel %vm1741, %v1876, 0.0
      %1878 = vadd.xlane.f32.xlu0 %v1877
      %v1879 = vpop.xlane.xlu0 %1878
      %1880 = vrot.lane.b32.xlu0 %v1872, 64
      %v1881 = vpop.permute.xlu0 %1880
      %v1883 = vmul.f32 %v1747, %v1881
      %v1884 = vsel %vm1741, %v1883, 0.0
      %1885 = vadd.xlane.f32.xlu0 %v1884
      %v1886 = vpop.xlane.xlu0 %1885
      %v1887 = vmax.f32 %v1886, 1e-30
      %v1888 = vrcp.pop %v1887
      %v1889 = vmul.f32 %v1879, %v1888
      %vm1890 = vcmask 259077
      %v1891 = vsel %vm1890, %v1871, 0.0
      %1892 = vadd.xlane.f32.xlu0 %v1891
      %v1893 = vpop.xlane.xlu0 %1892
      %v1894 = vmax.f32 %v1893, 1e-30
      %v1895 = vrcp.pop %v1894
      %v1896 = vmul.f32 %v1871, %v1895
      %v1897 = vmul.f32 %v1896, %v1785
      %v1898 = vsel %vm1890, %v1897, 0.0
      %1899 = vadd.xlane.f32.xlu0 %v1898
      %v1900 = vpop.xlane.xlu0 %1899
      %v1901 = vmax.f32 %v1900, 1e-30
      %v1902 = vrcp.pop %v1901
      %v1903 = vmul.f32 1.0, %v1902
      %v1904 = vmul.f32 %v1897, %v530
      %v1905 = vsel %vm1890, %v1904, 0.0
      %1906 = vadd.xlane.f32.xlu0 %v1905
      %v1907 = vpop.xlane.xlu0 %1906
      %v1908 = vmul.f32 %v1907, %v1903
      %s1909 = scalar_select %p1780, 1, 0
      %v1910 = vstv %s1909
      %vm1911 = vcmp.eq.s32.totalorder %v1910, 1
      %v1912 = vsel %vm1911, %v1908, 0.0
      %v1914 = vrot.slane %v1912, 5
      %v1916 = vadd.f32 %v1772, %v1914
      %v1917 = vsel %vm1911, %v1889, 0.0
      %v1919 = vrot.slane %v1917, 4
      %v1921 = vadd.f32 %v1916, %v1919
      %s1922 = ssub.s32 14, %s198
      %p1923 = scmp.lt.s32.totalorder %s1922, 7
      %s1924 = scalar_select %p1923, %s1922, 7
      %p1925 = scmp.gt.s32.totalorder %s1924, 0
      %s1926 = scalar_select %p1925, %s1924, 0
      %s1927 = scalar_lea.vmem [#allocation2], %s1926
      %v1928 = vld [vmem:[%s1927] sm:$0x1]
      %p1929 = scmp.gt.s32.totalorder %s198, 6
      %v1931 = vlaneseq
      %v1932 = vshrl.u32 %v1931, 7
      %v1933 = vsub.s32 0, %v1932
      %v1934 = vrot.slane %v1928, %v1933
      %v1936 = vmul.f32 %v538, %v1934
      %v1938 = vrot.slane %v1896, 5
      %v1941 = vrot.slane %v1936, 5
      %v1943 = vsel %vm1187, %v1938, %v1941
      %v1945 = vsel %vm220, %v1943, 0
      %1947 = vmatprep.subr.mxu0 0.0
      %1948 = vmatpush1.msra.mxu0 %v386
      %1949 = vmatprep.subr.mxu0 0.0
      %1950 = vmatpush1.msra.mxu0 %v387
      %1951 = vmatprep.subr.mxu0 0.0
      %1952 = vmatpush1.msra.mxu0 %v388
      %1953 = vmatprep.subr.mxu0 0.0
      %1954 = vmatpush1.msra.mxu0 %v389
      %1955 = vmatprep.subr.mxu0 0.0
      %1956 = vmatpush1.msra.mxu0 0.0
      %1957 = vmatprep.subr.mxu0 0.0
      %1958 = vmatpush1.msra.mxu0 0.0
      %1959 = vmatprep.subr.mxu0 0.0
      %1960 = vmatpush1.msra.mxu0 0.0
      %1961 = vmatprep.subr.mxu0 0.0
      %1962 = vmatpush1.msra.mxu0 0.0
      %1963 = vmatprep.subr.mxu0 0.0
      %1964 = vmatpush1.msra.mxu0 0.0
      %1965 = vmatprep.subr.mxu0 0.0
      %1966 = vmatpush1.msra.mxu0 0.0
      %1967 = vmatprep.subr.mxu0 0.0
      %1968 = vmatpush1.msra.mxu0 0.0
      %1969 = vmatprep.subr.mxu0 0.0
      %1970 = vmatpush1.msra.mxu0 0.0
      %1971 = vmatprep.subr.mxu0 0.0
      %1972 = vmatpush1.msra.mxu0 0.0
      %1973 = vmatprep.subr.mxu0 0.0
      %1974 = vmatpush1.msra.mxu0 0.0
      %1975 = vmatprep.subr.mxu0 0.0
      %1976 = vmatpush1.msra.mxu0 0.0
      %1977 = vmatprep.subr.mxu0 0.0
      %1978 = vmatpush1.msra.mxu0 0.0
      %1979 = vmatprep.subr.mxu0 0.0
      %1980 = vmatpush1.msra.mxu0 0.0
      %1981 = vmatprep.subr.mxu0 0.0
      %1982 = vmatpush1.msra.mxu0 0.0
      %1983 = vmatprep.subr.mxu0 0.0
      %1984 = vmatpush1.msra.mxu0 0.0
      %1985 = vmatprep.subr.mxu0 0.0
      %1986 = vmatpush1.msra.mxu0 0.0
      %1987 = vmatprep.subr.mxu0 0.0
      %1988 = vmatpush1.msra.mxu0 0.0
      %1989 = vmatprep.subr.mxu0 0.0
      %1990 = vmatpush1.msra.mxu0 0.0
      %1991 = vmatprep.subr.mxu0 0.0
      %1992 = vmatpush1.msra.mxu0 0.0
      %1993 = vmatprep.subr.mxu0 0.0
      %1994 = vmatpush1.msra.mxu0 0.0
      %1995 = vmatprep.subr.mxu0 0.0
      %1996 = vmatpush1.msra.mxu0 0.0
      %1997 = vmatprep.subr.mxu0 0.0
      %1998 = vmatpush1.msra.mxu0 0.0
      %1999 = vmatprep.subr.mxu0 0.0
      %2000 = vmatpush1.msra.mxu0 0.0
      %2001 = vmatprep.subr.mxu0 0.0
      %2002 = vmatpush1.msra.mxu0 0.0
      %2003 = vmatprep.subr.mxu0 0.0
      %2004 = vmatpush1.msra.mxu0 0.0
      %2005 = vmatprep.subr.mxu0 0.0
      %2006 = vmatpush1.msra.mxu0 0.0
      %2007 = vmatprep.subr.mxu0 0.0
      %2008 = vmatpush1.msra.mxu0 0.0
      %2009 = vmatprep.subr.mxu0 0.0
      %2010 = vmatpush1.msra.mxu0 0.0
      %2011 = vmatprep.mubr.f32.mxu0 0.0
      %2012 = vmatmul.mubr.f32.gmra.mrb[0].mxu0 %v1945
      %v2013 = vpop.f32.mrb[0].mxu0
      %v2014 = vadd.f32 0.0, %v2013
      %v2015 = vpop.f32.mrb[0].mxu0
      %2016 = vdwg.mxu0
      %v2018 = vrot.slane %v2014, 2
      %v2020 = vmul.f32 %v538, %v2018
      %v2021 = vrot.slane %v2014, 4
      %2022 = vrot.lane.b32.xlu0 %v2021, 96
      %v2023 = vpop.permute.xlu0 %2022
      %v2025 = vmul.f32 %v1896, %v2023
      %v2026 = vsel %vm1890, %v2025, 0.0
      %2027 = vadd.xlane.f32.xlu0 %v2026
      %v2028 = vpop.xlane.xlu0 %2027
      %2029 = vrot.lane.b32.xlu0 %v2021, 64
      %v2030 = vpop.permute.xlu0 %2029
      %v2032 = vmul.f32 %v1896, %v2030
      %v2033 = vsel %vm1890, %v2032, 0.0
      %2034 = vadd.xlane.f32.xlu0 %v2033
      %v2035 = vpop.xlane.xlu0 %2034
      %v2036 = vmax.f32 %v2035, 1e-30
      %v2037 = vrcp.pop %v2036
      %v2038 = vmul.f32 %v2028, %v2037
      %vm2039 = vcmask 260102
      %v2040 = vsel %vm2039, %v2020, 0.0
      %2041 = vadd.xlane.f32.xlu0 %v2040
      %v2042 = vpop.xlane.xlu0 %2041
      %v2043 = vmax.f32 %v2042, 1e-30
      %v2044 = vrcp.pop %v2043
      %v2045 = vmul.f32 %v2020, %v2044
      %v2046 = vmul.f32 %v2045, %v1934
      %v2047 = vsel %vm2039, %v2046, 0.0
      %2048 = vadd.xlane.f32.xlu0 %v2047
      %v2049 = vpop.xlane.xlu0 %2048
      %v2050 = vmax.f32 %v2049, 1e-30
      %v2051 = vrcp.pop %v2050
      %v2052 = vmul.f32 1.0, %v2051
      %v2053 = vmul.f32 %v2046, %v530
      %v2054 = vsel %vm2039, %v2053, 0.0
      %2055 = vadd.xlane.f32.xlu0 %v2054
      %v2056 = vpop.xlane.xlu0 %2055
      %v2057 = vmul.f32 %v2056, %v2052
      %s2058 = scalar_select %p1929, 1, 0
      %v2059 = vstv %s2058
      %vm2060 = vcmp.eq.s32.totalorder %v2059, 1
      %v2061 = vsel %vm2060, %v2057, 0.0
      %v2063 = vrot.slane %v2061, 6
      %v2065 = vadd.f32 %v1921, %v2063
      %v2066 = vsel %vm2060, %v2038, 0.0
      %v2068 = vrot.slane %v2066, 5
      %v2070 = vadd.f32 %v2065, %v2068
      %s2071 = ssub.s32 15, %s198
      %p2072 = scmp.lt.s32.totalorder %s2071, 7
      %s2073 = scalar_select %p2072, %s2071, 7
      %p2074 = scmp.gt.s32.totalorder %s2073, 0
      %s2075 = scalar_select %p2074, %s2073, 0
      %s2076 = scalar_lea.vmem [#allocation2], %s2075
      %v2077 = vld [vmem:[%s2076] sm:$0x1]
      %p2078 = scmp.gt.s32.totalorder %s198, 7
      %v2080 = vlaneseq
      %v2081 = vshrl.u32 %v2080, 7
      %v2082 = vsub.s32 0, %v2081
      %v2083 = vrot.slane %v2077, %v2082
      %v2085 = vmul.f32 %v538, %v2083
      %v2087 = vrot.slane %v2045, 6
      %v2090 = vrot.slane %v2085, 6
      %v2092 = vsel %vm1187, %v2087, %v2090
      %v2094 = vsel %vm220, %v2092, 0
      %2096 = vmatprep.subr.mxu0 0.0
      %2097 = vmatpush1.msra.mxu0 %v386
      %2098 = vmatprep.subr.mxu0 0.0
      %2099 = vmatpush1.msra.mxu0 %v387
      %2100 = vmatprep.subr.mxu0 0.0
      %2101 = vmatpush1.msra.mxu0 %v388
      %2102 = vmatprep.subr.mxu0 0.0
      %2103 = vmatpush1.msra.mxu0 %v389
      %2104 = vmatprep.subr.mxu0 0.0
      %2105 = vmatpush1.msra.mxu0 0.0
      %2106 = vmatprep.subr.mxu0 0.0
      %2107 = vmatpush1.msra.mxu0 0.0
      %2108 = vmatprep.subr.mxu0 0.0
      %2109 = vmatpush1.msra.mxu0 0.0
      %2110 = vmatprep.subr.mxu0 0.0
      %2111 = vmatpush1.msra.mxu0 0.0
      %2112 = vmatprep.subr.mxu0 0.0
      %2113 = vmatpush1.msra.mxu0 0.0
      %2114 = vmatprep.subr.mxu0 0.0
      %2115 = vmatpush1.msra.mxu0 0.0
      %2116 = vmatprep.subr.mxu0 0.0
      %2117 = vmatpush1.msra.mxu0 0.0
      %2118 = vmatprep.subr.mxu0 0.0
      %2119 = vmatpush1.msra.mxu0 0.0
      %2120 = vmatprep.subr.mxu0 0.0
      %2121 = vmatpush1.msra.mxu0 0.0
      %2122 = vmatprep.subr.mxu0 0.0
      %2123 = vmatpush1.msra.mxu0 0.0
      %2124 = vmatprep.subr.mxu0 0.0
      %2125 = vmatpush1.msra.mxu0 0.0
      %2126 = vmatprep.subr.mxu0 0.0
      %2127 = vmatpush1.msra.mxu0 0.0
      %2128 = vmatprep.subr.mxu0 0.0
      %2129 = vmatpush1.msra.mxu0 0.0
      %2130 = vmatprep.subr.mxu0 0.0
      %2131 = vmatpush1.msra.mxu0 0.0
      %2132 = vmatprep.subr.mxu0 0.0
      %2133 = vmatpush1.msra.mxu0 0.0
      %2134 = vmatprep.subr.mxu0 0.0
      %2135 = vmatpush1.msra.mxu0 0.0
      %2136 = vmatprep.subr.mxu0 0.0
      %2137 = vmatpush1.msra.mxu0 0.0
      %2138 = vmatprep.subr.mxu0 0.0
      %2139 = vmatpush1.msra.mxu0 0.0
      %2140 = vmatprep.subr.mxu0 0.0
      %2141 = vmatpush1.msra.mxu0 0.0
      %2142 = vmatprep.subr.mxu0 0.0
      %2143 = vmatpush1.msra.mxu0 0.0
      %2144 = vmatprep.subr.mxu0 0.0
      %2145 = vmatpush1.msra.mxu0 0.0
      %2146 = vmatprep.subr.mxu0 0.0
      %2147 = vmatpush1.msra.mxu0 0.0
      %2148 = vmatprep.subr.mxu0 0.0
      %2149 = vmatpush1.msra.mxu0 0.0
      %2150 = vmatprep.subr.mxu0 0.0
      %2151 = vmatpush1.msra.mxu0 0.0
      %2152 = vmatprep.subr.mxu0 0.0
      %2153 = vmatpush1.msra.mxu0 0.0
      %2154 = vmatprep.subr.mxu0 0.0
      %2155 = vmatpush1.msra.mxu0 0.0
      %2156 = vmatprep.subr.mxu0 0.0
      %2157 = vmatpush1.msra.mxu0 0.0
      %2158 = vmatprep.subr.mxu0 0.0
      %2159 = vmatpush1.msra.mxu0 0.0
      %2160 = vmatprep.mubr.f32.mxu0 0.0
      %2161 = vmatmul.mubr.f32.gmra.mrb[0].mxu0 %v2094
      %v2162 = vpop.f32.mrb[0].mxu0
      %v2163 = vadd.f32 0.0, %v2162
      %v2164 = vpop.f32.mrb[0].mxu0
      %2165 = vdwg.mxu0
      %v2167 = vrot.slane %v2163, 1
      %v2169 = vmul.f32 %v538, %v2167
      %v2170 = vrot.slane %v2163, 3
      %2171 = vrot.lane.b32.xlu0 %v2170, 96
      %v2172 = vpop.permute.xlu0 %2171
      %v2174 = vmul.f32 %v2045, %v2172
      %v2175 = vsel %vm2039, %v2174, 0.0
      %2176 = vadd.xlane.f32.xlu0 %v2175
      %v2177 = vpop.xlane.xlu0 %2176
      %2178 = vrot.lane.b32.xlu0 %v2170, 64
      %v2179 = vpop.permute.xlu0 %2178
      %v2181 = vmul.f32 %v2045, %v2179
      %v2182 = vsel %vm2039, %v2181, 0.0
      %2183 = vadd.xlane.f32.xlu0 %v2182
      %v2184 = vpop.xlane.xlu0 %2183
      %v2185 = vmax.f32 %v2184, 1e-30
      %v2186 = vrcp.pop %v2185
      %v2187 = vmul.f32 %v2177, %v2186
      %vm2188 = vcmask 261127
      %v2189 = vsel %vm2188, %v2169, 0.0
      %2190 = vadd.xlane.f32.xlu0 %v2189
      %v2191 = vpop.xlane.xlu0 %2190
      %v2192 = vmax.f32 %v2191, 1e-30
      %v2193 = vrcp.pop %v2192
      %v2194 = vmul.f32 %v2169, %v2193
      %v2195 = vmul.f32 %v2194, %v2083
      %v2196 = vsel %vm2188, %v2195, 0.0
      %2197 = vadd.xlane.f32.xlu0 %v2196
      %v2198 = vpop.xlane.xlu0 %2197
      %v2199 = vmax.f32 %v2198, 1e-30
      %v2200 = vrcp.pop %v2199
      %v2201 = vmul.f32 1.0, %v2200
      %v2202 = vmul.f32 %v2195, %v530
      %v2203 = vsel %vm2188, %v2202, 0.0
      %2204 = vadd.xlane.f32.xlu0 %v2203
      %v2205 = vpop.xlane.xlu0 %2204
      %v2206 = vmul.f32 %v2205, %v2201
      %s2207 = scalar_select %p2078, 1, 0
      %v2208 = vstv %s2207
      %vm2209 = vcmp.eq.s32.totalorder %v2208, 1
      %v2210 = vsel %vm2209, %v2206, 0.0
      %v2212 = vrot.slane %v2210, 7
      %v2214 = vadd.f32 %v2070, %v2212
      %v2215 = vsel %vm2209, %v2187, 0.0
      %v2217 = vrot.slane %v2215, 6
      %v2219 = vadd.f32 %v2214, %v2217
      %vm2220 = vcmask 0
      %2221 = vst.msk [vmem:[%s197] sm:$0x1] %vm2220, %v2219
      %p2222 = scmp.lt.s32.totalorder %s22, 1
      %s2223 = scalar_select %p2222, %s22, 1
      %s2224 = scalar_lea.vmem %s5, %s2223
      // Predicated region
      $region37: #{tpu_custom_call.1} parent=35 // pred_check
        %p2225 = pneg %p129
      $region38: #{tpu_custom_call.1} parent=35 // pred_check_branch
        %2227 = sbr.rel (%p2225) target = $region40
      $region39: #{tpu_custom_call.1} parent=35 // pred_region
        _
      $region40: #{tpu_custom_call.1} parent=35 // pred_fallthru
        _
    $region36: #{tpu_custom_call.1} parent=5 // pred_fallthru
      _
    %p2228 = scmp.le.s32.totalorder 2, %s17
    // Predicated region
    $region41: #{tpu_custom_call.1} parent=5 // pred_check
      %p2229 = pneg %p2228
    $region42: #{tpu_custom_call.1} parent=5 // pred_check_branch
      %2231 = sbr.rel (%p2229) target = $region44
    $region43: #{tpu_custom_call.1} parent=5 // pred_region
      %s2232 = ssub.s32 %s17, 2
      // Predicated region
      $region45: #{tpu_custom_call.1} parent=43 // pred_check
        %p2233 = pneg %p135
      $region46: #{tpu_custom_call.1} parent=43 // pred_check_branch
        %2235 = sbr.rel (%p2233) target = $region48
      $region47: #{tpu_custom_call.1} parent=43 // pred_region
        %p2236 = scmp.lt.s32.totalorder %s23, 1
        %s2237 = scalar_select %p2236, %s23, 1
        %s2238 = scalar_lea.vmem %s5, %s2237
      $region48: #{tpu_custom_call.1} parent=43 // pred_fallthru
        _
    $region44: #{tpu_custom_call.1} parent=5 // pred_fallthru
      _
  $region6: #{tpu_custom_call.1} parent=0 // loop_footer
    %s21 = sadd.s32 1, %s17
  $region7: #{tpu_custom_call.1} parent=0 // loop_footer_branch
    %16 = sbr.rel target = $region3
  $region8: #{tpu_custom_call.1} parent=0 // loop_exit
    _

</llo_original>
